<compile_context>
chip_gen: v6e
topology: v6e:2x2x1
jax: 0.10.0
libtpu: 0.0.40
codegen_flags: <defaults>
</compile_context>

<pallas_src>
import math

import jax
import jax.numpy as jnp
from jax.experimental import pallas as pl
from jax.experimental.pallas import tpu as pltpu

# ---- synthetic small-BERT config (stand-in for BertModel.from_pretrained) ----
VOCAB = 100
TYPE_VOCAB = 2
MAX_POS = 64
HIDDEN = 64
NUM_HEADS = 2
HEAD_DIM = HIDDEN // NUM_HEADS
INTERMEDIATE = 128
NUM_LAYERS = 2
LN_EPS = 1e-12
HEAD_PAD = 128          # ranking-head outputs padded to one full lane block


# -----------------------------------------------------------------------------
# Packed f32-vector blob layout: one 128-lane row per bias / LayerNorm vector.
# -----------------------------------------------------------------------------
def _make_vec_rows():
    rows, r = {}, 0

    def take(name):
        nonlocal r
        rows[name] = r
        r += 1

    take('emb_ln_g'); take('emb_ln_b')
    for l in range(NUM_LAYERS):
        for t in ('bq', 'bk', 'bv'):
            for h in range(NUM_HEADS):
                take(f'{t}{h}_l{l}')
        for n in ('bo', 'ln1_g', 'ln1_b', 'bi', 'bo2', 'ln2_g', 'ln2_b'):
            take(f'{n}_l{l}')
    for n in ('b1', 'b2', 'b3'):
        take(n)
    return rows, r


VEC_ROWS, _VEC_N = _make_vec_rows()
VEC_NROWS = ((_VEC_N + 7) // 8) * 8            # pad rows to a sublane multiple


# -----------------------------------------------------------------------------
# Fused whole-forward kernel (embedding LN -> L encoder layers -> pool -> head)
# -----------------------------------------------------------------------------
def _build_kernel(N, S):
    NS = N * S

    def kernel(x_ref, bias_ref, wqkv_ref, wo_ref, wi_ref, wo2_ref,
               whead_ref, vec_ref, out_ref):

        def vrow(name, width):                   # [1, width] f32 parameter row
            r = VEC_ROWS[name]
            return vec_ref[r:r + 1, 0:width]

        def ln(x, gname, bname):
            # variance from sum / sum-of-squares: independent XLU reductions
            s1 = jnp.sum(x, axis=-1, keepdims=True)
            s2 = jnp.sum(x * x, axis=-1, keepdims=True)
            mean = s1 * (1.0 / HIDDEN)
            var = s2 * (1.0 / HIDDEN) - mean * mean
            return ((x - mean) * jax.lax.rsqrt(var + LN_EPS)
                    * vrow(gname, HIDDEN) + vrow(bname, HIDDEN))

        def qkv_idx(l, t, h):                    # flattened [L*3*heads] index
            return (l * 3 + t) * NUM_HEADS + h

        # embedding LayerNorm, rows = every token of every sequence (f32)
        x = ln(x_ref[...], 'emb_ln_g', 'emb_ln_b')          # [NS, H]
        # block-diag + key-padding additive bias, built once in the wrapper
        bias = bias_ref[...]                                 # [NS, NS] f32

        for l in range(NUM_LAYERS):
            x_bf = x.astype(jnp.bfloat16)                    # one cast per layer
            attn = vrow(f'bo_l{l}', HIDDEN)                  # start from out-proj bias
            for h in range(NUM_HEADS):
                # per-head weights -> lane-0-aligned [NS, HEAD_DIM] outputs
                q = (jnp.dot(x_bf, wqkv_ref[qkv_idx(l, 0, h)],
                             preferred_element_type=jnp.float32)
                     + vrow(f'bq{h}_l{l}', HEAD_DIM))        # 1/sqrt(hd) pre-folded
                k = (jnp.dot(x_bf, wqkv_ref[qkv_idx(l, 1, h)],
                             preferred_element_type=jnp.float32)
                     + vrow(f'bk{h}_l{l}', HEAD_DIM))
                v = (jnp.dot(x_bf, wqkv_ref[qkv_idx(l, 2, h)],
                             preferred_element_type=jnp.float32)
                     + vrow(f'bv{h}_l{l}', HEAD_DIM))
                # one [NS, hd] x [hd, NS] matmul for all sequences at once
                sc = jnp.einsum('qd,kd->qk',
                                q.astype(jnp.bfloat16), k.astype(jnp.bfloat16),
                                preferred_element_type=jnp.float32) + bias
                sc = sc - jnp.max(sc, axis=-1, keepdims=True)
                p = jnp.exp(sc)
                p = p * pl.reciprocal(jnp.sum(p, axis=-1, keepdims=True),
                                      approx=True)
                ctx = jnp.dot(p.astype(jnp.bfloat16), v.astype(jnp.bfloat16),
                              preferred_element_type=jnp.float32)   # [NS, hd]
                # per-head output projection accumulated: no head concat
                attn = attn + jnp.dot(ctx.astype(jnp.bfloat16),
                                      wo_ref[l * NUM_HEADS + h],
                                      preferred_element_type=jnp.float32)
            h1 = ln(x + attn, f'ln1_g_l{l}', f'ln1_b_l{l}')

            # ---- feed-forward ----
            ff = (jnp.dot(h1.astype(jnp.bfloat16), wi_ref[l],
                          preferred_element_type=jnp.float32)
                  + vrow(f'bi_l{l}', INTERMEDIATE))
            ff = jax.nn.gelu(ff, approximate=True)   # TODO(synk): HF default is erf-GELU
            ff = (jnp.dot(ff.astype(jnp.bfloat16), wo2_ref[l],
                          preferred_element_type=jnp.float32)
                  + vrow(f'bo2_l{l}', HIDDEN))
            x = ln(h1 + ff, f'ln2_g_l{l}', f'ln2_b_l{l}')

        # ---- ranking head: AdaptiveAvgPool1d(1) -> W1+ReLU -> W2+ReLU -> out ----
        pooled = jnp.mean(x.reshape(N, S, HIDDEN), axis=1)            # [N, H]
        a1 = jnp.maximum(
            jnp.dot(pooled.astype(jnp.bfloat16), whead_ref[0][0:HIDDEN, :],
                    preferred_element_type=jnp.float32) + vrow('b1', HEAD_PAD),
            0.0)                                                      # [N, 128]
        a2 = jnp.maximum(
            jnp.dot(a1.astype(jnp.bfloat16), whead_ref[1],
                    preferred_element_type=jnp.float32) + vrow('b2', HEAD_PAD),
            0.0)                                                      # [N, 128]
        s = (jnp.dot(a2.astype(jnp.bfloat16), whead_ref[2],
                     preferred_element_type=jnp.float32) + vrow('b3', HEAD_PAD))
        out_ref[...] = s            # lane-dense [N, 128] store; column 0 = score

    return kernel


# -----------------------------------------------------------------------------
# pallas_call wrapper: one launch, everything VMEM-resident, 8 inputs total
# -----------------------------------------------------------------------------
def fused_forward_pallas(x0, bias, params, N, S):
    args = [x0, bias, params['wqkv'], params['wo'], params['wi'], params['wo2'],
            params['w_head'], params['vecs']]

    def full_spec(a):
        nd = a.ndim
        return pl.BlockSpec(a.shape, lambda *_, nd=nd: (0,) * nd)

    return pl.pallas_call(
        _build_kernel(N, S),
        out_shape=jax.ShapeDtypeStruct((N, HEAD_PAD), jnp.float32),
        grid=(1,),
        in_specs=[full_spec(a) for a in args],
        out_specs=pl.BlockSpec((N, HEAD_PAD), lambda i: (0, 0)),
        compiler_params=pltpu.CompilerParams(
            dimension_semantics=("arbitrary",)),
    )(*args)


# -----------------------------------------------------------------------------
# Model glue (plain JAX): embedding gathers, sequence concat, bias build, split
# -----------------------------------------------------------------------------
def bert_ranker_forward(params, input_ids1, attention_mask1,
                        input_ids2, attention_mask2,
                        token_type_ids1, token_type_ids2):
    B, S = input_ids1.shape
    N = 2 * B
    # both (independent) query batches go through the encoder in one fused pass
    input_ids = jnp.concatenate([input_ids1, input_ids2], axis=0)
    token_type_ids = jnp.concatenate([token_type_ids1, token_type_ids2], axis=0)
    attention_mask = jnp.concatenate([attention_mask1, attention_mask2], axis=0)

    pos = jnp.arange(S)
    emb = (params['word_emb'][input_ids]
           + params['pos_emb'][pos][None, :, :]
           + params['type_emb'][token_type_ids]).astype(jnp.float32)
    x0 = emb.reshape(N * S, HIDDEN)

    # block-diagonal (sequence independence) + key-padding additive bias,
    # built ONCE here and reused by every layer / head inside the kernel.
    seg = jnp.repeat(jnp.arange(N, dtype=jnp.int32), S)              # [NS]
    key_ok = attention_mask.reshape(N * S) > 0
    allowed = (seg[:, None] == seg[None, :]) & key_ok[None, :]
    bias = jnp.where(allowed, 0.0, -10000.0).astype(jnp.float32)     # [NS, NS]

    out = fused_forward_pallas(x0, bias, params, N, S)               # [N, 128]
    scores = out[:, 0]
    scores_1 = scores[:B].reshape(1, -1)     # torch.squeeze().reshape(1, -1)
    scores_2 = scores[B:].reshape(1, -1)
    return scores_1, scores_2


# -----------------------------------------------------------------------------
# Deterministic parameter init (synthetic small BERT; no checkpoint loading).
# MXU weights stored in bf16; biases / LN params packed into one f32 blob.
# -----------------------------------------------------------------------------
def init_params(key):
    keys = jax.random.split(key, 64)
    kit = iter(keys)

    def nrm(shape, std=0.02):
        return jax.random.normal(next(kit), shape, jnp.float32) * std

    L, HD = NUM_LAYERS, HEAD_DIM
    scale = 1.0 / math.sqrt(HD)

    # per-head Q/K/V weights (1/sqrt(hd) folded into Wq) and per-head out-proj
    wq = nrm((L, NUM_HEADS, HIDDEN, HD)) * scale
    wk = nrm((L, NUM_HEADS, HIDDEN, HD))
    wv = nrm((L, NUM_HEADS, HIDDEN, HD))
    wqkv = (jnp.stack([wq, wk, wv], axis=1)            # [L, 3, heads, H, hd]
            .reshape(L * 3 * NUM_HEADS, HIDDEN, HD)
            .astype(jnp.bfloat16))
    wo = nrm((L, NUM_HEADS, HD, HIDDEN)).reshape(
        L * NUM_HEADS, HD, HIDDEN).astype(jnp.bfloat16)
    wi = nrm((L, HIDDEN, INTERMEDIATE)).astype(jnp.bfloat16)
    wo2 = nrm((L, INTERMEDIATE, HIDDEN)).astype(jnp.bfloat16)

    # ranking head W1: H->100, W2: 100->10, out: 10->1, zero-padded to 128x128
    w1 = nrm((HIDDEN, 100)); w2 = nrm((100, 10)); w3 = nrm((10, 1))
    w1p = jnp.zeros((HEAD_PAD, HEAD_PAD), jnp.float32).at[:HIDDEN, :100].set(w1)
    w2p = jnp.zeros((HEAD_PAD, HEAD_PAD), jnp.float32).at[:100, :10].set(w2)
    w3p = jnp.zeros((HEAD_PAD, HEAD_PAD), jnp.float32).at[:10, :1].set(w3)
    w_head = jnp.stack([w1p, w2p, w3p]).astype(jnp.bfloat16)   # [3, 128, 128]

    # one packed f32 blob for every bias / LayerNorm vector (one row each)
    vecs = jnp.zeros((VEC_NROWS, 128), jnp.float32)

    def put(v, name, val):
        return v.at[VEC_ROWS[name], :val.shape[0]].set(val)

    vecs = put(vecs, 'emb_ln_g', jnp.ones((HIDDEN,), jnp.float32))
    for l in range(L):
        for h in range(NUM_HEADS):
            vecs = put(vecs, f'bq{h}_l{l}', nrm((HD,)) * scale)   # scale folded
            vecs = put(vecs, f'bk{h}_l{l}', nrm((HD,)))
            vecs = put(vecs, f'bv{h}_l{l}', nrm((HD,)))
        vecs = put(vecs, f'bo_l{l}', nrm((HIDDEN,)))
        vecs = put(vecs, f'ln1_g_l{l}', jnp.ones((HIDDEN,), jnp.float32))
        vecs = put(vecs, f'bi_l{l}', nrm((INTERMEDIATE,)))
        vecs = put(vecs, f'bo2_l{l}', nrm((HIDDEN,)))
        vecs = put(vecs, f'ln2_g_l{l}', jnp.ones((HIDDEN,), jnp.float32))
    vecs = put(vecs, 'b1', nrm((100,)))     # pad cols stay 0 so relu(0)=0 there
    vecs = put(vecs, 'b2', nrm((10,)))
    vecs = put(vecs, 'b3', nrm((1,)))
    # (LayerNorm betas stay zero)

    return {
        'word_emb': nrm((VOCAB, HIDDEN)),
        'pos_emb': nrm((MAX_POS, HIDDEN)),
        'type_emb': nrm((TYPE_VOCAB, HIDDEN)),
        'wqkv': wqkv, 'wo': wo, 'wi': wi, 'wo2': wo2,
        'w_head': w_head, 'vecs': vecs,
    }


# -----------------------------------------------------------------------------
if __name__ == "__main__":
    key = jax.random.PRNGKey(0)
    pkey, dkey = jax.random.split(key)
    params = init_params(pkey)

    B, S = 2, 16
    k1, k2 = jax.random.split(dkey, 2)
    input_ids1 = jax.random.randint(k1, (B, S), 0, VOCAB, dtype=jnp.int32)
    input_ids2 = jax.random.randint(k2, (B, S), 0, VOCAB, dtype=jnp.int32)
    attention_mask1 = jnp.ones((B, S), jnp.int32)
    attention_mask2 = jnp.ones((B, S), jnp.int32).at[:, S - 4:].set(0)  # padding
    token_type_ids1 = jnp.zeros((B, S), jnp.int32)
    token_type_ids2 = jnp.zeros((B, S), jnp.int32)

    fwd = jax.jit(bert_ranker_forward)
    scores_1, scores_2 = fwd(params, input_ids1, attention_mask1,
                             input_ids2, attention_mask2,
                             token_type_ids1, token_type_ids2)

    jax.block_until_ready((scores_1, scores_2))
    assert scores_1.shape == (1, B) and scores_2.shape == (1, B)
    assert bool(jnp.all(jnp.isfinite(scores_1))) and bool(jnp.all(jnp.isfinite(scores_2)))
    print("KERNEL_OK")
</pallas_src>

<mosaic_0001>
module attributes {stable_mosaic.version = 11 : i64} {
  func.func @kernel(%arg0: i32, %arg1: memref<64x64xf32, #tpu.memory_space<vmem>>, %arg2: memref<64x64xf32, #tpu.memory_space<vmem>>, %arg3: memref<12x64x32xbf16, #tpu.memory_space<vmem>>, %arg4: memref<4x32x64xbf16, #tpu.memory_space<vmem>>, %arg5: memref<2x64x128xbf16, #tpu.memory_space<vmem>>, %arg6: memref<2x128x64xbf16, #tpu.memory_space<vmem>>, %arg7: memref<3x128x128xbf16, #tpu.memory_space<vmem>>, %arg8: memref<32x128xf32, #tpu.memory_space<vmem>>, %arg9: memref<4x128xf32, #tpu.memory_space<vmem>>) attributes {dimension_semantics = [#tpu.dimension_semantics<arbitrary>], iteration_bounds = array<i64: 1>, scalar_prefetch = 0 : i64, scratch_operands = 0 : i64, tpu.core_type = #tpu.core_type<tc>, window_params = [{pipeline_mode = #tpu.pipeline_mode<synchronous>, transform_indices = @transform_0, window_bounds = array<i64: 64, 64>}, {pipeline_mode = #tpu.pipeline_mode<synchronous>, transform_indices = @transform_1, window_bounds = array<i64: 64, 64>}, {pipeline_mode = #tpu.pipeline_mode<synchronous>, transform_indices = @transform_2, window_bounds = array<i64: 12, 64, 32>}, {pipeline_mode = #tpu.pipeline_mode<synchronous>, transform_indices = @transform_3, window_bounds = array<i64: 4, 32, 64>}, {pipeline_mode = #tpu.pipeline_mode<synchronous>, transform_indices = @transform_4, window_bounds = array<i64: 2, 64, 128>}, {pipeline_mode = #tpu.pipeline_mode<synchronous>, transform_indices = @transform_5, window_bounds = array<i64: 2, 128, 64>}, {pipeline_mode = #tpu.pipeline_mode<synchronous>, transform_indices = @transform_6, window_bounds = array<i64: 3, 128, 128>}, {pipeline_mode = #tpu.pipeline_mode<synchronous>, transform_indices = @transform_7, window_bounds = array<i64: 32, 128>}, {pipeline_mode = #tpu.pipeline_mode<synchronous>, transform_indices = @transform_8, window_bounds = array<i64: 4, 128>}]} {
    %c0 = arith.constant 0 : index
    %c0_0 = arith.constant 0 : index
    %0 = vector.load %arg1[%c0, %c0_0] : memref<64x64xf32, #tpu.memory_space<vmem>>, vector<64x64xf32>
    %cst = arith.constant dense<0.000000e+00> : vector<64xf32>
    %1 = vector.multi_reduction <add>, %0, %cst [1] : vector<64x64xf32> to vector<64xf32>
    %2 = vector.shape_cast %1 : vector<64xf32> to vector<64x1xf32>
    %3 = arith.mulf %0, %0 : vector<64x64xf32>
    %cst_1 = arith.constant dense<0.000000e+00> : vector<64xf32>
    %4 = vector.multi_reduction <add>, %3, %cst_1 [1] : vector<64x64xf32> to vector<64xf32>
    %5 = vector.shape_cast %4 : vector<64xf32> to vector<64x1xf32>
    %cst_2 = arith.constant 1.562500e-02 : f32
    %6 = vector.broadcast %cst_2 : f32 to vector<64x1xf32>
    %7 = arith.mulf %2, %6 : vector<64x1xf32>
    %cst_3 = arith.constant 1.562500e-02 : f32
    %8 = vector.broadcast %cst_3 : f32 to vector<64x1xf32>
    %9 = arith.mulf %5, %8 : vector<64x1xf32>
    %10 = arith.mulf %7, %7 : vector<64x1xf32>
    %11 = arith.subf %9, %10 : vector<64x1xf32>
    %12 = vector.broadcast %7 : vector<64x1xf32> to vector<64x64xf32>
    %13 = arith.subf %0, %12 : vector<64x64xf32>
    %cst_4 = arith.constant 9.99999996E-13 : f32
    %14 = vector.broadcast %cst_4 : f32 to vector<64x1xf32>
    %15 = arith.addf %11, %14 : vector<64x1xf32>
    %16 = math.rsqrt %15 : vector<64x1xf32>
    %17 = vector.broadcast %16 : vector<64x1xf32> to vector<64x64xf32>
    %18 = arith.mulf %13, %17 : vector<64x64xf32>
    %c0_5 = arith.constant 0 : index
    %c0_6 = arith.constant 0 : index
    %19 = vector.load %arg8[%c0_5, %c0_6] : memref<32x128xf32, #tpu.memory_space<vmem>>, vector<1x64xf32>
    %20 = vector.broadcast %19 : vector<1x64xf32> to vector<64x64xf32>
    %21 = arith.mulf %18, %20 : vector<64x64xf32>
    %c1 = arith.constant 1 : index
    %c0_7 = arith.constant 0 : index
    %22 = vector.load %arg8[%c1, %c0_7] : memref<32x128xf32, #tpu.memory_space<vmem>>, vector<1x64xf32>
    %23 = vector.broadcast %22 : vector<1x64xf32> to vector<64x64xf32>
    %24 = arith.addf %21, %23 : vector<64x64xf32>
    %c0_8 = arith.constant 0 : index
    %c0_9 = arith.constant 0 : index
    %25 = vector.load %arg2[%c0_8, %c0_9] : memref<64x64xf32, #tpu.memory_space<vmem>>, vector<64x64xf32>
    %26 = arith.truncf %24 : vector<64x64xf32> to vector<64x64xbf16>
    %c8 = arith.constant 8 : index
    %c0_10 = arith.constant 0 : index
    %27 = vector.load %arg8[%c8, %c0_10] : memref<32x128xf32, #tpu.memory_space<vmem>>, vector<1x64xf32>
    %c0_11 = arith.constant 0 : index
    %c0_12 = arith.constant 0 : index
    %c0_13 = arith.constant 0 : index
    %28 = vector.load %arg3[%c0_11, %c0_12, %c0_13] : memref<12x64x32xbf16, #tpu.memory_space<vmem>>, vector<1x64x32xbf16>
    %29 = vector.shape_cast %28 : vector<1x64x32xbf16> to vector<64x32xbf16>
    %cst_14 = arith.constant dense<0.000000e+00> : vector<64x32xf32>
    %30 = tpu.matmul %26, %29, %cst_14 {dimension_numbers = #tpu.dot_dimension_numbers<[1], [0], [0], [1], [0, 0, 1, 1], [], []>} : vector<64x64xbf16>, vector<64x32xbf16>, vector<64x32xf32> -> vector<64x32xf32>
    %c2 = arith.constant 2 : index
    %c0_15 = arith.constant 0 : index
    %31 = vector.load %arg8[%c2, %c0_15] : memref<32x128xf32, #tpu.memory_space<vmem>>, vector<1x32xf32>
    %32 = vector.broadcast %31 : vector<1x32xf32> to vector<64x32xf32>
    %33 = arith.addf %30, %32 : vector<64x32xf32>
    %c2_16 = arith.constant 2 : index
    %c0_17 = arith.constant 0 : index
    %c0_18 = arith.constant 0 : index
    %34 = vector.load %arg3[%c2_16, %c0_17, %c0_18] : memref<12x64x32xbf16, #tpu.memory_space<vmem>>, vector<1x64x32xbf16>
    %35 = vector.shape_cast %34 : vector<1x64x32xbf16> to vector<64x32xbf16>
    %cst_19 = arith.constant dense<0.000000e+00> : vector<64x32xf32>
    %36 = tpu.matmul %26, %35, %cst_19 {dimension_numbers = #tpu.dot_dimension_numbers<[1], [0], [0], [1], [0, 0, 1, 1], [], []>} : vector<64x64xbf16>, vector<64x32xbf16>, vector<64x32xf32> -> vector<64x32xf32>
    %c4 = arith.constant 4 : index
    %c0_20 = arith.constant 0 : index
    %37 = vector.load %arg8[%c4, %c0_20] : memref<32x128xf32, #tpu.memory_space<vmem>>, vector<1x32xf32>
    %38 = vector.broadcast %37 : vector<1x32xf32> to vector<64x32xf32>
    %39 = arith.addf %36, %38 : vector<64x32xf32>
    %c4_21 = arith.constant 4 : index
    %c0_22 = arith.constant 0 : index
    %c0_23 = arith.constant 0 : index
    %40 = vector.load %arg3[%c4_21, %c0_22, %c0_23] : memref<12x64x32xbf16, #tpu.memory_space<vmem>>, vector<1x64x32xbf16>
    %41 = vector.shape_cast %40 : vector<1x64x32xbf16> to vector<64x32xbf16>
    %cst_24 = arith.constant dense<0.000000e+00> : vector<64x32xf32>
    %42 = tpu.matmul %26, %41, %cst_24 {dimension_numbers = #tpu.dot_dimension_numbers<[1], [0], [0], [1], [0, 0, 1, 1], [], []>} : vector<64x64xbf16>, vector<64x32xbf16>, vector<64x32xf32> -> vector<64x32xf32>
    %c6 = arith.constant 6 : index
    %c0_25 = arith.constant 0 : index
    %43 = vector.load %arg8[%c6, %c0_25] : memref<32x128xf32, #tpu.memory_space<vmem>>, vector<1x32xf32>
    %44 = vector.broadcast %43 : vector<1x32xf32> to vector<64x32xf32>
    %45 = arith.addf %42, %44 : vector<64x32xf32>
    %46 = arith.truncf %33 : vector<64x32xf32> to vector<64x32xbf16>
    %47 = arith.truncf %39 : vector<64x32xf32> to vector<64x32xbf16>
    "tpu.trace_start"() <{level = 10 : i32, message = "qd,kd->qk"}> : () -> ()
    %cst_26 = arith.constant dense<0.000000e+00> : vector<64x64xf32>
    %48 = tpu.matmul %46, %47, %cst_26 {dimension_numbers = #tpu.dot_dimension_numbers<[1], [1], [0], [0], [0, 0, 1, 0], [], []>} : vector<64x32xbf16>, vector<64x32xbf16>, vector<64x64xf32> -> vector<64x64xf32>
    "tpu.trace_stop"() : () -> ()
    %49 = arith.addf %48, %25 : vector<64x64xf32>
    %cst_27 = arith.constant dense<0xFF800000> : vector<64xf32>
    %50 = vector.multi_reduction <maximumf>, %49, %cst_27 [1] : vector<64x64xf32> to vector<64xf32>
    %51 = vector.shape_cast %50 : vector<64xf32> to vector<64x1xf32>
    %52 = vector.broadcast %51 : vector<64x1xf32> to vector<64x64xf32>
    %53 = arith.subf %49, %52 : vector<64x64xf32>
    %54 = math.exp %53 : vector<64x64xf32>
    %cst_28 = arith.constant dense<0.000000e+00> : vector<64xf32>
    %55 = vector.multi_reduction <add>, %54, %cst_28 [1] : vector<64x64xf32> to vector<64xf32>
    %56 = vector.shape_cast %55 : vector<64xf32> to vector<64x1xf32>
    %57 = tpu.reciprocal %56 {approx = true} : vector<64x1xf32> -> vector<64x1xf32>
    %58 = vector.broadcast %57 : vector<64x1xf32> to vector<64x64xf32>
    %59 = arith.mulf %54, %58 : vector<64x64xf32>
    %60 = arith.truncf %59 : vector<64x64xf32> to vector<64x64xbf16>
    %61 = arith.truncf %45 : vector<64x32xf32> to vector<64x32xbf16>
    %cst_29 = arith.constant dense<0.000000e+00> : vector<64x32xf32>
    %62 = tpu.matmul %60, %61, %cst_29 {dimension_numbers = #tpu.dot_dimension_numbers<[1], [0], [0], [1], [0, 0, 1, 1], [], []>} : vector<64x64xbf16>, vector<64x32xbf16>, vector<64x32xf32> -> vector<64x32xf32>
    %63 = arith.truncf %62 : vector<64x32xf32> to vector<64x32xbf16>
    %c0_30 = arith.constant 0 : index
    %c0_31 = arith.constant 0 : index
    %c0_32 = arith.constant 0 : index
    %64 = vector.load %arg4[%c0_30, %c0_31, %c0_32] : memref<4x32x64xbf16, #tpu.memory_space<vmem>>, vector<1x32x64xbf16>
    %65 = vector.shape_cast %64 : vector<1x32x64xbf16> to vector<32x64xbf16>
    %cst_33 = arith.constant dense<0.000000e+00> : vector<64x64xf32>
    %66 = tpu.matmul %63, %65, %cst_33 {dimension_numbers = #tpu.dot_dimension_numbers<[1], [0], [0], [1], [0, 0, 1, 1], [], []>} : vector<64x32xbf16>, vector<32x64xbf16>, vector<64x64xf32> -> vector<64x64xf32>
    %67 = vector.broadcast %27 : vector<1x64xf32> to vector<64x64xf32>
    %68 = arith.addf %67, %66 : vector<64x64xf32>
    %c1_34 = arith.constant 1 : index
    %c0_35 = arith.constant 0 : index
    %c0_36 = arith.constant 0 : index
    %69 = vector.load %arg3[%c1_34, %c0_35, %c0_36] : memref<12x64x32xbf16, #tpu.memory_space<vmem>>, vector<1x64x32xbf16>
    %70 = vector.shape_cast %69 : vector<1x64x32xbf16> to vector<64x32xbf16>
    %cst_37 = arith.constant dense<0.000000e+00> : vector<64x32xf32>
    %71 = tpu.matmul %26, %70, %cst_37 {dimension_numbers = #tpu.dot_dimension_numbers<[1], [0], [0], [1], [0, 0, 1, 1], [], []>} : vector<64x64xbf16>, vector<64x32xbf16>, vector<64x32xf32> -> vector<64x32xf32>
    %c3 = arith.constant 3 : index
    %c0_38 = arith.constant 0 : index
    %72 = vector.load %arg8[%c3, %c0_38] : memref<32x128xf32, #tpu.memory_space<vmem>>, vector<1x32xf32>
    %73 = vector.broadcast %72 : vector<1x32xf32> to vector<64x32xf32>
    %74 = arith.addf %71, %73 : vector<64x32xf32>
    %c3_39 = arith.constant 3 : index
    %c0_40 = arith.constant 0 : index
    %c0_41 = arith.constant 0 : index
    %75 = vector.load %arg3[%c3_39, %c0_40, %c0_41] : memref<12x64x32xbf16, #tpu.memory_space<vmem>>, vector<1x64x32xbf16>
    %76 = vector.shape_cast %75 : vector<1x64x32xbf16> to vector<64x32xbf16>
    %cst_42 = arith.constant dense<0.000000e+00> : vector<64x32xf32>
    %77 = tpu.matmul %26, %76, %cst_42 {dimension_numbers = #tpu.dot_dimension_numbers<[1], [0], [0], [1], [0, 0, 1, 1], [], []>} : vector<64x64xbf16>, vector<64x32xbf16>, vector<64x32xf32> -> vector<64x32xf32>
    %c5 = arith.constant 5 : index
    %c0_43 = arith.constant 0 : index
    %78 = vector.load %arg8[%c5, %c0_43] : memref<32x128xf32, #tpu.memory_space<vmem>>, vector<1x32xf32>
    %79 = vector.broadcast %78 : vector<1x32xf32> to vector<64x32xf32>
    %80 = arith.addf %77, %79 : vector<64x32xf32>
    %c5_44 = arith.constant 5 : index
    %c0_45 = arith.constant 0 : index
    %c0_46 = arith.constant 0 : index
    %81 = vector.load %arg3[%c5_44, %c0_45, %c0_46] : memref<12x64x32xbf16, #tpu.memory_space<vmem>>, vector<1x64x32xbf16>
    %82 = vector.shape_cast %81 : vector<1x64x32xbf16> to vector<64x32xbf16>
    %cst_47 = arith.constant dense<0.000000e+00> : vector<64x32xf32>
    %83 = tpu.matmul %26, %82, %cst_47 {dimension_numbers = #tpu.dot_dimension_numbers<[1], [0], [0], [1], [0, 0, 1, 1], [], []>} : vector<64x64xbf16>, vector<64x32xbf16>, vector<64x32xf32> -> vector<64x32xf32>
    %c7 = arith.constant 7 : index
    %c0_48 = arith.constant 0 : index
    %84 = vector.load %arg8[%c7, %c0_48] : memref<32x128xf32, #tpu.memory_space<vmem>>, vector<1x32xf32>
    %85 = vector.broadcast %84 : vector<1x32xf32> to vector<64x32xf32>
    %86 = arith.addf %83, %85 : vector<64x32xf32>
    %87 = arith.truncf %74 : vector<64x32xf32> to vector<64x32xbf16>
    %88 = arith.truncf %80 : vector<64x32xf32> to vector<64x32xbf16>
    "tpu.trace_start"() <{level = 10 : i32, message = "qd,kd->qk"}> : () -> ()
    %cst_49 = arith.constant dense<0.000000e+00> : vector<64x64xf32>
    %89 = tpu.matmul %87, %88, %cst_49 {dimension_numbers = #tpu.dot_dimension_numbers<[1], [1], [0], [0], [0, 0, 1, 0], [], []>} : vector<64x32xbf16>, vector<64x32xbf16>, vector<64x64xf32> -> vector<64x64xf32>
    "tpu.trace_stop"() : () -> ()
    %90 = arith.addf %89, %25 : vector<64x64xf32>
    %cst_50 = arith.constant dense<0xFF800000> : vector<64xf32>
    %91 = vector.multi_reduction <maximumf>, %90, %cst_50 [1] : vector<64x64xf32> to vector<64xf32>
    %92 = vector.shape_cast %91 : vector<64xf32> to vector<64x1xf32>
    %93 = vector.broadcast %92 : vector<64x1xf32> to vector<64x64xf32>
    %94 = arith.subf %90, %93 : vector<64x64xf32>
    %95 = math.exp %94 : vector<64x64xf32>
    %cst_51 = arith.constant dense<0.000000e+00> : vector<64xf32>
    %96 = vector.multi_reduction <add>, %95, %cst_51 [1] : vector<64x64xf32> to vector<64xf32>
    %97 = vector.shape_cast %96 : vector<64xf32> to vector<64x1xf32>
    %98 = tpu.reciprocal %97 {approx = true} : vector<64x1xf32> -> vector<64x1xf32>
    %99 = vector.broadcast %98 : vector<64x1xf32> to vector<64x64xf32>
    %100 = arith.mulf %95, %99 : vector<64x64xf32>
    %101 = arith.truncf %100 : vector<64x64xf32> to vector<64x64xbf16>
    %102 = arith.truncf %86 : vector<64x32xf32> to vector<64x32xbf16>
    %cst_52 = arith.constant dense<0.000000e+00> : vector<64x32xf32>
    %103 = tpu.matmul %101, %102, %cst_52 {dimension_numbers = #tpu.dot_dimension_numbers<[1], [0], [0], [1], [0, 0, 1, 1], [], []>} : vector<64x64xbf16>, vector<64x32xbf16>, vector<64x32xf32> -> vector<64x32xf32>
    %104 = arith.truncf %103 : vector<64x32xf32> to vector<64x32xbf16>
    %c1_53 = arith.constant 1 : index
    %c0_54 = arith.constant 0 : index
    %c0_55 = arith.constant 0 : index
    %105 = vector.load %arg4[%c1_53, %c0_54, %c0_55] : memref<4x32x64xbf16, #tpu.memory_space<vmem>>, vector<1x32x64xbf16>
    %106 = vector.shape_cast %105 : vector<1x32x64xbf16> to vector<32x64xbf16>
    %cst_56 = arith.constant dense<0.000000e+00> : vector<64x64xf32>
    %107 = tpu.matmul %104, %106, %cst_56 {dimension_numbers = #tpu.dot_dimension_numbers<[1], [0], [0], [1], [0, 0, 1, 1], [], []>} : vector<64x32xbf16>, vector<32x64xbf16>, vector<64x64xf32> -> vector<64x64xf32>
    %108 = arith.addf %68, %107 : vector<64x64xf32>
    %109 = arith.addf %24, %108 : vector<64x64xf32>
    %cst_57 = arith.constant dense<0.000000e+00> : vector<64xf32>
    %110 = vector.multi_reduction <add>, %109, %cst_57 [1] : vector<64x64xf32> to vector<64xf32>
    %111 = vector.shape_cast %110 : vector<64xf32> to vector<64x1xf32>
    %112 = arith.mulf %109, %109 : vector<64x64xf32>
    %cst_58 = arith.constant dense<0.000000e+00> : vector<64xf32>
    %113 = vector.multi_reduction <add>, %112, %cst_58 [1] : vector<64x64xf32> to vector<64xf32>
    %114 = vector.shape_cast %113 : vector<64xf32> to vector<64x1xf32>
    %cst_59 = arith.constant 1.562500e-02 : f32
    %115 = vector.broadcast %cst_59 : f32 to vector<64x1xf32>
    %116 = arith.mulf %111, %115 : vector<64x1xf32>
    %cst_60 = arith.constant 1.562500e-02 : f32
    %117 = vector.broadcast %cst_60 : f32 to vector<64x1xf32>
    %118 = arith.mulf %114, %117 : vector<64x1xf32>
    %119 = arith.mulf %116, %116 : vector<64x1xf32>
    %120 = arith.subf %118, %119 : vector<64x1xf32>
    %121 = vector.broadcast %116 : vector<64x1xf32> to vector<64x64xf32>
    %122 = arith.subf %109, %121 : vector<64x64xf32>
    %cst_61 = arith.constant 9.99999996E-13 : f32
    %123 = vector.broadcast %cst_61 : f32 to vector<64x1xf32>
    %124 = arith.addf %120, %123 : vector<64x1xf32>
    %125 = math.rsqrt %124 : vector<64x1xf32>
    %126 = vector.broadcast %125 : vector<64x1xf32> to vector<64x64xf32>
    %127 = arith.mulf %122, %126 : vector<64x64xf32>
    %c9 = arith.constant 9 : index
    %c0_62 = arith.constant 0 : index
    %128 = vector.load %arg8[%c9, %c0_62] : memref<32x128xf32, #tpu.memory_space<vmem>>, vector<1x64xf32>
    %129 = vector.broadcast %128 : vector<1x64xf32> to vector<64x64xf32>
    %130 = arith.mulf %127, %129 : vector<64x64xf32>
    %c10 = arith.constant 10 : index
    %c0_63 = arith.constant 0 : index
    %131 = vector.load %arg8[%c10, %c0_63] : memref<32x128xf32, #tpu.memory_space<vmem>>, vector<1x64xf32>
    %132 = vector.broadcast %131 : vector<1x64xf32> to vector<64x64xf32>
    %133 = arith.addf %130, %132 : vector<64x64xf32>
    %134 = arith.truncf %133 : vector<64x64xf32> to vector<64x64xbf16>
    %c0_64 = arith.constant 0 : index
    %c0_65 = arith.constant 0 : index
    %c0_66 = arith.constant 0 : index
    %135 = vector.load %arg5[%c0_64, %c0_65, %c0_66] : memref<2x64x128xbf16, #tpu.memory_space<vmem>>, vector<1x64x128xbf16>
    %136 = vector.shape_cast %135 : vector<1x64x128xbf16> to vector<64x128xbf16>
    %cst_67 = arith.constant dense<0.000000e+00> : vector<64x128xf32>
    %137 = tpu.matmul %134, %136, %cst_67 {dimension_numbers = #tpu.dot_dimension_numbers<[1], [0], [0], [1], [0, 0, 1, 1], [], []>} : vector<64x64xbf16>, vector<64x128xbf16>, vector<64x128xf32> -> vector<64x128xf32>
    %c11 = arith.constant 11 : index
    %c0_68 = arith.constant 0 : index
    %138 = vector.load %arg8[%c11, %c0_68] : memref<32x128xf32, #tpu.memory_space<vmem>>, vector<1x128xf32>
    %139 = vector.broadcast %138 : vector<1x128xf32> to vector<64x128xf32>
    %140 = arith.addf %137, %139 : vector<64x128xf32>
    %141 = arith.mulf %140, %140 : vector<64x128xf32>
    %142 = arith.mulf %140, %141 : vector<64x128xf32>
    %cst_69 = arith.constant 4.471500e-02 : f32
    %143 = vector.broadcast %cst_69 : f32 to vector<64x128xf32>
    %144 = arith.mulf %143, %142 : vector<64x128xf32>
    %145 = arith.addf %140, %144 : vector<64x128xf32>
    %cst_70 = arith.constant 0.797884583 : f32
    %146 = vector.broadcast %cst_70 : f32 to vector<64x128xf32>
    %147 = arith.mulf %146, %145 : vector<64x128xf32>
    %148 = math.tanh %147 : vector<64x128xf32>
    %cst_71 = arith.constant 1.000000e+00 : f32
    %149 = vector.broadcast %cst_71 : f32 to vector<64x128xf32>
    %150 = arith.addf %149, %148 : vector<64x128xf32>
    %cst_72 = arith.constant 5.000000e-01 : f32
    %151 = vector.broadcast %cst_72 : f32 to vector<64x128xf32>
    %152 = arith.mulf %151, %150 : vector<64x128xf32>
    %153 = arith.mulf %140, %152 : vector<64x128xf32>
    %154 = arith.truncf %153 : vector<64x128xf32> to vector<64x128xbf16>
    %c0_73 = arith.constant 0 : index
    %c0_74 = arith.constant 0 : index
    %c0_75 = arith.constant 0 : index
    %155 = vector.load %arg6[%c0_73, %c0_74, %c0_75] : memref<2x128x64xbf16, #tpu.memory_space<vmem>>, vector<1x128x64xbf16>
    %156 = vector.shape_cast %155 : vector<1x128x64xbf16> to vector<128x64xbf16>
    %cst_76 = arith.constant dense<0.000000e+00> : vector<64x64xf32>
    %157 = tpu.matmul %154, %156, %cst_76 {dimension_numbers = #tpu.dot_dimension_numbers<[1], [0], [0], [1], [0, 0, 1, 1], [], []>} : vector<64x128xbf16>, vector<128x64xbf16>, vector<64x64xf32> -> vector<64x64xf32>
    %c12 = arith.constant 12 : index
    %c0_77 = arith.constant 0 : index
    %158 = vector.load %arg8[%c12, %c0_77] : memref<32x128xf32, #tpu.memory_space<vmem>>, vector<1x64xf32>
    %159 = vector.broadcast %158 : vector<1x64xf32> to vector<64x64xf32>
    %160 = arith.addf %157, %159 : vector<64x64xf32>
    %161 = arith.addf %133, %160 : vector<64x64xf32>
    %cst_78 = arith.constant dense<0.000000e+00> : vector<64xf32>
    %162 = vector.multi_reduction <add>, %161, %cst_78 [1] : vector<64x64xf32> to vector<64xf32>
    %163 = vector.shape_cast %162 : vector<64xf32> to vector<64x1xf32>
    %164 = arith.mulf %161, %161 : vector<64x64xf32>
    %cst_79 = arith.constant dense<0.000000e+00> : vector<64xf32>
    %165 = vector.multi_reduction <add>, %164, %cst_79 [1] : vector<64x64xf32> to vector<64xf32>
    %166 = vector.shape_cast %165 : vector<64xf32> to vector<64x1xf32>
    %cst_80 = arith.constant 1.562500e-02 : f32
    %167 = vector.broadcast %cst_80 : f32 to vector<64x1xf32>
    %168 = arith.mulf %163, %167 : vector<64x1xf32>
    %cst_81 = arith.constant 1.562500e-02 : f32
    %169 = vector.broadcast %cst_81 : f32 to vector<64x1xf32>
    %170 = arith.mulf %166, %169 : vector<64x1xf32>
    %171 = arith.mulf %168, %168 : vector<64x1xf32>
    %172 = arith.subf %170, %171 : vector<64x1xf32>
    %173 = vector.broadcast %168 : vector<64x1xf32> to vector<64x64xf32>
    %174 = arith.subf %161, %173 : vector<64x64xf32>
    %cst_82 = arith.constant 9.99999996E-13 : f32
    %175 = vector.broadcast %cst_82 : f32 to vector<64x1xf32>
    %176 = arith.addf %172, %175 : vector<64x1xf32>
    %177 = math.rsqrt %176 : vector<64x1xf32>
    %178 = vector.broadcast %177 : vector<64x1xf32> to vector<64x64xf32>
    %179 = arith.mulf %174, %178 : vector<64x64xf32>
    %c13 = arith.constant 13 : index
    %c0_83 = arith.constant 0 : index
    %180 = vector.load %arg8[%c13, %c0_83] : memref<32x128xf32, #tpu.memory_space<vmem>>, vector<1x64xf32>
    %181 = vector.broadcast %180 : vector<1x64xf32> to vector<64x64xf32>
    %182 = arith.mulf %179, %181 : vector<64x64xf32>
    %c14 = arith.constant 14 : index
    %c0_84 = arith.constant 0 : index
    %183 = vector.load %arg8[%c14, %c0_84] : memref<32x128xf32, #tpu.memory_space<vmem>>, vector<1x64xf32>
    %184 = vector.broadcast %183 : vector<1x64xf32> to vector<64x64xf32>
    %185 = arith.addf %182, %184 : vector<64x64xf32>
    %186 = arith.truncf %185 : vector<64x64xf32> to vector<64x64xbf16>
    %c21 = arith.constant 21 : index
    %c0_85 = arith.constant 0 : index
    %187 = vector.load %arg8[%c21, %c0_85] : memref<32x128xf32, #tpu.memory_space<vmem>>, vector<1x64xf32>
    %c6_86 = arith.constant 6 : index
    %c0_87 = arith.constant 0 : index
    %c0_88 = arith.constant 0 : index
    %188 = vector.load %arg3[%c6_86, %c0_87, %c0_88] : memref<12x64x32xbf16, #tpu.memory_space<vmem>>, vector<1x64x32xbf16>
    %189 = vector.shape_cast %188 : vector<1x64x32xbf16> to vector<64x32xbf16>
    %cst_89 = arith.constant dense<0.000000e+00> : vector<64x32xf32>
    %190 = tpu.matmul %186, %189, %cst_89 {dimension_numbers = #tpu.dot_dimension_numbers<[1], [0], [0], [1], [0, 0, 1, 1], [], []>} : vector<64x64xbf16>, vector<64x32xbf16>, vector<64x32xf32> -> vector<64x32xf32>
    %c15 = arith.constant 15 : index
    %c0_90 = arith.constant 0 : index
    %191 = vector.load %arg8[%c15, %c0_90] : memref<32x128xf32, #tpu.memory_space<vmem>>, vector<1x32xf32>
    %192 = vector.broadcast %191 : vector<1x32xf32> to vector<64x32xf32>
    %193 = arith.addf %190, %192 : vector<64x32xf32>
    %c8_91 = arith.constant 8 : index
    %c0_92 = arith.constant 0 : index
    %c0_93 = arith.constant 0 : index
    %194 = vector.load %arg3[%c8_91, %c0_92, %c0_93] : memref<12x64x32xbf16, #tpu.memory_space<vmem>>, vector<1x64x32xbf16>
    %195 = vector.shape_cast %194 : vector<1x64x32xbf16> to vector<64x32xbf16>
    %cst_94 = arith.constant dense<0.000000e+00> : vector<64x32xf32>
    %196 = tpu.matmul %186, %195, %cst_94 {dimension_numbers = #tpu.dot_dimension_numbers<[1], [0], [0], [1], [0, 0, 1, 1], [], []>} : vector<64x64xbf16>, vector<64x32xbf16>, vector<64x32xf32> -> vector<64x32xf32>
    %c17 = arith.constant 17 : index
    %c0_95 = arith.constant 0 : index
    %197 = vector.load %arg8[%c17, %c0_95] : memref<32x128xf32, #tpu.memory_space<vmem>>, vector<1x32xf32>
    %198 = vector.broadcast %197 : vector<1x32xf32> to vector<64x32xf32>
    %199 = arith.addf %196, %198 : vector<64x32xf32>
    %c10_96 = arith.constant 10 : index
    %c0_97 = arith.constant 0 : index
    %c0_98 = arith.constant 0 : index
    %200 = vector.load %arg3[%c10_96, %c0_97, %c0_98] : memref<12x64x32xbf16, #tpu.memory_space<vmem>>, vector<1x64x32xbf16>
    %201 = vector.shape_cast %200 : vector<1x64x32xbf16> to vector<64x32xbf16>
    %cst_99 = arith.constant dense<0.000000e+00> : vector<64x32xf32>
    %202 = tpu.matmul %186, %201, %cst_99 {dimension_numbers = #tpu.dot_dimension_numbers<[1], [0], [0], [1], [0, 0, 1, 1], [], []>} : vector<64x64xbf16>, vector<64x32xbf16>, vector<64x32xf32> -> vector<64x32xf32>
    %c19 = arith.constant 19 : index
    %c0_100 = arith.constant 0 : index
    %203 = vector.load %arg8[%c19, %c0_100] : memref<32x128xf32, #tpu.memory_space<vmem>>, vector<1x32xf32>
    %204 = vector.broadcast %203 : vector<1x32xf32> to vector<64x32xf32>
    %205 = arith.addf %202, %204 : vector<64x32xf32>
    %206 = arith.truncf %193 : vector<64x32xf32> to vector<64x32xbf16>
    %207 = arith.truncf %199 : vector<64x32xf32> to vector<64x32xbf16>
    "tpu.trace_start"() <{level = 10 : i32, message = "qd,kd->qk"}> : () -> ()
    %cst_101 = arith.constant dense<0.000000e+00> : vector<64x64xf32>
    %208 = tpu.matmul %206, %207, %cst_101 {dimension_numbers = #tpu.dot_dimension_numbers<[1], [1], [0], [0], [0, 0, 1, 0], [], []>} : vector<64x32xbf16>, vector<64x32xbf16>, vector<64x64xf32> -> vector<64x64xf32>
    "tpu.trace_stop"() : () -> ()
    %209 = arith.addf %208, %25 : vector<64x64xf32>
    %cst_102 = arith.constant dense<0xFF800000> : vector<64xf32>
    %210 = vector.multi_reduction <maximumf>, %209, %cst_102 [1] : vector<64x64xf32> to vector<64xf32>
    %211 = vector.shape_cast %210 : vector<64xf32> to vector<64x1xf32>
    %212 = vector.broadcast %211 : vector<64x1xf32> to vector<64x64xf32>
    %213 = arith.subf %209, %212 : vector<64x64xf32>
    %214 = math.exp %213 : vector<64x64xf32>
    %cst_103 = arith.constant dense<0.000000e+00> : vector<64xf32>
    %215 = vector.multi_reduction <add>, %214, %cst_103 [1] : vector<64x64xf32> to vector<64xf32>
    %216 = vector.shape_cast %215 : vector<64xf32> to vector<64x1xf32>
    %217 = tpu.reciprocal %216 {approx = true} : vector<64x1xf32> -> vector<64x1xf32>
    %218 = vector.broadcast %217 : vector<64x1xf32> to vector<64x64xf32>
    %219 = arith.mulf %214, %218 : vector<64x64xf32>
    %220 = arith.truncf %219 : vector<64x64xf32> to vector<64x64xbf16>
    %221 = arith.truncf %205 : vector<64x32xf32> to vector<64x32xbf16>
    %cst_104 = arith.constant dense<0.000000e+00> : vector<64x32xf32>
    %222 = tpu.matmul %220, %221, %cst_104 {dimension_numbers = #tpu.dot_dimension_numbers<[1], [0], [0], [1], [0, 0, 1, 1], [], []>} : vector<64x64xbf16>, vector<64x32xbf16>, vector<64x32xf32> -> vector<64x32xf32>
    %223 = arith.truncf %222 : vector<64x32xf32> to vector<64x32xbf16>
    %c2_105 = arith.constant 2 : index
    %c0_106 = arith.constant 0 : index
    %c0_107 = arith.constant 0 : index
    %224 = vector.load %arg4[%c2_105, %c0_106, %c0_107] : memref<4x32x64xbf16, #tpu.memory_space<vmem>>, vector<1x32x64xbf16>
    %225 = vector.shape_cast %224 : vector<1x32x64xbf16> to vector<32x64xbf16>
    %cst_108 = arith.constant dense<0.000000e+00> : vector<64x64xf32>
    %226 = tpu.matmul %223, %225, %cst_108 {dimension_numbers = #tpu.dot_dimension_numbers<[1], [0], [0], [1], [0, 0, 1, 1], [], []>} : vector<64x32xbf16>, vector<32x64xbf16>, vector<64x64xf32> -> vector<64x64xf32>
    %227 = vector.broadcast %187 : vector<1x64xf32> to vector<64x64xf32>
    %228 = arith.addf %227, %226 : vector<64x64xf32>
    %c7_109 = arith.constant 7 : index
    %c0_110 = arith.constant 0 : index
    %c0_111 = arith.constant 0 : index
    %229 = vector.load %arg3[%c7_109, %c0_110, %c0_111] : memref<12x64x32xbf16, #tpu.memory_space<vmem>>, vector<1x64x32xbf16>
    %230 = vector.shape_cast %229 : vector<1x64x32xbf16> to vector<64x32xbf16>
    %cst_112 = arith.constant dense<0.000000e+00> : vector<64x32xf32>
    %231 = tpu.matmul %186, %230, %cst_112 {dimension_numbers = #tpu.dot_dimension_numbers<[1], [0], [0], [1], [0, 0, 1, 1], [], []>} : vector<64x64xbf16>, vector<64x32xbf16>, vector<64x32xf32> -> vector<64x32xf32>
    %c16 = arith.constant 16 : index
    %c0_113 = arith.constant 0 : index
    %232 = vector.load %arg8[%c16, %c0_113] : memref<32x128xf32, #tpu.memory_space<vmem>>, vector<1x32xf32>
    %233 = vector.broadcast %232 : vector<1x32xf32> to vector<64x32xf32>
    %234 = arith.addf %231, %233 : vector<64x32xf32>
    %c9_114 = arith.constant 9 : index
    %c0_115 = arith.constant 0 : index
    %c0_116 = arith.constant 0 : index
    %235 = vector.load %arg3[%c9_114, %c0_115, %c0_116] : memref<12x64x32xbf16, #tpu.memory_space<vmem>>, vector<1x64x32xbf16>
    %236 = vector.shape_cast %235 : vector<1x64x32xbf16> to vector<64x32xbf16>
    %cst_117 = arith.constant dense<0.000000e+00> : vector<64x32xf32>
    %237 = tpu.matmul %186, %236, %cst_117 {dimension_numbers = #tpu.dot_dimension_numbers<[1], [0], [0], [1], [0, 0, 1, 1], [], []>} : vector<64x64xbf16>, vector<64x32xbf16>, vector<64x32xf32> -> vector<64x32xf32>
    %c18 = arith.constant 18 : index
    %c0_118 = arith.constant 0 : index
    %238 = vector.load %arg8[%c18, %c0_118] : memref<32x128xf32, #tpu.memory_space<vmem>>, vector<1x32xf32>
    %239 = vector.broadcast %238 : vector<1x32xf32> to vector<64x32xf32>
    %240 = arith.addf %237, %239 : vector<64x32xf32>
    %c11_119 = arith.constant 11 : index
    %c0_120 = arith.constant 0 : index
    %c0_121 = arith.constant 0 : index
    %241 = vector.load %arg3[%c11_119, %c0_120, %c0_121] : memref<12x64x32xbf16, #tpu.memory_space<vmem>>, vector<1x64x32xbf16>
    %242 = vector.shape_cast %241 : vector<1x64x32xbf16> to vector<64x32xbf16>
    %cst_122 = arith.constant dense<0.000000e+00> : vector<64x32xf32>
    %243 = tpu.matmul %186, %242, %cst_122 {dimension_numbers = #tpu.dot_dimension_numbers<[1], [0], [0], [1], [0, 0, 1, 1], [], []>} : vector<64x64xbf16>, vector<64x32xbf16>, vector<64x32xf32> -> vector<64x32xf32>
    %c20 = arith.constant 20 : index
    %c0_123 = arith.constant 0 : index
    %244 = vector.load %arg8[%c20, %c0_123] : memref<32x128xf32, #tpu.memory_space<vmem>>, vector<1x32xf32>
    %245 = vector.broadcast %244 : vector<1x32xf32> to vector<64x32xf32>
    %246 = arith.addf %243, %245 : vector<64x32xf32>
    %247 = arith.truncf %234 : vector<64x32xf32> to vector<64x32xbf16>
    %248 = arith.truncf %240 : vector<64x32xf32> to vector<64x32xbf16>
    "tpu.trace_start"() <{level = 10 : i32, message = "qd,kd->qk"}> : () -> ()
    %cst_124 = arith.constant dense<0.000000e+00> : vector<64x64xf32>
    %249 = tpu.matmul %247, %248, %cst_124 {dimension_numbers = #tpu.dot_dimension_numbers<[1], [1], [0], [0], [0, 0, 1, 0], [], []>} : vector<64x32xbf16>, vector<64x32xbf16>, vector<64x64xf32> -> vector<64x64xf32>
    "tpu.trace_stop"() : () -> ()
    %250 = arith.addf %249, %25 : vector<64x64xf32>
    %cst_125 = arith.constant dense<0xFF800000> : vector<64xf32>
    %251 = vector.multi_reduction <maximumf>, %250, %cst_125 [1] : vector<64x64xf32> to vector<64xf32>
    %252 = vector.shape_cast %251 : vector<64xf32> to vector<64x1xf32>
    %253 = vector.broadcast %252 : vector<64x1xf32> to vector<64x64xf32>
    %254 = arith.subf %250, %253 : vector<64x64xf32>
    %255 = math.exp %254 : vector<64x64xf32>
    %cst_126 = arith.constant dense<0.000000e+00> : vector<64xf32>
    %256 = vector.multi_reduction <add>, %255, %cst_126 [1] : vector<64x64xf32> to vector<64xf32>
    %257 = vector.shape_cast %256 : vector<64xf32> to vector<64x1xf32>
    %258 = tpu.reciprocal %257 {approx = true} : vector<64x1xf32> -> vector<64x1xf32>
    %259 = vector.broadcast %258 : vector<64x1xf32> to vector<64x64xf32>
    %260 = arith.mulf %255, %259 : vector<64x64xf32>
    %261 = arith.truncf %260 : vector<64x64xf32> to vector<64x64xbf16>
    %262 = arith.truncf %246 : vector<64x32xf32> to vector<64x32xbf16>
    %cst_127 = arith.constant dense<0.000000e+00> : vector<64x32xf32>
    %263 = tpu.matmul %261, %262, %cst_127 {dimension_numbers = #tpu.dot_dimension_numbers<[1], [0], [0], [1], [0, 0, 1, 1], [], []>} : vector<64x64xbf16>, vector<64x32xbf16>, vector<64x32xf32> -> vector<64x32xf32>
    %264 = arith.truncf %263 : vector<64x32xf32> to vector<64x32xbf16>
    %c3_128 = arith.constant 3 : index
    %c0_129 = arith.constant 0 : index
    %c0_130 = arith.constant 0 : index
    %265 = vector.load %arg4[%c3_128, %c0_129, %c0_130] : memref<4x32x64xbf16, #tpu.memory_space<vmem>>, vector<1x32x64xbf16>
    %266 = vector.shape_cast %265 : vector<1x32x64xbf16> to vector<32x64xbf16>
    %cst_131 = arith.constant dense<0.000000e+00> : vector<64x64xf32>
    %267 = tpu.matmul %264, %266, %cst_131 {dimension_numbers = #tpu.dot_dimension_numbers<[1], [0], [0], [1], [0, 0, 1, 1], [], []>} : vector<64x32xbf16>, vector<32x64xbf16>, vector<64x64xf32> -> vector<64x64xf32>
    %268 = arith.addf %228, %267 : vector<64x64xf32>
    %269 = arith.addf %185, %268 : vector<64x64xf32>
    %cst_132 = arith.constant dense<0.000000e+00> : vector<64xf32>
    %270 = vector.multi_reduction <add>, %269, %cst_132 [1] : vector<64x64xf32> to vector<64xf32>
    %271 = vector.shape_cast %270 : vector<64xf32> to vector<64x1xf32>
    %272 = arith.mulf %269, %269 : vector<64x64xf32>
    %cst_133 = arith.constant dense<0.000000e+00> : vector<64xf32>
    %273 = vector.multi_reduction <add>, %272, %cst_133 [1] : vector<64x64xf32> to vector<64xf32>
    %274 = vector.shape_cast %273 : vector<64xf32> to vector<64x1xf32>
    %cst_134 = arith.constant 1.562500e-02 : f32
    %275 = vector.broadcast %cst_134 : f32 to vector<64x1xf32>
    %276 = arith.mulf %271, %275 : vector<64x1xf32>
    %cst_135 = arith.constant 1.562500e-02 : f32
    %277 = vector.broadcast %cst_135 : f32 to vector<64x1xf32>
    %278 = arith.mulf %274, %277 : vector<64x1xf32>
    %279 = arith.mulf %276, %276 : vector<64x1xf32>
    %280 = arith.subf %278, %279 : vector<64x1xf32>
    %281 = vector.broadcast %276 : vector<64x1xf32> to vector<64x64xf32>
    %282 = arith.subf %269, %281 : vector<64x64xf32>
    %cst_136 = arith.constant 9.99999996E-13 : f32
    %283 = vector.broadcast %cst_136 : f32 to vector<64x1xf32>
    %284 = arith.addf %280, %283 : vector<64x1xf32>
    %285 = math.rsqrt %284 : vector<64x1xf32>
    %286 = vector.broadcast %285 : vector<64x1xf32> to vector<64x64xf32>
    %287 = arith.mulf %282, %286 : vector<64x64xf32>
    %c22 = arith.constant 22 : index
    %c0_137 = arith.constant 0 : index
    %288 = vector.load %arg8[%c22, %c0_137] : memref<32x128xf32, #tpu.memory_space<vmem>>, vector<1x64xf32>
    %289 = vector.broadcast %288 : vector<1x64xf32> to vector<64x64xf32>
    %290 = arith.mulf %287, %289 : vector<64x64xf32>
    %c23 = arith.constant 23 : index
    %c0_138 = arith.constant 0 : index
    %291 = vector.load %arg8[%c23, %c0_138] : memref<32x128xf32, #tpu.memory_space<vmem>>, vector<1x64xf32>
    %292 = vector.broadcast %291 : vector<1x64xf32> to vector<64x64xf32>
    %293 = arith.addf %290, %292 : vector<64x64xf32>
    %294 = arith.truncf %293 : vector<64x64xf32> to vector<64x64xbf16>
    %c1_139 = arith.constant 1 : index
    %c0_140 = arith.constant 0 : index
    %c0_141 = arith.constant 0 : index
    %295 = vector.load %arg5[%c1_139, %c0_140, %c0_141] : memref<2x64x128xbf16, #tpu.memory_space<vmem>>, vector<1x64x128xbf16>
    %296 = vector.shape_cast %295 : vector<1x64x128xbf16> to vector<64x128xbf16>
    %cst_142 = arith.constant dense<0.000000e+00> : vector<64x128xf32>
    %297 = tpu.matmul %294, %296, %cst_142 {dimension_numbers = #tpu.dot_dimension_numbers<[1], [0], [0], [1], [0, 0, 1, 1], [], []>} : vector<64x64xbf16>, vector<64x128xbf16>, vector<64x128xf32> -> vector<64x128xf32>
    %c24 = arith.constant 24 : index
    %c0_143 = arith.constant 0 : index
    %298 = vector.load %arg8[%c24, %c0_143] : memref<32x128xf32, #tpu.memory_space<vmem>>, vector<1x128xf32>
    %299 = vector.broadcast %298 : vector<1x128xf32> to vector<64x128xf32>
    %300 = arith.addf %297, %299 : vector<64x128xf32>
    %301 = arith.mulf %300, %300 : vector<64x128xf32>
    %302 = arith.mulf %300, %301 : vector<64x128xf32>
    %cst_144 = arith.constant 4.471500e-02 : f32
    %303 = vector.broadcast %cst_144 : f32 to vector<64x128xf32>
    %304 = arith.mulf %303, %302 : vector<64x128xf32>
    %305 = arith.addf %300, %304 : vector<64x128xf32>
    %cst_145 = arith.constant 0.797884583 : f32
    %306 = vector.broadcast %cst_145 : f32 to vector<64x128xf32>
    %307 = arith.mulf %306, %305 : vector<64x128xf32>
    %308 = math.tanh %307 : vector<64x128xf32>
    %cst_146 = arith.constant 1.000000e+00 : f32
    %309 = vector.broadcast %cst_146 : f32 to vector<64x128xf32>
    %310 = arith.addf %309, %308 : vector<64x128xf32>
    %cst_147 = arith.constant 5.000000e-01 : f32
    %311 = vector.broadcast %cst_147 : f32 to vector<64x128xf32>
    %312 = arith.mulf %311, %310 : vector<64x128xf32>
    %313 = arith.mulf %300, %312 : vector<64x128xf32>
    %314 = arith.truncf %313 : vector<64x128xf32> to vector<64x128xbf16>
    %c1_148 = arith.constant 1 : index
    %c0_149 = arith.constant 0 : index
    %c0_150 = arith.constant 0 : index
    %315 = vector.load %arg6[%c1_148, %c0_149, %c0_150] : memref<2x128x64xbf16, #tpu.memory_space<vmem>>, vector<1x128x64xbf16>
    %316 = vector.shape_cast %315 : vector<1x128x64xbf16> to vector<128x64xbf16>
    %cst_151 = arith.constant dense<0.000000e+00> : vector<64x64xf32>
    %317 = tpu.matmul %314, %316, %cst_151 {dimension_numbers = #tpu.dot_dimension_numbers<[1], [0], [0], [1], [0, 0, 1, 1], [], []>} : vector<64x128xbf16>, vector<128x64xbf16>, vector<64x64xf32> -> vector<64x64xf32>
    %c25 = arith.constant 25 : index
    %c0_152 = arith.constant 0 : index
    %318 = vector.load %arg8[%c25, %c0_152] : memref<32x128xf32, #tpu.memory_space<vmem>>, vector<1x64xf32>
    %319 = vector.broadcast %318 : vector<1x64xf32> to vector<64x64xf32>
    %320 = arith.addf %317, %319 : vector<64x64xf32>
    %321 = arith.addf %293, %320 : vector<64x64xf32>
    %cst_153 = arith.constant dense<0.000000e+00> : vector<64xf32>
    %322 = vector.multi_reduction <add>, %321, %cst_153 [1] : vector<64x64xf32> to vector<64xf32>
    %323 = vector.shape_cast %322 : vector<64xf32> to vector<64x1xf32>
    %324 = arith.mulf %321, %321 : vector<64x64xf32>
    %cst_154 = arith.constant dense<0.000000e+00> : vector<64xf32>
    %325 = vector.multi_reduction <add>, %324, %cst_154 [1] : vector<64x64xf32> to vector<64xf32>
    %326 = vector.shape_cast %325 : vector<64xf32> to vector<64x1xf32>
    %cst_155 = arith.constant 1.562500e-02 : f32
    %327 = vector.broadcast %cst_155 : f32 to vector<64x1xf32>
    %328 = arith.mulf %323, %327 : vector<64x1xf32>
    %cst_156 = arith.constant 1.562500e-02 : f32
    %329 = vector.broadcast %cst_156 : f32 to vector<64x1xf32>
    %330 = arith.mulf %326, %329 : vector<64x1xf32>
    %331 = arith.mulf %328, %328 : vector<64x1xf32>
    %332 = arith.subf %330, %331 : vector<64x1xf32>
    %333 = vector.broadcast %328 : vector<64x1xf32> to vector<64x64xf32>
    %334 = arith.subf %321, %333 : vector<64x64xf32>
    %cst_157 = arith.constant 9.99999996E-13 : f32
    %335 = vector.broadcast %cst_157 : f32 to vector<64x1xf32>
    %336 = arith.addf %332, %335 : vector<64x1xf32>
    %337 = math.rsqrt %336 : vector<64x1xf32>
    %338 = vector.broadcast %337 : vector<64x1xf32> to vector<64x64xf32>
    %339 = arith.mulf %334, %338 : vector<64x64xf32>
    %c26 = arith.constant 26 : index
    %c0_158 = arith.constant 0 : index
    %340 = vector.load %arg8[%c26, %c0_158] : memref<32x128xf32, #tpu.memory_space<vmem>>, vector<1x64xf32>
    %341 = vector.broadcast %340 : vector<1x64xf32> to vector<64x64xf32>
    %342 = arith.mulf %339, %341 : vector<64x64xf32>
    %c27 = arith.constant 27 : index
    %c0_159 = arith.constant 0 : index
    %343 = vector.load %arg8[%c27, %c0_159] : memref<32x128xf32, #tpu.memory_space<vmem>>, vector<1x64xf32>
    %344 = vector.broadcast %343 : vector<1x64xf32> to vector<64x64xf32>
    %345 = arith.addf %342, %344 : vector<64x64xf32>
    %346 = vector.shape_cast %345 : vector<64x64xf32> to vector<4x16x64xf32>
    %cst_160 = arith.constant dense<0.000000e+00> : vector<4x64xf32>
    %347 = vector.multi_reduction <add>, %346, %cst_160 [1] : vector<4x16x64xf32> to vector<4x64xf32>
    %cst_161 = arith.constant 1.600000e+01 : f32
    %348 = vector.broadcast %cst_161 : f32 to vector<4x64xf32>
    %349 = arith.divf %347, %348 : vector<4x64xf32>
    %350 = arith.truncf %349 : vector<4x64xf32> to vector<4x64xbf16>
    %c0_162 = arith.constant 0 : index
    %c0_163 = arith.constant 0 : index
    %c0_164 = arith.constant 0 : index
    %351 = vector.load %arg7[%c0_162, %c0_163, %c0_164] : memref<3x128x128xbf16, #tpu.memory_space<vmem>>, vector<1x128x128xbf16>
    %352 = vector.shape_cast %351 : vector<1x128x128xbf16> to vector<128x128xbf16>
    %353 = vector.extract_strided_slice %352 {offsets = [0, 0], sizes = [64, 128], strides = [1, 1]} : vector<128x128xbf16> to vector<64x128xbf16>
    %cst_165 = arith.constant dense<0.000000e+00> : vector<4x128xf32>
    %354 = tpu.matmul %350, %353, %cst_165 {dimension_numbers = #tpu.dot_dimension_numbers<[1], [0], [0], [1], [0, 0, 1, 1], [], []>} : vector<4x64xbf16>, vector<64x128xbf16>, vector<4x128xf32> -> vector<4x128xf32>
    %c28 = arith.constant 28 : index
    %c0_166 = arith.constant 0 : index
    %355 = vector.load %arg8[%c28, %c0_166] : memref<32x128xf32, #tpu.memory_space<vmem>>, vector<1x128xf32>
    %356 = vector.broadcast %355 : vector<1x128xf32> to vector<4x128xf32>
    %357 = arith.addf %354, %356 : vector<4x128xf32>
    %cst_167 = arith.constant 0.000000e+00 : f32
    %358 = vector.broadcast %cst_167 : f32 to vector<4x128xf32>
    %359 = arith.maximumf %357, %358 : vector<4x128xf32>
    %360 = arith.truncf %359 : vector<4x128xf32> to vector<4x128xbf16>
    %c1_168 = arith.constant 1 : index
    %c0_169 = arith.constant 0 : index
    %c0_170 = arith.constant 0 : index
    %361 = vector.load %arg7[%c1_168, %c0_169, %c0_170] : memref<3x128x128xbf16, #tpu.memory_space<vmem>>, vector<1x128x128xbf16>
    %362 = vector.shape_cast %361 : vector<1x128x128xbf16> to vector<128x128xbf16>
    %cst_171 = arith.constant dense<0.000000e+00> : vector<4x128xf32>
    %363 = tpu.matmul %360, %362, %cst_171 {dimension_numbers = #tpu.dot_dimension_numbers<[1], [0], [0], [1], [0, 0, 1, 1], [], []>} : vector<4x128xbf16>, vector<128x128xbf16>, vector<4x128xf32> -> vector<4x128xf32>
    %c29 = arith.constant 29 : index
    %c0_172 = arith.constant 0 : index
    %364 = vector.load %arg8[%c29, %c0_172] : memref<32x128xf32, #tpu.memory_space<vmem>>, vector<1x128xf32>
    %365 = vector.broadcast %364 : vector<1x128xf32> to vector<4x128xf32>
    %366 = arith.addf %363, %365 : vector<4x128xf32>
    %cst_173 = arith.constant 0.000000e+00 : f32
    %367 = vector.broadcast %cst_173 : f32 to vector<4x128xf32>
    %368 = arith.maximumf %366, %367 : vector<4x128xf32>
    %369 = arith.truncf %368 : vector<4x128xf32> to vector<4x128xbf16>
    %c2_174 = arith.constant 2 : index
    %c0_175 = arith.constant 0 : index
    %c0_176 = arith.constant 0 : index
    %370 = vector.load %arg7[%c2_174, %c0_175, %c0_176] : memref<3x128x128xbf16, #tpu.memory_space<vmem>>, vector<1x128x128xbf16>
    %371 = vector.shape_cast %370 : vector<1x128x128xbf16> to vector<128x128xbf16>
    %cst_177 = arith.constant dense<0.000000e+00> : vector<4x128xf32>
    %372 = tpu.matmul %369, %371, %cst_177 {dimension_numbers = #tpu.dot_dimension_numbers<[1], [0], [0], [1], [0, 0, 1, 1], [], []>} : vector<4x128xbf16>, vector<128x128xbf16>, vector<4x128xf32> -> vector<4x128xf32>
    %c30 = arith.constant 30 : index
    %c0_178 = arith.constant 0 : index
    %373 = vector.load %arg8[%c30, %c0_178] : memref<32x128xf32, #tpu.memory_space<vmem>>, vector<1x128xf32>
    %374 = vector.broadcast %373 : vector<1x128xf32> to vector<4x128xf32>
    %375 = arith.addf %372, %374 : vector<4x128xf32>
    %c0_179 = arith.constant 0 : index
    %c0_180 = arith.constant 0 : index
    %376 = vector.load %arg9[%c0_179, %c0_180] : memref<4x128xf32, #tpu.memory_space<vmem>>, vector<4x128xf32>
    tpu.vector_store %arg9[%c0_179, %c0_180], %375 {strides = array<i32>} : memref<4x128xf32, #tpu.memory_space<vmem>>, vector<4x128xf32>,
    return
  }
  func.func @transform_0(%arg0: i32) -> (i32, i32) {
    %c0_i32 = arith.constant 0 : i32
    %c0_i32_0 = arith.constant 0 : i32
    %c0_i32_1 = arith.constant 0 : i32
    return %c0_i32, %c0_i32_0 : i32, i32
  }
  func.func @transform_1(%arg0: i32) -> (i32, i32) {
    %c0_i32 = arith.constant 0 : i32
    %c0_i32_0 = arith.constant 0 : i32
    %c0_i32_1 = arith.constant 0 : i32
    return %c0_i32, %c0_i32_0 : i32, i32
  }
  func.func @transform_2(%arg0: i32) -> (i32, i32, i32) {
    %c0_i32 = arith.constant 0 : i32
    %c0_i32_0 = arith.constant 0 : i32
    %c0_i32_1 = arith.constant 0 : i32
    %c0_i32_2 = arith.constant 0 : i32
    return %c0_i32, %c0_i32_0, %c0_i32_1 : i32, i32, i32
  }
  func.func @transform_3(%arg0: i32) -> (i32, i32, i32) {
    %c0_i32 = arith.constant 0 : i32
    %c0_i32_0 = arith.constant 0 : i32
    %c0_i32_1 = arith.constant 0 : i32
    %c0_i32_2 = arith.constant 0 : i32
    return %c0_i32, %c0_i32_0, %c0_i32_1 : i32, i32, i32
  }
  func.func @transform_4(%arg0: i32) -> (i32, i32, i32) {
    %c0_i32 = arith.constant 0 : i32
    %c0_i32_0 = arith.constant 0 : i32
    %c0_i32_1 = arith.constant 0 : i32
    %c0_i32_2 = arith.constant 0 : i32
    return %c0_i32, %c0_i32_0, %c0_i32_1 : i32, i32, i32
  }
  func.func @transform_5(%arg0: i32) -> (i32, i32, i32) {
    %c0_i32 = arith.constant 0 : i32
    %c0_i32_0 = arith.constant 0 : i32
    %c0_i32_1 = arith.constant 0 : i32
    %c0_i32_2 = arith.constant 0 : i32
    return %c0_i32, %c0_i32_0, %c0_i32_1 : i32, i32, i32
  }
  func.func @transform_6(%arg0: i32) -> (i32, i32, i32) {
    %c0_i32 = arith.constant 0 : i32
    %c0_i32_0 = arith.constant 0 : i32
    %c0_i32_1 = arith.constant 0 : i32
    %c0_i32_2 = arith.constant 0 : i32
    return %c0_i32, %c0_i32_0, %c0_i32_1 : i32, i32, i32
  }
  func.func @transform_7(%arg0: i32) -> (i32, i32) {
    %c0_i32 = arith.constant 0 : i32
    %c0_i32_0 = arith.constant 0 : i32
    %c0_i32_1 = arith.constant 0 : i32
    return %c0_i32, %c0_i32_0 : i32, i32
  }
  func.func @transform_8(%arg0: i32) -> (i32, i32) {
    %c0_i32 = arith.constant 0 : i32
    %c0_i32_0 = arith.constant 0 : i32
    %c0_i32_1 = arith.constant 0 : i32
    return %c0_i32, %c0_i32_0 : i32, i32
  }
}

</mosaic_0001>

<llo_original>
// kernel: eq.8
$region0: #{eq.8}
  %s0 = inlined_call_operand.vmem [shape: s32[4,16], index: 0, kind: input, shape index: {}]
  %s1 = inlined_call_operand.vmem [shape: s32[64], index: 1, kind: output, shape index: {}]
  $region1: #{eq.8} parent=0
    #allocation0 [shape = 'u8[4096]{0}', space=vmem, size = 0x1000, scoped, tag = 'scoped mem for output reshape']
    #allocation1 [shape = 'u8[4096]{0}', space=vmem, size = 0x1000, scoped, tag = 'scoped mem for input reshape']
    %s3 = sshll.u32 1, 4
    %s4 = ssub.s32 %s3, 1
    %v5 = vld [vmem:[%s0] sm:%s4]
    %6 = vst [vmem:[#allocation1] sm:%s4] %v5
    %v7 = vld [vmem:[#allocation1] sm:$0x1]
    %vm8 = vcmask 130048
    %9 = vst.msk [vmem:[#allocation0] sm:$0x1] %vm8, %v7
    %s10 = scalar_lea.vmem [#allocation1], 3
    %v11 = vld [vmem:[%s10] sm:$0x1]
    %12 = vrot.lane.b32.xlu0 %v11, 48
    %v13 = vpop.permute.xlu0 %12
    %vm14 = vcmask 523648
    %15 = vst.msk [vmem:[#allocation0] sm:$0x1] %vm14, %v13
    %s16 = scalar_lea.vmem [#allocation1], 2
    %v17 = vld [vmem:[%s16] sm:$0x1]
    %18 = vrot.lane.b32.xlu0 %v17, 32
    %v19 = vpop.permute.xlu0 %18
    %vm20 = vcmask 392448
    %21 = vst.msk [vmem:[#allocation0] sm:$0x1] %vm20, %v19
    %s22 = scalar_lea.vmem [#allocation1], 1
    %v23 = vld [vmem:[%s22] sm:$0x1]
    %24 = vrot.lane.b32.xlu0 %v23, 16
    %v25 = vpop.permute.xlu0 %24
    %vm26 = vcmask 261248
    %27 = vst.msk [vmem:[#allocation0] sm:$0x1] %vm26, %v25
    %s29 = sshll.u32 1, 1
    %s30 = ssub.s32 %s29, 1
    %v32 = vld [vmem:[#allocation0] sm:%s30]
    %s33 = sshll.u32 1, 1
    %s34 = ssub.s32 %s33, 1
    %35 = vst [vmem:[%s1] sm:%s34] %v32

// kernel: bert_ranker_forward.1
$region0: #{bert_ranker_forward.1}
  #allocation0 [shape = 'u32[]', space=smem, size = 0x4, offset = 0x4, fixed_abs, tag = 'smem constant byte address 0x4 - core index']
  #allocation1 [shape = 'u32[144,128]{1,0:T(1,128)}', space=vmem, size = 0x12000, scoped, tag = 'internal scratch']
  %s0 = inlined_call_operand.vmem [shape: f32[64,64], index: 0, kind: input, shape index: {}]
  %s1 = inlined_call_operand.vmem [shape: f32[64,64], index: 1, kind: input, shape index: {}]
  %s2 = inlined_call_operand.vmem [shape: bf16[12,64,32], index: 2, kind: input, shape index: {}]
  %s3 = inlined_call_operand.vmem [shape: bf16[4,32,64], index: 3, kind: input, shape index: {}]
  %s4 = inlined_call_operand.vmem [shape: bf16[2,64,128], index: 4, kind: input, shape index: {}]
  %s5 = inlined_call_operand.vmem [shape: bf16[2,128,64], index: 5, kind: input, shape index: {}]
  %s6 = inlined_call_operand.vmem [shape: bf16[3,128,128], index: 6, kind: input, shape index: {}]
  %s7 = inlined_call_operand.vmem [shape: f32[32,128], index: 7, kind: input, shape index: {}]
  %s8 = inlined_call_operand.vmem [shape: f32[4,128], index: 8, kind: output, shape index: {}]
  %s9 = sld [smem:[#allocation0]]
  $region42: #{bert_ranker_forward.1} parent=0
    _
  %s11 = ssub.s32 1, %s9
  %s12 = scalar_select 0, %s11, %s9
  // Predicated region
  $region2: #{bert_ranker_forward.1} parent=0 // pred_check
    _
  $region3: #{bert_ranker_forward.1} parent=0 // pred_check_branch
    %14 = sbr.rel (0) target = $region5
  $region4: #{bert_ranker_forward.1} parent=0 // pred_region
    _
  $region5: #{bert_ranker_forward.1} parent=0 // pred_fallthru
    _
  // Predicated region
  $region6: #{bert_ranker_forward.1} parent=0 // pred_check
    _
  $region7: #{bert_ranker_forward.1} parent=0 // pred_check_branch
    %16 = sbr.rel (0) target = $region9
  $region8: #{bert_ranker_forward.1} parent=0 // pred_region
    _
  $region9: #{bert_ranker_forward.1} parent=0 // pred_fallthru
    _
  // Predicated region
  $region10: #{bert_ranker_forward.1} parent=0 // pred_check
    _
  $region11: #{bert_ranker_forward.1} parent=0 // pred_check_branch
    %18 = sbr.rel (0) target = $region13
  $region12: #{bert_ranker_forward.1} parent=0 // pred_region
    _
  $region13: #{bert_ranker_forward.1} parent=0 // pred_fallthru
    _
  // Predicated region
  $region14: #{bert_ranker_forward.1} parent=0 // pred_check
    _
  $region15: #{bert_ranker_forward.1} parent=0 // pred_check_branch
    %20 = sbr.rel (0) target = $region17
  $region16: #{bert_ranker_forward.1} parent=0 // pred_region
    _
  $region17: #{bert_ranker_forward.1} parent=0 // pred_fallthru
    _
  // Predicated region
  $region18: #{bert_ranker_forward.1} parent=0 // pred_check
    _
  $region19: #{bert_ranker_forward.1} parent=0 // pred_check_branch
    %22 = sbr.rel (0) target = $region21
  $region20: #{bert_ranker_forward.1} parent=0 // pred_region
    _
  $region21: #{bert_ranker_forward.1} parent=0 // pred_fallthru
    _
  // Predicated region
  $region22: #{bert_ranker_forward.1} parent=0 // pred_check
    _
  $region23: #{bert_ranker_forward.1} parent=0 // pred_check_branch
    %24 = sbr.rel (0) target = $region25
  $region24: #{bert_ranker_forward.1} parent=0 // pred_region
    _
  $region25: #{bert_ranker_forward.1} parent=0 // pred_fallthru
    _
  // Predicated region
  $region26: #{bert_ranker_forward.1} parent=0 // pred_check
    _
  $region27: #{bert_ranker_forward.1} parent=0 // pred_check_branch
    %26 = sbr.rel (0) target = $region29
  $region28: #{bert_ranker_forward.1} parent=0 // pred_region
    _
  $region29: #{bert_ranker_forward.1} parent=0 // pred_fallthru
    _
  // Predicated region
  $region30: #{bert_ranker_forward.1} parent=0 // pred_check
    _
  $region31: #{bert_ranker_forward.1} parent=0 // pred_check_branch
    %28 = sbr.rel (0) target = $region33
  $region32: #{bert_ranker_forward.1} parent=0 // pred_region
    _
  $region33: #{bert_ranker_forward.1} parent=0 // pred_fallthru
    _
  %v30 = vld [vmem:[%s0] sm:$0xff]
  %v31 = vld [vmem:[%s0 + $0x8] sm:$0xff]
  %v32 = vld [vmem:[%s0 + $0x10] sm:$0xff]
  %v33 = vld [vmem:[%s0 + $0x18] sm:$0xff]
  %v34 = vld [vmem:[%s0 + $0x20] sm:$0xff]
  %v35 = vld [vmem:[%s0 + $0x28] sm:$0xff]
  %v36 = vld [vmem:[%s0 + $0x30] sm:$0xff]
  %v37 = vld [vmem:[%s0 + $0x38] sm:$0xff]
  %vm38 = vcmask 523264
  %v39 = vsel %vm38, %v30, 0.0
  %40 = vadd.xlane.f32.xlu0 %v39
  %v41 = vpop.xlane.xlu0 %40
  %v42 = vsel %vm38, %v31, 0.0
  %43 = vadd.xlane.f32.xlu0 %v42
  %v44 = vpop.xlane.xlu0 %43
  %v45 = vsel %vm38, %v32, 0.0
  %46 = vadd.xlane.f32.xlu0 %v45
  %v47 = vpop.xlane.xlu0 %46
  %v48 = vsel %vm38, %v33, 0.0
  %49 = vadd.xlane.f32.xlu0 %v48
  %v50 = vpop.xlane.xlu0 %49
  %v51 = vsel %vm38, %v34, 0.0
  %52 = vadd.xlane.f32.xlu0 %v51
  %v53 = vpop.xlane.xlu0 %52
  %v54 = vsel %vm38, %v35, 0.0
  %55 = vadd.xlane.f32.xlu0 %v54
  %v56 = vpop.xlane.xlu0 %55
  %v57 = vsel %vm38, %v36, 0.0
  %58 = vadd.xlane.f32.xlu0 %v57
  %v59 = vpop.xlane.xlu0 %58
  %v60 = vsel %vm38, %v37, 0.0
  %61 = vadd.xlane.f32.xlu0 %v60
  %v62 = vpop.xlane.xlu0 %61
  %v63 = vmul.f32 %v30, %v30
  %v64 = vmul.f32 %v31, %v31
  %v65 = vmul.f32 %v32, %v32
  %v66 = vmul.f32 %v33, %v33
  %v67 = vmul.f32 %v34, %v34
  %v68 = vmul.f32 %v35, %v35
  %v69 = vmul.f32 %v36, %v36
  %v70 = vmul.f32 %v37, %v37
  %v71 = vsel %vm38, %v63, 0.0
  %72 = vadd.xlane.f32.xlu0 %v71
  %v73 = vpop.xlane.xlu0 %72
  %v74 = vsel %vm38, %v64, 0.0
  %75 = vadd.xlane.f32.xlu0 %v74
  %v76 = vpop.xlane.xlu0 %75
  %v77 = vsel %vm38, %v65, 0.0
  %78 = vadd.xlane.f32.xlu0 %v77
  %v79 = vpop.xlane.xlu0 %78
  %v80 = vsel %vm38, %v66, 0.0
  %81 = vadd.xlane.f32.xlu0 %v80
  %v82 = vpop.xlane.xlu0 %81
  %v83 = vsel %vm38, %v67, 0.0
  %84 = vadd.xlane.f32.xlu0 %v83
  %v85 = vpop.xlane.xlu0 %84
  %v86 = vsel %vm38, %v68, 0.0
  %87 = vadd.xlane.f32.xlu0 %v86
  %v88 = vpop.xlane.xlu0 %87
  %v89 = vsel %vm38, %v69, 0.0
  %90 = vadd.xlane.f32.xlu0 %v89
  %v91 = vpop.xlane.xlu0 %90
  %v92 = vsel %vm38, %v70, 0.0
  %93 = vadd.xlane.f32.xlu0 %v92
  %v94 = vpop.xlane.xlu0 %93
  %v95 = vmul.f32 %v41, 0.015625
  %v96 = vmul.f32 %v44, 0.015625
  %v97 = vmul.f32 %v47, 0.015625
  %v98 = vmul.f32 %v50, 0.015625
  %v99 = vmul.f32 %v53, 0.015625
  %v100 = vmul.f32 %v56, 0.015625
  %v101 = vmul.f32 %v59, 0.015625
  %v102 = vmul.f32 %v62, 0.015625
  %v103 = vmul.f32 %v73, 0.015625
  %v104 = vmul.f32 %v76, 0.015625
  %v105 = vmul.f32 %v79, 0.015625
  %v106 = vmul.f32 %v82, 0.015625
  %v107 = vmul.f32 %v85, 0.015625
  %v108 = vmul.f32 %v88, 0.015625
  %v109 = vmul.f32 %v91, 0.015625
  %v110 = vmul.f32 %v94, 0.015625
  %v111 = vmul.f32 %v95, %v95
  %v112 = vmul.f32 %v96, %v96
  %v113 = vmul.f32 %v97, %v97
  %v114 = vmul.f32 %v98, %v98
  %v115 = vmul.f32 %v99, %v99
  %v116 = vmul.f32 %v100, %v100
  %v117 = vmul.f32 %v101, %v101
  %v118 = vmul.f32 %v102, %v102
  %v119 = vsub.f32 %v103, %v111
  %v120 = vsub.f32 %v104, %v112
  %v121 = vsub.f32 %v105, %v113
  %v122 = vsub.f32 %v106, %v114
  %v123 = vsub.f32 %v107, %v115
  %v124 = vsub.f32 %v108, %v116
  %v125 = vsub.f32 %v109, %v117
  %v126 = vsub.f32 %v110, %v118
  %v127 = vsub.f32 %v30, %v95
  %v128 = vsub.f32 %v31, %v96
  %v129 = vsub.f32 %v32, %v97
  %v130 = vsub.f32 %v33, %v98
  %v131 = vsub.f32 %v34, %v99
  %v132 = vsub.f32 %v35, %v100
  %v133 = vsub.f32 %v36, %v101
  %v134 = vsub.f32 %v37, %v102
  %v135 = vadd.f32 %v119, 1e-12
  %v136 = vadd.f32 %v120, 1e-12
  %v137 = vadd.f32 %v121, 1e-12
  %v138 = vadd.f32 %v122, 1e-12
  %v139 = vadd.f32 %v123, 1e-12
  %v140 = vadd.f32 %v124, 1e-12
  %v141 = vadd.f32 %v125, 1e-12
  %v142 = vadd.f32 %v126, 1e-12
  %v143 = vrsqrt.pop %v135
  %v144 = vrsqrt.pop %v136
  %v145 = vrsqrt.pop %v137
  %v146 = vrsqrt.pop %v138
  %v147 = vrsqrt.pop %v139
  %v148 = vrsqrt.pop %v140
  %v149 = vrsqrt.pop %v141
  %v150 = vrsqrt.pop %v142
  %v151 = vmul.f32 %v127, %v143
  %v152 = vmul.f32 %v128, %v144
  %v153 = vmul.f32 %v129, %v145
  %v154 = vmul.f32 %v130, %v146
  %v155 = vmul.f32 %v131, %v147
  %v156 = vmul.f32 %v132, %v148
  %v157 = vmul.f32 %v133, %v149
  %v158 = vmul.f32 %v134, %v150
  %v159 = vld [vmem:[%s7] sm:$0x1]
  %v160 = vlaneseq
  %v161 = vshrl.u32 %v160, 7
  %v162 = vsub.s32 0, %v161
  %v163 = vrot.slane %v159, %v162
  %v164 = vmul.f32 %v151, %v163
  %v165 = vmul.f32 %v152, %v163
  %v166 = vmul.f32 %v153, %v163
  %v167 = vmul.f32 %v154, %v163
  %v168 = vmul.f32 %v155, %v163
  %v169 = vmul.f32 %v156, %v163
  %v170 = vmul.f32 %v157, %v163
  %v171 = vmul.f32 %v158, %v163
  %v172 = vld [vmem:[%s7 + $0x1] sm:$0x1]
  %v173 = vlaneseq
  %v174 = vshrl.u32 %v173, 7
  %v175 = vsub.s32 0, %v174
  %v176 = vrot.slane %v172, %v175
  %v177 = vadd.f32 %v164, %v176
  %v178 = vadd.f32 %v165, %v176
  %v179 = vadd.f32 %v166, %v176
  %v180 = vadd.f32 %v167, %v176
  %v181 = vadd.f32 %v168, %v176
  %v182 = vadd.f32 %v169, %v176
  %v183 = vadd.f32 %v170, %v176
  %v184 = vadd.f32 %v171, %v176
  %v185 = vld [vmem:[%s1] sm:$0xff]
  %v186 = vld [vmem:[%s1 + $0x8] sm:$0xff]
  %v187 = vld [vmem:[%s1 + $0x10] sm:$0xff]
  %v188 = vld [vmem:[%s1 + $0x18] sm:$0xff]
  %v189 = vld [vmem:[%s1 + $0x20] sm:$0xff]
  %v190 = vld [vmem:[%s1 + $0x28] sm:$0xff]
  %v191 = vld [vmem:[%s1 + $0x30] sm:$0xff]
  %v192 = vld [vmem:[%s1 + $0x38] sm:$0xff]
  %v193 = vpack.c.bf16 %v178, %v177
  %v194 = vpack.c.bf16 %v180, %v179
  %v195 = vpack.c.bf16 %v182, %v181
  %v196 = vpack.c.bf16 %v184, %v183
  %v197 = vld [vmem:[%s7 + $0x8] sm:$0x1]
  %v198 = vld [vmem:[%s2] sm:$0xf]
  %v199 = vld [vmem:[%s2 + $0x4] sm:$0xf]
  %v200 = vld [vmem:[%s2 + $0x8] sm:$0xf]
  %v201 = vld [vmem:[%s2 + $0xc] sm:$0xf]
  %v202 = vld [vmem:[%s2 + $0x10] sm:$0xf]
  %v203 = vld [vmem:[%s2 + $0x14] sm:$0xf]
  %v204 = vld [vmem:[%s2 + $0x18] sm:$0xf]
  %v205 = vld [vmem:[%s2 + $0x1c] sm:$0xf]
  %v206 = vld [vmem:[%s7 + $0x2] sm:$0x1]
  %v207 = vlaneseq
  %v208 = vshrl.u32 %v207, 7
  %v209 = vsub.s32 0, %v208
  %v210 = vrot.slane %v206, %v209
  %v219 = vunpack.c.l.b16 %v198
  %v220 = vunpack.c.l.b16 %v199
  %v221 = vunpack.c.l.b16 %v200
  %v222 = vunpack.c.l.b16 %v201
  %v223 = vunpack.c.l.b16 %v202
  %v224 = vunpack.c.l.b16 %v203
  %v225 = vunpack.c.l.b16 %v204
  %v226 = vunpack.c.l.b16 %v205
  %v227 = vpack.c.b16 %v220, %v219
  %v228 = vpack.c.b16 %v222, %v221
  %v229 = vpack.c.b16 %v224, %v223
  %v230 = vpack.c.b16 %v226, %v225
  %v236 = vsel %vm38, %v193, 0
  %v239 = vsel %vm38, %v194, 0
  %v242 = vsel %vm38, %v195, 0
  %v245 = vsel %vm38, %v196, 0
  %247 = vmatprep.subr.bf16.mxu0 0
  %248 = vmatpush1.bf16.msra.mxu0 0
  %249 = vmatprep.subr.bf16.mxu0 0
  %250 = vmatpush1.bf16.msra.mxu0 0
  %251 = vmatprep.subr.bf16.mxu0 0
  %252 = vmatpush1.bf16.msra.mxu0 0
  %253 = vmatprep.subr.bf16.mxu0 0
  %254 = vmatpush1.bf16.msra.mxu0 0
  %255 = vmatprep.subr.bf16.mxu0 0
  %256 = vmatpush1.bf16.msra.mxu0 %v230
  %257 = vmatprep.subr.bf16.mxu0 0
  %258 = vmatpush1.bf16.msra.mxu0 %v229
  %259 = vmatprep.subr.bf16.mxu0 0
  %260 = vmatpush1.bf16.msra.mxu0 %v228
  %261 = vmatprep.subr.bf16.mxu0 0
  %262 = vmatpush1.bf16.msra.mxu0 %v227
  %263 = vmatprep.subr.bf16.mxu0 0
  %264 = vmatpush2.bf16.msra.mxu0 0
  %265 = vmatprep.subr.bf16.mxu0 0
  %266 = vmatpush2.bf16.msra.mxu0 0
  %267 = vmatprep.subr.bf16.mxu0 0
  %268 = vmatpush2.bf16.msra.mxu0 0
  %269 = vmatprep.subr.bf16.mxu0 0
  %270 = vmatpush2.bf16.msra.mxu0 0
  %271 = vmatprep.subr.bf16.mxu0 0
  %272 = vmatpush2.bf16.msra.mxu0 0
  %273 = vmatprep.subr.bf16.mxu0 0
  %274 = vmatpush2.bf16.msra.mxu0 0
  %275 = vmatprep.subr.bf16.mxu0 0
  %276 = vmatpush2.bf16.msra.mxu0 0
  %277 = vmatprep.subr.bf16.mxu0 0
  %278 = vmatpush2.bf16.msra.mxu0 0
  %279 = vmatprep.mubr.bf16.mxu0 0
  %280 = vmatmul.mubr.bf16.gmra.mxu0 %v236
  %v281 = vpop.f32.mrf.mxu0
  %v282 = vadd.f32 %v210, %v281
  %v283 = vpop.f32.mrf.mxu0
  %v284 = vpop.f32.mrf.mxu0
  %v285 = vadd.f32 %v210, %v284
  %v286 = vpop.f32.mrf.mxu0
  %287 = vmatprep.mubr.bf16.mxu0 0
  %288 = vmatmul.mubr.bf16.gmra.mxu0 %v239
  %v289 = vpop.f32.mrf.mxu0
  %v290 = vadd.f32 %v210, %v289
  %v291 = vpop.f32.mrf.mxu0
  %v292 = vpop.f32.mrf.mxu0
  %v293 = vadd.f32 %v210, %v292
  %v294 = vpop.f32.mrf.mxu0
  %295 = vmatprep.mubr.bf16.mxu0 0
  %296 = vmatmul.mubr.bf16.gmra.mxu0 %v242
  %v297 = vpop.f32.mrf.mxu0
  %v298 = vadd.f32 %v210, %v297
  %v299 = vpop.f32.mrf.mxu0
  %v300 = vpop.f32.mrf.mxu0
  %v301 = vadd.f32 %v210, %v300
  %v302 = vpop.f32.mrf.mxu0
  %303 = vmatprep.mubr.bf16.mxu0 0
  %304 = vmatmul.mubr.bf16.gmra.mxu0 %v245
  %v305 = vpop.f32.mrf.mxu0
  %v306 = vadd.f32 %v210, %v305
  %v307 = vpop.f32.mrf.mxu0
  %v308 = vpop.f32.mrf.mxu0
  %v309 = vadd.f32 %v210, %v308
  %v310 = vpop.f32.mrf.mxu0
  %311 = vdwg.mxu0
  %s312 = scalar_lea.vmem %s2, 64
  %v313 = vld [vmem:[%s312] sm:$0xf]
  %v314 = vld [vmem:[%s312 + $0x4] sm:$0xf]
  %v315 = vld [vmem:[%s312 + $0x8] sm:$0xf]
  %v316 = vld [vmem:[%s312 + $0xc] sm:$0xf]
  %v317 = vld [vmem:[%s312 + $0x10] sm:$0xf]
  %v318 = vld [vmem:[%s312 + $0x14] sm:$0xf]
  %v319 = vld [vmem:[%s312 + $0x18] sm:$0xf]
  %v320 = vld [vmem:[%s312 + $0x1c] sm:$0xf]
  %v321 = vld [vmem:[%s7 + $0x4] sm:$0x1]
  %v322 = vlaneseq
  %v323 = vshrl.u32 %v322, 7
  %v324 = vsub.s32 0, %v323
  %v325 = vrot.slane %v321, %v324
  %v334 = vunpack.c.l.b16 %v313
  %v335 = vunpack.c.l.b16 %v314
  %v336 = vunpack.c.l.b16 %v315
  %v337 = vunpack.c.l.b16 %v316
  %v338 = vunpack.c.l.b16 %v317
  %v339 = vunpack.c.l.b16 %v318
  %v340 = vunpack.c.l.b16 %v319
  %v341 = vunpack.c.l.b16 %v320
  %v342 = vpack.c.b16 %v335, %v334
  %v343 = vpack.c.b16 %v337, %v336
  %v344 = vpack.c.b16 %v339, %v338
  %v345 = vpack.c.b16 %v341, %v340
  %350 = vmatprep.subr.bf16.mxu0 0
  %351 = vmatpush1.bf16.msra.mxu0 0
  %352 = vmatprep.subr.bf16.mxu0 0
  %353 = vmatpush1.bf16.msra.mxu0 0
  %354 = vmatprep.subr.bf16.mxu0 0
  %355 = vmatpush1.bf16.msra.mxu0 0
  %356 = vmatprep.subr.bf16.mxu0 0
  %357 = vmatpush1.bf16.msra.mxu0 0
  %358 = vmatprep.subr.bf16.mxu0 0
  %359 = vmatpush1.bf16.msra.mxu0 %v345
  %360 = vmatprep.subr.bf16.mxu0 0
  %361 = vmatpush1.bf16.msra.mxu0 %v344
  %362 = vmatprep.subr.bf16.mxu0 0
  %363 = vmatpush1.bf16.msra.mxu0 %v343
  %364 = vmatprep.subr.bf16.mxu0 0
  %365 = vmatpush1.bf16.msra.mxu0 %v342
  %366 = vmatprep.subr.bf16.mxu0 0
  %367 = vmatpush2.bf16.msra.mxu0 0
  %368 = vmatprep.subr.bf16.mxu0 0
  %369 = vmatpush2.bf16.msra.mxu0 0
  %370 = vmatprep.subr.bf16.mxu0 0
  %371 = vmatpush2.bf16.msra.mxu0 0
  %372 = vmatprep.subr.bf16.mxu0 0
  %373 = vmatpush2.bf16.msra.mxu0 0
  %374 = vmatprep.subr.bf16.mxu0 0
  %375 = vmatpush2.bf16.msra.mxu0 0
  %376 = vmatprep.subr.bf16.mxu0 0
  %377 = vmatpush2.bf16.msra.mxu0 0
  %378 = vmatprep.subr.bf16.mxu0 0
  %379 = vmatpush2.bf16.msra.mxu0 0
  %380 = vmatprep.subr.bf16.mxu0 0
  %381 = vmatpush2.bf16.msra.mxu0 0
  %382 = vmatprep.mubr.bf16.mxu0 0
  %383 = vmatmul.mubr.bf16.gmra.mxu0 %v236
  %v384 = vpop.f32.mrf.mxu0
  %v385 = vadd.f32 %v325, %v384
  %v386 = vpop.f32.mrf.mxu0
  %v387 = vpop.f32.mrf.mxu0
  %v388 = vadd.f32 %v325, %v387
  %v389 = vpop.f32.mrf.mxu0
  %390 = vmatprep.mubr.bf16.mxu0 0
  %391 = vmatmul.mubr.bf16.gmra.mxu0 %v239
  %v392 = vpop.f32.mrf.mxu0
  %v393 = vadd.f32 %v325, %v392
  %v394 = vpop.f32.mrf.mxu0
  %v395 = vpop.f32.mrf.mxu0
  %v396 = vadd.f32 %v325, %v395
  %v397 = vpop.f32.mrf.mxu0
  %398 = vmatprep.mubr.bf16.mxu0 0
  %399 = vmatmul.mubr.bf16.gmra.mxu0 %v242
  %v400 = vpop.f32.mrf.mxu0
  %v401 = vadd.f32 %v325, %v400
  %v402 = vpop.f32.mrf.mxu0
  %v403 = vpop.f32.mrf.mxu0
  %v404 = vadd.f32 %v325, %v403
  %v405 = vpop.f32.mrf.mxu0
  %406 = vmatprep.mubr.bf16.mxu0 0
  %407 = vmatmul.mubr.bf16.gmra.mxu0 %v245
  %v408 = vpop.f32.mrf.mxu0
  %v409 = vadd.f32 %v325, %v408
  %v410 = vpop.f32.mrf.mxu0
  %v411 = vpop.f32.mrf.mxu0
  %v412 = vadd.f32 %v325, %v411
  %v413 = vpop.f32.mrf.mxu0
  %414 = vdwg.mxu0
  %s415 = scalar_lea.vmem %s2, 128
  %v416 = vld [vmem:[%s415] sm:$0xf]
  %v417 = vld [vmem:[%s415 + $0x4] sm:$0xf]
  %v418 = vld [vmem:[%s415 + $0x8] sm:$0xf]
  %v419 = vld [vmem:[%s415 + $0xc] sm:$0xf]
  %v420 = vld [vmem:[%s415 + $0x10] sm:$0xf]
  %v421 = vld [vmem:[%s415 + $0x14] sm:$0xf]
  %v422 = vld [vmem:[%s415 + $0x18] sm:$0xf]
  %v423 = vld [vmem:[%s415 + $0x1c] sm:$0xf]
  %v424 = vld [vmem:[%s7 + $0x6] sm:$0x1]
  %v425 = vlaneseq
  %v426 = vshrl.u32 %v425, 7
  %v427 = vsub.s32 0, %v426
  %v428 = vrot.slane %v424, %v427
  %v437 = vunpack.c.l.b16 %v416
  %v438 = vunpack.c.l.b16 %v417
  %v439 = vunpack.c.l.b16 %v418
  %v440 = vunpack.c.l.b16 %v419
  %v441 = vunpack.c.l.b16 %v420
  %v442 = vunpack.c.l.b16 %v421
  %v443 = vunpack.c.l.b16 %v422
  %v444 = vunpack.c.l.b16 %v423
  %v445 = vpack.c.b16 %v438, %v437
  %v446 = vpack.c.b16 %v440, %v439
  %v447 = vpack.c.b16 %v442, %v441
  %v448 = vpack.c.b16 %v444, %v443
  %453 = vmatprep.subr.bf16.mxu0 0
  %454 = vmatpush1.bf16.msra.mxu0 0
  %455 = vmatprep.subr.bf16.mxu0 0
  %456 = vmatpush1.bf16.msra.mxu0 0
  %457 = vmatprep.subr.bf16.mxu0 0
  %458 = vmatpush1.bf16.msra.mxu0 0
  %459 = vmatprep.subr.bf16.mxu0 0
  %460 = vmatpush1.bf16.msra.mxu0 0
  %461 = vmatprep.subr.bf16.mxu0 0
  %462 = vmatpush1.bf16.msra.mxu0 %v448
  %463 = vmatprep.subr.bf16.mxu0 0
  %464 = vmatpush1.bf16.msra.mxu0 %v447
  %465 = vmatprep.subr.bf16.mxu0 0
  %466 = vmatpush1.bf16.msra.mxu0 %v446
  %467 = vmatprep.subr.bf16.mxu0 0
  %468 = vmatpush1.bf16.msra.mxu0 %v445
  %469 = vmatprep.subr.bf16.mxu0 0
  %470 = vmatpush2.bf16.msra.mxu0 0
  %471 = vmatprep.subr.bf16.mxu0 0
  %472 = vmatpush2.bf16.msra.mxu0 0
  %473 = vmatprep.subr.bf16.mxu0 0
  %474 = vmatpush2.bf16.msra.mxu0 0
  %475 = vmatprep.subr.bf16.mxu0 0
  %476 = vmatpush2.bf16.msra.mxu0 0
  %477 = vmatprep.subr.bf16.mxu0 0
  %478 = vmatpush2.bf16.msra.mxu0 0
  %479 = vmatprep.subr.bf16.mxu0 0
  %480 = vmatpush2.bf16.msra.mxu0 0
  %481 = vmatprep.subr.bf16.mxu0 0
  %482 = vmatpush2.bf16.msra.mxu0 0
  %483 = vmatprep.subr.bf16.mxu0 0
  %484 = vmatpush2.bf16.msra.mxu0 0
  %485 = vmatprep.mubr.bf16.mxu0 0
  %486 = vmatmul.mubr.bf16.gmra.mxu0 %v236
  %v487 = vpop.f32.mrf.mxu0
  %v488 = vadd.f32 %v428, %v487
  %v489 = vpop.f32.mrf.mxu0
  %v490 = vpop.f32.mrf.mxu0
  %v491 = vadd.f32 %v428, %v490
  %v492 = vpop.f32.mrf.mxu0
  %493 = vmatprep.mubr.bf16.mxu0 0
  %494 = vmatmul.mubr.bf16.gmra.mxu0 %v239
  %v495 = vpop.f32.mrf.mxu0
  %v496 = vadd.f32 %v428, %v495
  %v497 = vpop.f32.mrf.mxu0
  %v498 = vpop.f32.mrf.mxu0
  %v499 = vadd.f32 %v428, %v498
  %v500 = vpop.f32.mrf.mxu0
  %501 = vmatprep.mubr.bf16.mxu0 0
  %502 = vmatmul.mubr.bf16.gmra.mxu0 %v242
  %v503 = vpop.f32.mrf.mxu0
  %v504 = vadd.f32 %v428, %v503
  %v505 = vpop.f32.mrf.mxu0
  %v506 = vpop.f32.mrf.mxu0
  %v507 = vadd.f32 %v428, %v506
  %v508 = vpop.f32.mrf.mxu0
  %509 = vmatprep.mubr.bf16.mxu0 0
  %510 = vmatmul.mubr.bf16.gmra.mxu0 %v245
  %v511 = vpop.f32.mrf.mxu0
  %v512 = vadd.f32 %v428, %v511
  %v513 = vpop.f32.mrf.mxu0
  %v514 = vpop.f32.mrf.mxu0
  %v515 = vadd.f32 %v428, %v514
  %v516 = vpop.f32.mrf.mxu0
  %517 = vdwg.mxu0
  %v518 = vpack.c.bf16 %v285, %v282
  %v519 = vpack.c.bf16 %v293, %v290
  %v520 = vpack.c.bf16 %v301, %v298
  %v521 = vpack.c.bf16 %v309, %v306
  %v522 = vpack.c.bf16 %v388, %v385
  %v523 = vpack.c.bf16 %v396, %v393
  %v524 = vpack.c.bf16 %v404, %v401
  %v525 = vpack.c.bf16 %v412, %v409
  %vm526 = vcmask 261120
  %v528 = vsel %vm526, %v518, 0
  %v531 = vsel %vm526, %v519, 0
  %v534 = vsel %vm526, %v520, 0
  %v537 = vsel %vm526, %v521, 0
  %v540 = vsel %vm526, %v522, 0
  %v543 = vsel %vm526, %v523, 0
  %v546 = vsel %vm526, %v524, 0
  %v549 = vsel %vm526, %v525, 0
  %551 = vmatprep.subr.bf16.mxu0 0
  %552 = vmatpush1.bf16.xpose.msra.mxu0 0
  %553 = vmatprep.subr.bf16.mxu0 0
  %554 = vmatpush1.bf16.xpose.msra.mxu0 0
  %555 = vmatprep.subr.bf16.mxu0 0
  %556 = vmatpush1.bf16.xpose.msra.mxu0 0
  %557 = vmatprep.subr.bf16.mxu0 0
  %558 = vmatpush1.bf16.xpose.msra.mxu0 0
  %559 = vmatprep.subr.bf16.mxu0 0
  %560 = vmatpush1.bf16.xpose.msra.mxu0 %v549
  %561 = vmatprep.subr.bf16.mxu0 0
  %562 = vmatpush1.bf16.xpose.msra.mxu0 %v546
  %563 = vmatprep.subr.bf16.mxu0 0
  %564 = vmatpush1.bf16.xpose.msra.mxu0 %v543
  %565 = vmatprep.subr.bf16.mxu0 0
  %566 = vmatpush1.bf16.xpose.msra.mxu0 %v540
  %567 = vmatprep.subr.bf16.mxu0 0
  %568 = vmatpush2.bf16.xpose.msra.mxu0 0
  %569 = vmatprep.subr.bf16.mxu0 0
  %570 = vmatpush2.bf16.xpose.msra.mxu0 0
  %571 = vmatprep.subr.bf16.mxu0 0
  %572 = vmatpush2.bf16.xpose.msra.mxu0 0
  %573 = vmatprep.subr.bf16.mxu0 0
  %574 = vmatpush2.bf16.xpose.msra.mxu0 0
  %575 = vmatprep.subr.bf16.mxu0 0
  %576 = vmatpush2.bf16.xpose.msra.mxu0 0
  %577 = vmatprep.subr.bf16.mxu0 0
  %578 = vmatpush2.bf16.xpose.msra.mxu0 0
  %579 = vmatprep.subr.bf16.mxu0 0
  %580 = vmatpush2.bf16.xpose.msra.mxu0 0
  %581 = vmatprep.subr.bf16.mxu0 0
  %582 = vmatpush2.bf16.xpose.msra.mxu0 0
  %583 = vmatprep.mubr.bf16.mxu0 0
  %584 = vmatmul.mubr.bf16.gmra.mxu0 %v528
  %v585 = vpop.f32.mrf.mxu0
  %v586 = vadd.f32 %v185, %v585
  %v587 = vpop.f32.mrf.mxu0
  %v588 = vpop.f32.mrf.mxu0
  %v589 = vadd.f32 %v186, %v588
  %v590 = vpop.f32.mrf.mxu0
  %591 = vmatprep.mubr.bf16.mxu0 0
  %592 = vmatmul.mubr.bf16.gmra.mxu0 %v531
  %v593 = vpop.f32.mrf.mxu0
  %v594 = vadd.f32 %v187, %v593
  %v595 = vpop.f32.mrf.mxu0
  %v596 = vpop.f32.mrf.mxu0
  %v597 = vadd.f32 %v188, %v596
  %v598 = vpop.f32.mrf.mxu0
  %599 = vmatprep.mubr.bf16.mxu0 0
  %600 = vmatmul.mubr.bf16.gmra.mxu0 %v534
  %v601 = vpop.f32.mrf.mxu0
  %v602 = vadd.f32 %v189, %v601
  %v603 = vpop.f32.mrf.mxu0
  %v604 = vpop.f32.mrf.mxu0
  %v605 = vadd.f32 %v190, %v604
  %v606 = vpop.f32.mrf.mxu0
  %607 = vmatprep.mubr.bf16.mxu0 0
  %608 = vmatmul.mubr.bf16.gmra.mxu0 %v537
  %v609 = vpop.f32.mrf.mxu0
  %v610 = vadd.f32 %v191, %v609
  %v611 = vpop.f32.mrf.mxu0
  %v612 = vpop.f32.mrf.mxu0
  %v613 = vadd.f32 %v192, %v612
  %v614 = vpop.f32.mrf.mxu0
  %615 = vdwg.mxu0
  %v616 = vsel %vm38, %v586, -inf
  %617 = vmax.xlane.f32.xlu0 %v616
  %v618 = vpop.xlane.xlu0 %617
  %v619 = vsel %vm38, %v589, -inf
  %620 = vmax.xlane.f32.xlu0 %v619
  %v621 = vpop.xlane.xlu0 %620
  %v622 = vsel %vm38, %v594, -inf
  %623 = vmax.xlane.f32.xlu0 %v622
  %v624 = vpop.xlane.xlu0 %623
  %v625 = vsel %vm38, %v597, -inf
  %626 = vmax.xlane.f32.xlu0 %v625
  %v627 = vpop.xlane.xlu0 %626
  %v628 = vsel %vm38, %v602, -inf
  %629 = vmax.xlane.f32.xlu0 %v628
  %v630 = vpop.xlane.xlu0 %629
  %v631 = vsel %vm38, %v605, -inf
  %632 = vmax.xlane.f32.xlu0 %v631
  %v633 = vpop.xlane.xlu0 %632
  %v634 = vsel %vm38, %v610, -inf
  %635 = vmax.xlane.f32.xlu0 %v634
  %v636 = vpop.xlane.xlu0 %635
  %v637 = vsel %vm38, %v613, -inf
  %638 = vmax.xlane.f32.xlu0 %v637
  %v639 = vpop.xlane.xlu0 %638
  %v640 = vsub.f32 %v586, %v618
  %v641 = vsub.f32 %v589, %v621
  %v642 = vsub.f32 %v594, %v624
  %v643 = vsub.f32 %v597, %v627
  %v644 = vsub.f32 %v602, %v630
  %v645 = vsub.f32 %v605, %v633
  %v646 = vsub.f32 %v610, %v636
  %v647 = vsub.f32 %v613, %v639
  %v648 = vmul.f32 %v640, 1.442695
  %v649 = vpow.pop %v648
  %v650 = vmul.f32 %v641, 1.442695
  %v651 = vpow.pop %v650
  %v652 = vmul.f32 %v642, 1.442695
  %v653 = vpow.pop %v652
  %v654 = vmul.f32 %v643, 1.442695
  %v655 = vpow.pop %v654
  %v656 = vmul.f32 %v644, 1.442695
  %v657 = vpow.pop %v656
  %v658 = vmul.f32 %v645, 1.442695
  %v659 = vpow.pop %v658
  %v660 = vmul.f32 %v646, 1.442695
  %v661 = vpow.pop %v660
  %v662 = vmul.f32 %v647, 1.442695
  %v663 = vpow.pop %v662
  %v664 = vsel %vm38, %v649, 0.0
  %665 = vadd.xlane.f32.xlu0 %v664
  %v666 = vpop.xlane.xlu0 %665
  %v667 = vsel %vm38, %v651, 0.0
  %668 = vadd.xlane.f32.xlu0 %v667
  %v669 = vpop.xlane.xlu0 %668
  %v670 = vsel %vm38, %v653, 0.0
  %671 = vadd.xlane.f32.xlu0 %v670
  %v672 = vpop.xlane.xlu0 %671
  %v673 = vsel %vm38, %v655, 0.0
  %674 = vadd.xlane.f32.xlu0 %v673
  %v675 = vpop.xlane.xlu0 %674
  %v676 = vsel %vm38, %v657, 0.0
  %677 = vadd.xlane.f32.xlu0 %v676
  %v678 = vpop.xlane.xlu0 %677
  %v679 = vsel %vm38, %v659, 0.0
  %680 = vadd.xlane.f32.xlu0 %v679
  %v681 = vpop.xlane.xlu0 %680
  %v682 = vsel %vm38, %v661, 0.0
  %683 = vadd.xlane.f32.xlu0 %v682
  %v684 = vpop.xlane.xlu0 %683
  %v685 = vsel %vm38, %v663, 0.0
  %686 = vadd.xlane.f32.xlu0 %v685
  %v687 = vpop.xlane.xlu0 %686
  %v688 = vrcp.pop %v666
  %v689 = vrcp.pop %v669
  %v690 = vrcp.pop %v672
  %v691 = vrcp.pop %v675
  %v692 = vrcp.pop %v678
  %v693 = vrcp.pop %v681
  %v694 = vrcp.pop %v684
  %v695 = vrcp.pop %v687
  %v696 = vmul.f32 %v649, %v688
  %v697 = vmul.f32 %v651, %v689
  %v698 = vmul.f32 %v653, %v690
  %v699 = vmul.f32 %v655, %v691
  %v700 = vmul.f32 %v657, %v692
  %v701 = vmul.f32 %v659, %v693
  %v702 = vmul.f32 %v661, %v694
  %v703 = vmul.f32 %v663, %v695
  %v704 = vpack.c.bf16 %v697, %v696
  %v705 = vpack.c.bf16 %v699, %v698
  %v706 = vpack.c.bf16 %v701, %v700
  %v707 = vpack.c.bf16 %v703, %v702
  %v708 = vpack.c.bf16 %v491, %v488
  %v709 = vpack.c.bf16 %v499, %v496
  %v710 = vpack.c.bf16 %v507, %v504
  %v711 = vpack.c.bf16 %v515, %v512
  %v713 = vsel %vm38, %v704, 0
  %v716 = vsel %vm38, %v705, 0
  %v719 = vsel %vm38, %v706, 0
  %v722 = vsel %vm38, %v707, 0
  %724 = vmatprep.subr.bf16.mxu0 0
  %725 = vmatpush1.bf16.msra.mxu0 0
  %726 = vmatprep.subr.bf16.mxu0 0
  %727 = vmatpush1.bf16.msra.mxu0 0
  %728 = vmatprep.subr.bf16.mxu0 0
  %729 = vmatpush1.bf16.msra.mxu0 0
  %730 = vmatprep.subr.bf16.mxu0 0
  %731 = vmatpush1.bf16.msra.mxu0 0
  %732 = vmatprep.subr.bf16.mxu0 0
  %733 = vmatpush1.bf16.msra.mxu0 %v711
  %734 = vmatprep.subr.bf16.mxu0 0
  %735 = vmatpush1.bf16.msra.mxu0 %v710
  %736 = vmatprep.subr.bf16.mxu0 0
  %737 = vmatpush1.bf16.msra.mxu0 %v709
  %738 = vmatprep.subr.bf16.mxu0 0
  %739 = vmatpush1.bf16.msra.mxu0 %v708
  %740 = vmatprep.subr.bf16.mxu0 0
  %741 = vmatpush2.bf16.msra.mxu0 0
  %742 = vmatprep.subr.bf16.mxu0 0
  %743 = vmatpush2.bf16.msra.mxu0 0
  %744 = vmatprep.subr.bf16.mxu0 0
  %745 = vmatpush2.bf16.msra.mxu0 0
  %746 = vmatprep.subr.bf16.mxu0 0
  %747 = vmatpush2.bf16.msra.mxu0 0
  %748 = vmatprep.subr.bf16.mxu0 0
  %749 = vmatpush2.bf16.msra.mxu0 0
  %750 = vmatprep.subr.bf16.mxu0 0
  %751 = vmatpush2.bf16.msra.mxu0 0
  %752 = vmatprep.subr.bf16.mxu0 0
  %753 = vmatpush2.bf16.msra.mxu0 0
  %754 = vmatprep.subr.bf16.mxu0 0
  %755 = vmatpush2.bf16.msra.mxu0 0
  %756 = vmatprep.mubr.bf16.mxu0 0
  %757 = vmatmul.mubr.bf16.gmra.mxu0 %v713
  %v758 = vpop.f32.mrf.mxu0
  %v759 = vadd.f32 0.0, %v758
  %v760 = vpop.f32.mrf.mxu0
  %v761 = vpop.f32.mrf.mxu0
  %v762 = vadd.f32 0.0, %v761
  %v763 = vpop.f32.mrf.mxu0
  %764 = vmatprep.mubr.bf16.mxu0 0
  %765 = vmatmul.mubr.bf16.gmra.mxu0 %v716
  %v766 = vpop.f32.mrf.mxu0
  %v767 = vadd.f32 0.0, %v766
  %v768 = vpop.f32.mrf.mxu0
  %v769 = vpop.f32.mrf.mxu0
  %v770 = vadd.f32 0.0, %v769
  %v771 = vpop.f32.mrf.mxu0
  %772 = vmatprep.mubr.bf16.mxu0 0
  %773 = vmatmul.mubr.bf16.gmra.mxu0 %v719
  %v774 = vpop.f32.mrf.mxu0
  %v775 = vadd.f32 0.0, %v774
  %v776 = vpop.f32.mrf.mxu0
  %v777 = vpop.f32.mrf.mxu0
  %v778 = vadd.f32 0.0, %v777
  %v779 = vpop.f32.mrf.mxu0
  %780 = vmatprep.mubr.bf16.mxu0 0
  %781 = vmatmul.mubr.bf16.gmra.mxu0 %v722
  %v782 = vpop.f32.mrf.mxu0
  %v783 = vadd.f32 0.0, %v782
  %v784 = vpop.f32.mrf.mxu0
  %v785 = vpop.f32.mrf.mxu0
  %v786 = vadd.f32 0.0, %v785
  %v787 = vpop.f32.mrf.mxu0
  %788 = vdwg.mxu0
  %v789 = vpack.c.bf16 %v762, %v759
  %v790 = vpack.c.bf16 %v770, %v767
  %v791 = vpack.c.bf16 %v778, %v775
  %v792 = vpack.c.bf16 %v786, %v783
  %v793 = vld [vmem:[%s3] sm:$0xf]
  %v794 = vld [vmem:[%s3 + $0x4] sm:$0xf]
  %v795 = vld [vmem:[%s3 + $0x8] sm:$0xf]
  %v796 = vld [vmem:[%s3 + $0xc] sm:$0xf]
  %v801 = vunpack.c.l.b16 %v793
  %v802 = vunpack.c.l.b16 %v794
  %v803 = vunpack.c.l.b16 %v795
  %v804 = vunpack.c.l.b16 %v796
  %v805 = vpack.c.b16 %v802, %v801
  %v806 = vpack.c.b16 %v804, %v803
  %v810 = vsel %vm526, %v789, 0
  %v813 = vsel %vm526, %v790, 0
  %v816 = vsel %vm526, %v791, 0
  %v819 = vsel %vm526, %v792, 0
  %821 = vmatprep.subr.bf16.mxu0 0
  %822 = vmatpush1.bf16.msra.mxu0 0
  %823 = vmatprep.subr.bf16.mxu0 0
  %824 = vmatpush1.bf16.msra.mxu0 0
  %825 = vmatprep.subr.bf16.mxu0 0
  %826 = vmatpush1.bf16.msra.mxu0 0
  %827 = vmatprep.subr.bf16.mxu0 0
  %828 = vmatpush1.bf16.msra.mxu0 0
  %829 = vmatprep.subr.bf16.mxu0 0
  %830 = vmatpush1.bf16.msra.mxu0 0
  %831 = vmatprep.subr.bf16.mxu0 0
  %832 = vmatpush1.bf16.msra.mxu0 0
  %833 = vmatprep.subr.bf16.mxu0 0
  %834 = vmatpush1.bf16.msra.mxu0 %v806
  %835 = vmatprep.subr.bf16.mxu0 0
  %836 = vmatpush1.bf16.msra.mxu0 %v805
  %837 = vmatprep.subr.bf16.mxu0 0
  %838 = vmatpush2.bf16.msra.mxu0 0
  %839 = vmatprep.subr.bf16.mxu0 0
  %840 = vmatpush2.bf16.msra.mxu0 0
  %841 = vmatprep.subr.bf16.mxu0 0
  %842 = vmatpush2.bf16.msra.mxu0 0
  %843 = vmatprep.subr.bf16.mxu0 0
  %844 = vmatpush2.bf16.msra.mxu0 0
  %845 = vmatprep.subr.bf16.mxu0 0
  %846 = vmatpush2.bf16.msra.mxu0 0
  %847 = vmatprep.subr.bf16.mxu0 0
  %848 = vmatpush2.bf16.msra.mxu0 0
  %849 = vmatprep.subr.bf16.mxu0 0
  %850 = vmatpush2.bf16.msra.mxu0 0
  %851 = vmatprep.subr.bf16.mxu0 0
  %852 = vmatpush2.bf16.msra.mxu0 0
  %853 = vmatprep.mubr.bf16.mxu0 0
  %854 = vmatmul.mubr.bf16.gmra.mxu0 %v810
  %v855 = vpop.f32.mrf.mxu0
  %v856 = vadd.f32 0.0, %v855
  %v857 = vpop.f32.mrf.mxu0
  %v858 = vpop.f32.mrf.mxu0
  %v859 = vadd.f32 0.0, %v858
  %v860 = vpop.f32.mrf.mxu0
  %861 = vmatprep.mubr.bf16.mxu0 0
  %862 = vmatmul.mubr.bf16.gmra.mxu0 %v813
  %v863 = vpop.f32.mrf.mxu0
  %v864 = vadd.f32 0.0, %v863
  %v865 = vpop.f32.mrf.mxu0
  %v866 = vpop.f32.mrf.mxu0
  %v867 = vadd.f32 0.0, %v866
  %v868 = vpop.f32.mrf.mxu0
  %869 = vmatprep.mubr.bf16.mxu0 0
  %870 = vmatmul.mubr.bf16.gmra.mxu0 %v816
  %v871 = vpop.f32.mrf.mxu0
  %v872 = vadd.f32 0.0, %v871
  %v873 = vpop.f32.mrf.mxu0
  %v874 = vpop.f32.mrf.mxu0
  %v875 = vadd.f32 0.0, %v874
  %v876 = vpop.f32.mrf.mxu0
  %877 = vmatprep.mubr.bf16.mxu0 0
  %878 = vmatmul.mubr.bf16.gmra.mxu0 %v819
  %v879 = vpop.f32.mrf.mxu0
  %v880 = vadd.f32 0.0, %v879
  %v881 = vpop.f32.mrf.mxu0
  %v882 = vpop.f32.mrf.mxu0
  %v883 = vadd.f32 0.0, %v882
  %v884 = vpop.f32.mrf.mxu0
  %885 = vdwg.mxu0
  %v886 = vlaneseq
  %v887 = vshrl.u32 %v886, 7
  %v888 = vsub.s32 0, %v887
  %v889 = vrot.slane %v197, %v888
  %v890 = vadd.f32 %v889, %v856
  %v891 = vadd.f32 %v889, %v859
  %v892 = vadd.f32 %v889, %v864
  %v893 = vadd.f32 %v889, %v867
  %v894 = vadd.f32 %v889, %v872
  %v895 = vadd.f32 %v889, %v875
  %v896 = vadd.f32 %v889, %v880
  %v897 = vadd.f32 %v889, %v883
  %s898 = scalar_lea.vmem %s2, 32
  %v899 = vld [vmem:[%s898] sm:$0xf]
  %v900 = vld [vmem:[%s898 + $0x4] sm:$0xf]
  %v901 = vld [vmem:[%s898 + $0x8] sm:$0xf]
  %v902 = vld [vmem:[%s898 + $0xc] sm:$0xf]
  %v903 = vld [vmem:[%s898 + $0x10] sm:$0xf]
  %v904 = vld [vmem:[%s898 + $0x14] sm:$0xf]
  %v905 = vld [vmem:[%s898 + $0x18] sm:$0xf]
  %v906 = vld [vmem:[%s898 + $0x1c] sm:$0xf]
  %v907 = vld [vmem:[%s7 + $0x3] sm:$0x1]
  %v908 = vlaneseq
  %v909 = vshrl.u32 %v908, 7
  %v910 = vsub.s32 0, %v909
  %v911 = vrot.slane %v907, %v910
  %v920 = vunpack.c.l.b16 %v899
  %v921 = vunpack.c.l.b16 %v900
  %v922 = vunpack.c.l.b16 %v901
  %v923 = vunpack.c.l.b16 %v902
  %v924 = vunpack.c.l.b16 %v903
  %v925 = vunpack.c.l.b16 %v904
  %v926 = vunpack.c.l.b16 %v905
  %v927 = vunpack.c.l.b16 %v906
  %v928 = vpack.c.b16 %v921, %v920
  %v929 = vpack.c.b16 %v923, %v922
  %v930 = vpack.c.b16 %v925, %v924
  %v931 = vpack.c.b16 %v927, %v926
  %936 = vmatprep.subr.bf16.mxu0 0
  %937 = vmatpush1.bf16.msra.mxu0 0
  %938 = vmatprep.subr.bf16.mxu0 0
  %939 = vmatpush1.bf16.msra.mxu0 0
  %940 = vmatprep.subr.bf16.mxu0 0
  %941 = vmatpush1.bf16.msra.mxu0 0
  %942 = vmatprep.subr.bf16.mxu0 0
  %943 = vmatpush1.bf16.msra.mxu0 0
  %944 = vmatprep.subr.bf16.mxu0 0
  %945 = vmatpush1.bf16.msra.mxu0 %v931
  %946 = vmatprep.subr.bf16.mxu0 0
  %947 = vmatpush1.bf16.msra.mxu0 %v930
  %948 = vmatprep.subr.bf16.mxu0 0
  %949 = vmatpush1.bf16.msra.mxu0 %v929
  %950 = vmatprep.subr.bf16.mxu0 0
  %951 = vmatpush1.bf16.msra.mxu0 %v928
  %952 = vmatprep.subr.bf16.mxu0 0
  %953 = vmatpush2.bf16.msra.mxu0 0
  %954 = vmatprep.subr.bf16.mxu0 0
  %955 = vmatpush2.bf16.msra.mxu0 0
  %956 = vmatprep.subr.bf16.mxu0 0
  %957 = vmatpush2.bf16.msra.mxu0 0
  %958 = vmatprep.subr.bf16.mxu0 0
  %959 = vmatpush2.bf16.msra.mxu0 0
  %960 = vmatprep.subr.bf16.mxu0 0
  %961 = vmatpush2.bf16.msra.mxu0 0
  %962 = vmatprep.subr.bf16.mxu0 0
  %963 = vmatpush2.bf16.msra.mxu0 0
  %964 = vmatprep.subr.bf16.mxu0 0
  %965 = vmatpush2.bf16.msra.mxu0 0
  %966 = vmatprep.subr.bf16.mxu0 0
  %967 = vmatpush2.bf16.msra.mxu0 0
  %968 = vmatprep.mubr.bf16.mxu0 0
  %969 = vmatmul.mubr.bf16.gmra.mxu0 %v236
  %v970 = vpop.f32.mrf.mxu0
  %v971 = vadd.f32 %v911, %v970
  %v972 = vpop.f32.mrf.mxu0
  %v973 = vpop.f32.mrf.mxu0
  %v974 = vadd.f32 %v911, %v973
  %v975 = vpop.f32.mrf.mxu0
  %976 = vmatprep.mubr.bf16.mxu0 0
  %977 = vmatmul.mubr.bf16.gmra.mxu0 %v239
  %v978 = vpop.f32.mrf.mxu0
  %v979 = vadd.f32 %v911, %v978
  %v980 = vpop.f32.mrf.mxu0
  %v981 = vpop.f32.mrf.mxu0
  %v982 = vadd.f32 %v911, %v981
  %v983 = vpop.f32.mrf.mxu0
  %984 = vmatprep.mubr.bf16.mxu0 0
  %985 = vmatmul.mubr.bf16.gmra.mxu0 %v242
  %v986 = vpop.f32.mrf.mxu0
  %v987 = vadd.f32 %v911, %v986
  %v988 = vpop.f32.mrf.mxu0
  %v989 = vpop.f32.mrf.mxu0
  %v990 = vadd.f32 %v911, %v989
  %v991 = vpop.f32.mrf.mxu0
  %992 = vmatprep.mubr.bf16.mxu0 0
  %993 = vmatmul.mubr.bf16.gmra.mxu0 %v245
  %v994 = vpop.f32.mrf.mxu0
  %v995 = vadd.f32 %v911, %v994
  %v996 = vpop.f32.mrf.mxu0
  %v997 = vpop.f32.mrf.mxu0
  %v998 = vadd.f32 %v911, %v997
  %v999 = vpop.f32.mrf.mxu0
  %1000 = vdwg.mxu0
  %s1001 = scalar_lea.vmem %s2, 96
  %v1002 = vld [vmem:[%s1001] sm:$0xf]
  %v1003 = vld [vmem:[%s1001 + $0x4] sm:$0xf]
  %v1004 = vld [vmem:[%s1001 + $0x8] sm:$0xf]
  %v1005 = vld [vmem:[%s1001 + $0xc] sm:$0xf]
  %v1006 = vld [vmem:[%s1001 + $0x10] sm:$0xf]
  %v1007 = vld [vmem:[%s1001 + $0x14] sm:$0xf]
  %v1008 = vld [vmem:[%s1001 + $0x18] sm:$0xf]
  %v1009 = vld [vmem:[%s1001 + $0x1c] sm:$0xf]
  %v1010 = vld [vmem:[%s7 + $0x5] sm:$0x1]
  %v1011 = vlaneseq
  %v1012 = vshrl.u32 %v1011, 7
  %v1013 = vsub.s32 0, %v1012
  %v1014 = vrot.slane %v1010, %v1013
  %v1023 = vunpack.c.l.b16 %v1002
  %v1024 = vunpack.c.l.b16 %v1003
  %v1025 = vunpack.c.l.b16 %v1004
  %v1026 = vunpack.c.l.b16 %v1005
  %v1027 = vunpack.c.l.b16 %v1006
  %v1028 = vunpack.c.l.b16 %v1007
  %v1029 = vunpack.c.l.b16 %v1008
  %v1030 = vunpack.c.l.b16 %v1009
  %v1031 = vpack.c.b16 %v1024, %v1023
  %v1032 = vpack.c.b16 %v1026, %v1025
  %v1033 = vpack.c.b16 %v1028, %v1027
  %v1034 = vpack.c.b16 %v1030, %v1029
  %1039 = vmatprep.subr.bf16.mxu0 0
  %1040 = vmatpush1.bf16.msra.mxu0 0
  %1041 = vmatprep.subr.bf16.mxu0 0
  %1042 = vmatpush1.bf16.msra.mxu0 0
  %1043 = vmatprep.subr.bf16.mxu0 0
  %1044 = vmatpush1.bf16.msra.mxu0 0
  %1045 = vmatprep.subr.bf16.mxu0 0
  %1046 = vmatpush1.bf16.msra.mxu0 0
  %1047 = vmatprep.subr.bf16.mxu0 0
  %1048 = vmatpush1.bf16.msra.mxu0 %v1034
  %1049 = vmatprep.subr.bf16.mxu0 0
  %1050 = vmatpush1.bf16.msra.mxu0 %v1033
  %1051 = vmatprep.subr.bf16.mxu0 0
  %1052 = vmatpush1.bf16.msra.mxu0 %v1032
  %1053 = vmatprep.subr.bf16.mxu0 0
  %1054 = vmatpush1.bf16.msra.mxu0 %v1031
  %1055 = vmatprep.subr.bf16.mxu0 0
  %1056 = vmatpush2.bf16.msra.mxu0 0
  %1057 = vmatprep.subr.bf16.mxu0 0
  %1058 = vmatpush2.bf16.msra.mxu0 0
  %1059 = vmatprep.subr.bf16.mxu0 0
  %1060 = vmatpush2.bf16.msra.mxu0 0
  %1061 = vmatprep.subr.bf16.mxu0 0
  %1062 = vmatpush2.bf16.msra.mxu0 0
  %1063 = vmatprep.subr.bf16.mxu0 0
  %1064 = vmatpush2.bf16.msra.mxu0 0
  %1065 = vmatprep.subr.bf16.mxu0 0
  %1066 = vmatpush2.bf16.msra.mxu0 0
  %1067 = vmatprep.subr.bf16.mxu0 0
  %1068 = vmatpush2.bf16.msra.mxu0 0
  %1069 = vmatprep.subr.bf16.mxu0 0
  %1070 = vmatpush2.bf16.msra.mxu0 0
  %1071 = vmatprep.mubr.bf16.mxu0 0
  %1072 = vmatmul.mubr.bf16.gmra.mxu0 %v236
  %v1073 = vpop.f32.mrf.mxu0
  %v1074 = vadd.f32 %v1014, %v1073
  %v1075 = vpop.f32.mrf.mxu0
  %v1076 = vpop.f32.mrf.mxu0
  %v1077 = vadd.f32 %v1014, %v1076
  %v1078 = vpop.f32.mrf.mxu0
  %1079 = vmatprep.mubr.bf16.mxu0 0
  %1080 = vmatmul.mubr.bf16.gmra.mxu0 %v239
  %v1081 = vpop.f32.mrf.mxu0
  %v1082 = vadd.f32 %v1014, %v1081
  %v1083 = vpop.f32.mrf.mxu0
  %v1084 = vpop.f32.mrf.mxu0
  %v1085 = vadd.f32 %v1014, %v1084
  %v1086 = vpop.f32.mrf.mxu0
  %1087 = vmatprep.mubr.bf16.mxu0 0
  %1088 = vmatmul.mubr.bf16.gmra.mxu0 %v242
  %v1089 = vpop.f32.mrf.mxu0
  %v1090 = vadd.f32 %v1014, %v1089
  %v1091 = vpop.f32.mrf.mxu0
  %v1092 = vpop.f32.mrf.mxu0
  %v1093 = vadd.f32 %v1014, %v1092
  %v1094 = vpop.f32.mrf.mxu0
  %1095 = vmatprep.mubr.bf16.mxu0 0
  %1096 = vmatmul.mubr.bf16.gmra.mxu0 %v245
  %v1097 = vpop.f32.mrf.mxu0
  %v1098 = vadd.f32 %v1014, %v1097
  %v1099 = vpop.f32.mrf.mxu0
  %v1100 = vpop.f32.mrf.mxu0
  %v1101 = vadd.f32 %v1014, %v1100
  %v1102 = vpop.f32.mrf.mxu0
  %1103 = vdwg.mxu0
  %s1104 = scalar_lea.vmem %s2, 160
  %v1105 = vld [vmem:[%s1104] sm:$0xf]
  %v1106 = vld [vmem:[%s1104 + $0x4] sm:$0xf]
  %v1107 = vld [vmem:[%s1104 + $0x8] sm:$0xf]
  %v1108 = vld [vmem:[%s1104 + $0xc] sm:$0xf]
  %v1109 = vld [vmem:[%s1104 + $0x10] sm:$0xf]
  %v1110 = vld [vmem:[%s1104 + $0x14] sm:$0xf]
  %v1111 = vld [vmem:[%s1104 + $0x18] sm:$0xf]
  %v1112 = vld [vmem:[%s1104 + $0x1c] sm:$0xf]
  %v1113 = vld [vmem:[%s7 + $0x7] sm:$0x1]
  %v1114 = vlaneseq
  %v1115 = vshrl.u32 %v1114, 7
  %v1116 = vsub.s32 0, %v1115
  %v1117 = vrot.slane %v1113, %v1116
  %v1126 = vunpack.c.l.b16 %v1105
  %v1127 = vunpack.c.l.b16 %v1106
  %v1128 = vunpack.c.l.b16 %v1107
  %v1129 = vunpack.c.l.b16 %v1108
  %v1130 = vunpack.c.l.b16 %v1109
  %v1131 = vunpack.c.l.b16 %v1110
  %v1132 = vunpack.c.l.b16 %v1111
  %v1133 = vunpack.c.l.b16 %v1112
  %v1134 = vpack.c.b16 %v1127, %v1126
  %v1135 = vpack.c.b16 %v1129, %v1128
  %v1136 = vpack.c.b16 %v1131, %v1130
  %v1137 = vpack.c.b16 %v1133, %v1132
  %1142 = vmatprep.subr.bf16.mxu0 0
  %1143 = vmatpush1.bf16.msra.mxu0 0
  %1144 = vmatprep.subr.bf16.mxu0 0
  %1145 = vmatpush1.bf16.msra.mxu0 0
  %1146 = vmatprep.subr.bf16.mxu0 0
  %1147 = vmatpush1.bf16.msra.mxu0 0
  %1148 = vmatprep.subr.bf16.mxu0 0
  %1149 = vmatpush1.bf16.msra.mxu0 0
  %1150 = vmatprep.subr.bf16.mxu0 0
  %1151 = vmatpush1.bf16.msra.mxu0 %v1137
  %1152 = vmatprep.subr.bf16.mxu0 0
  %1153 = vmatpush1.bf16.msra.mxu0 %v1136
  %1154 = vmatprep.subr.bf16.mxu0 0
  %1155 = vmatpush1.bf16.msra.mxu0 %v1135
  %1156 = vmatprep.subr.bf16.mxu0 0
  %1157 = vmatpush1.bf16.msra.mxu0 %v1134
  %1158 = vmatprep.subr.bf16.mxu0 0
  %1159 = vmatpush2.bf16.msra.mxu0 0
  %1160 = vmatprep.subr.bf16.mxu0 0
  %1161 = vmatpush2.bf16.msra.mxu0 0
  %1162 = vmatprep.subr.bf16.mxu0 0
  %1163 = vmatpush2.bf16.msra.mxu0 0
  %1164 = vmatprep.subr.bf16.mxu0 0
  %1165 = vmatpush2.bf16.msra.mxu0 0
  %1166 = vmatprep.subr.bf16.mxu0 0
  %1167 = vmatpush2.bf16.msra.mxu0 0
  %1168 = vmatprep.subr.bf16.mxu0 0
  %1169 = vmatpush2.bf16.msra.mxu0 0
  %1170 = vmatprep.subr.bf16.mxu0 0
  %1171 = vmatpush2.bf16.msra.mxu0 0
  %1172 = vmatprep.subr.bf16.mxu0 0
  %1173 = vmatpush2.bf16.msra.mxu0 0
  %1174 = vmatprep.mubr.bf16.mxu0 0
  %1175 = vmatmul.mubr.bf16.gmra.mxu0 %v236
  %v1176 = vpop.f32.mrf.mxu0
  %v1177 = vadd.f32 %v1117, %v1176
  %v1178 = vpop.f32.mrf.mxu0
  %v1179 = vpop.f32.mrf.mxu0
  %v1180 = vadd.f32 %v1117, %v1179
  %v1181 = vpop.f32.mrf.mxu0
  %1182 = vmatprep.mubr.bf16.mxu0 0
  %1183 = vmatmul.mubr.bf16.gmra.mxu0 %v239
  %v1184 = vpop.f32.mrf.mxu0
  %v1185 = vadd.f32 %v1117, %v1184
  %v1186 = vpop.f32.mrf.mxu0
  %v1187 = vpop.f32.mrf.mxu0
  %v1188 = vadd.f32 %v1117, %v1187
  %v1189 = vpop.f32.mrf.mxu0
  %1190 = vmatprep.mubr.bf16.mxu0 0
  %1191 = vmatmul.mubr.bf16.gmra.mxu0 %v242
  %v1192 = vpop.f32.mrf.mxu0
  %v1193 = vadd.f32 %v1117, %v1192
  %v1194 = vpop.f32.mrf.mxu0
  %v1195 = vpop.f32.mrf.mxu0
  %v1196 = vadd.f32 %v1117, %v1195
  %v1197 = vpop.f32.mrf.mxu0
  %1198 = vmatprep.mubr.bf16.mxu0 0
  %1199 = vmatmul.mubr.bf16.gmra.mxu0 %v245
  %v1200 = vpop.f32.mrf.mxu0
  %v1201 = vadd.f32 %v1117, %v1200
  %v1202 = vpop.f32.mrf.mxu0
  %v1203 = vpop.f32.mrf.mxu0
  %v1204 = vadd.f32 %v1117, %v1203
  %v1205 = vpop.f32.mrf.mxu0
  %1206 = vdwg.mxu0
  %v1207 = vpack.c.bf16 %v974, %v971
  %v1208 = vpack.c.bf16 %v982, %v979
  %v1209 = vpack.c.bf16 %v990, %v987
  %v1210 = vpack.c.bf16 %v998, %v995
  %v1211 = vpack.c.bf16 %v1077, %v1074
  %v1212 = vpack.c.bf16 %v1085, %v1082
  %v1213 = vpack.c.bf16 %v1093, %v1090
  %v1214 = vpack.c.bf16 %v1101, %v1098
  %v1216 = vsel %vm526, %v1207, 0
  %v1219 = vsel %vm526, %v1208, 0
  %v1222 = vsel %vm526, %v1209, 0
  %v1225 = vsel %vm526, %v1210, 0
  %v1228 = vsel %vm526, %v1211, 0
  %v1231 = vsel %vm526, %v1212, 0
  %v1234 = vsel %vm526, %v1213, 0
  %v1237 = vsel %vm526, %v1214, 0
  %1239 = vmatprep.subr.bf16.mxu0 0
  %1240 = vmatpush1.bf16.xpose.msra.mxu0 0
  %1241 = vmatprep.subr.bf16.mxu0 0
  %1242 = vmatpush1.bf16.xpose.msra.mxu0 0
  %1243 = vmatprep.subr.bf16.mxu0 0
  %1244 = vmatpush1.bf16.xpose.msra.mxu0 0
  %1245 = vmatprep.subr.bf16.mxu0 0
  %1246 = vmatpush1.bf16.xpose.msra.mxu0 0
  %1247 = vmatprep.subr.bf16.mxu0 0
  %1248 = vmatpush1.bf16.xpose.msra.mxu0 %v1237
  %1249 = vmatprep.subr.bf16.mxu0 0
  %1250 = vmatpush1.bf16.xpose.msra.mxu0 %v1234
  %1251 = vmatprep.subr.bf16.mxu0 0
  %1252 = vmatpush1.bf16.xpose.msra.mxu0 %v1231
  %1253 = vmatprep.subr.bf16.mxu0 0
  %1254 = vmatpush1.bf16.xpose.msra.mxu0 %v1228
  %1255 = vmatprep.subr.bf16.mxu0 0
  %1256 = vmatpush2.bf16.xpose.msra.mxu0 0
  %1257 = vmatprep.subr.bf16.mxu0 0
  %1258 = vmatpush2.bf16.xpose.msra.mxu0 0
  %1259 = vmatprep.subr.bf16.mxu0 0
  %1260 = vmatpush2.bf16.xpose.msra.mxu0 0
  %1261 = vmatprep.subr.bf16.mxu0 0
  %1262 = vmatpush2.bf16.xpose.msra.mxu0 0
  %1263 = vmatprep.subr.bf16.mxu0 0
  %1264 = vmatpush2.bf16.xpose.msra.mxu0 0
  %1265 = vmatprep.subr.bf16.mxu0 0
  %1266 = vmatpush2.bf16.xpose.msra.mxu0 0
  %1267 = vmatprep.subr.bf16.mxu0 0
  %1268 = vmatpush2.bf16.xpose.msra.mxu0 0
  %1269 = vmatprep.subr.bf16.mxu0 0
  %1270 = vmatpush2.bf16.xpose.msra.mxu0 0
  %1271 = vmatprep.mubr.bf16.mxu0 0
  %1272 = vmatmul.mubr.bf16.gmra.mxu0 %v1216
  %v1273 = vpop.f32.mrf.mxu0
  %v1274 = vadd.f32 %v185, %v1273
  %v1275 = vpop.f32.mrf.mxu0
  %v1276 = vpop.f32.mrf.mxu0
  %v1277 = vadd.f32 %v186, %v1276
  %v1278 = vpop.f32.mrf.mxu0
  %1279 = vmatprep.mubr.bf16.mxu0 0
  %1280 = vmatmul.mubr.bf16.gmra.mxu0 %v1219
  %v1281 = vpop.f32.mrf.mxu0
  %v1282 = vadd.f32 %v187, %v1281
  %v1283 = vpop.f32.mrf.mxu0
  %v1284 = vpop.f32.mrf.mxu0
  %v1285 = vadd.f32 %v188, %v1284
  %v1286 = vpop.f32.mrf.mxu0
  %1287 = vmatprep.mubr.bf16.mxu0 0
  %1288 = vmatmul.mubr.bf16.gmra.mxu0 %v1222
  %v1289 = vpop.f32.mrf.mxu0
  %v1290 = vadd.f32 %v189, %v1289
  %v1291 = vpop.f32.mrf.mxu0
  %v1292 = vpop.f32.mrf.mxu0
  %v1293 = vadd.f32 %v190, %v1292
  %v1294 = vpop.f32.mrf.mxu0
  %1295 = vmatprep.mubr.bf16.mxu0 0
  %1296 = vmatmul.mubr.bf16.gmra.mxu0 %v1225
  %v1297 = vpop.f32.mrf.mxu0
  %v1298 = vadd.f32 %v191, %v1297
  %v1299 = vpop.f32.mrf.mxu0
  %v1300 = vpop.f32.mrf.mxu0
  %v1301 = vadd.f32 %v192, %v1300
  %v1302 = vpop.f32.mrf.mxu0
  %1303 = vdwg.mxu0
  %v1304 = vsel %vm38, %v1274, -inf
  %1305 = vmax.xlane.f32.xlu0 %v1304
  %v1306 = vpop.xlane.xlu0 %1305
  %v1307 = vsel %vm38, %v1277, -inf
  %1308 = vmax.xlane.f32.xlu0 %v1307
  %v1309 = vpop.xlane.xlu0 %1308
  %v1310 = vsel %vm38, %v1282, -inf
  %1311 = vmax.xlane.f32.xlu0 %v1310
  %v1312 = vpop.xlane.xlu0 %1311
  %v1313 = vsel %vm38, %v1285, -inf
  %1314 = vmax.xlane.f32.xlu0 %v1313
  %v1315 = vpop.xlane.xlu0 %1314
  %v1316 = vsel %vm38, %v1290, -inf
  %1317 = vmax.xlane.f32.xlu0 %v1316
  %v1318 = vpop.xlane.xlu0 %1317
  %v1319 = vsel %vm38, %v1293, -inf
  %1320 = vmax.xlane.f32.xlu0 %v1319
  %v1321 = vpop.xlane.xlu0 %1320
  %v1322 = vsel %vm38, %v1298, -inf
  %1323 = vmax.xlane.f32.xlu0 %v1322
  %v1324 = vpop.xlane.xlu0 %1323
  %v1325 = vsel %vm38, %v1301, -inf
  %1326 = vmax.xlane.f32.xlu0 %v1325
  %v1327 = vpop.xlane.xlu0 %1326
  %v1328 = vsub.f32 %v1274, %v1306
  %v1329 = vsub.f32 %v1277, %v1309
  %v1330 = vsub.f32 %v1282, %v1312
  %v1331 = vsub.f32 %v1285, %v1315
  %v1332 = vsub.f32 %v1290, %v1318
  %v1333 = vsub.f32 %v1293, %v1321
  %v1334 = vsub.f32 %v1298, %v1324
  %v1335 = vsub.f32 %v1301, %v1327
  %v1336 = vmul.f32 %v1328, 1.442695
  %v1337 = vpow.pop %v1336
  %v1338 = vmul.f32 %v1329, 1.442695
  %v1339 = vpow.pop %v1338
  %v1340 = vmul.f32 %v1330, 1.442695
  %v1341 = vpow.pop %v1340
  %v1342 = vmul.f32 %v1331, 1.442695
  %v1343 = vpow.pop %v1342
  %v1344 = vmul.f32 %v1332, 1.442695
  %v1345 = vpow.pop %v1344
  %v1346 = vmul.f32 %v1333, 1.442695
  %v1347 = vpow.pop %v1346
  %v1348 = vmul.f32 %v1334, 1.442695
  %v1349 = vpow.pop %v1348
  %v1350 = vmul.f32 %v1335, 1.442695
  %v1351 = vpow.pop %v1350
  %v1352 = vsel %vm38, %v1337, 0.0
  %1353 = vadd.xlane.f32.xlu0 %v1352
  %v1354 = vpop.xlane.xlu0 %1353
  %v1355 = vsel %vm38, %v1339, 0.0
  %1356 = vadd.xlane.f32.xlu0 %v1355
  %v1357 = vpop.xlane.xlu0 %1356
  %v1358 = vsel %vm38, %v1341, 0.0
  %1359 = vadd.xlane.f32.xlu0 %v1358
  %v1360 = vpop.xlane.xlu0 %1359
  %v1361 = vsel %vm38, %v1343, 0.0
  %1362 = vadd.xlane.f32.xlu0 %v1361
  %v1363 = vpop.xlane.xlu0 %1362
  %v1364 = vsel %vm38, %v1345, 0.0
  %1365 = vadd.xlane.f32.xlu0 %v1364
  %v1366 = vpop.xlane.xlu0 %1365
  %v1367 = vsel %vm38, %v1347, 0.0
  %1368 = vadd.xlane.f32.xlu0 %v1367
  %v1369 = vpop.xlane.xlu0 %1368
  %v1370 = vsel %vm38, %v1349, 0.0
  %1371 = vadd.xlane.f32.xlu0 %v1370
  %v1372 = vpop.xlane.xlu0 %1371
  %v1373 = vsel %vm38, %v1351, 0.0
  %1374 = vadd.xlane.f32.xlu0 %v1373
  %v1375 = vpop.xlane.xlu0 %1374
  %v1376 = vrcp.pop %v1354
  %v1377 = vrcp.pop %v1357
  %v1378 = vrcp.pop %v1360
  %v1379 = vrcp.pop %v1363
  %v1380 = vrcp.pop %v1366
  %v1381 = vrcp.pop %v1369
  %v1382 = vrcp.pop %v1372
  %v1383 = vrcp.pop %v1375
  %v1384 = vmul.f32 %v1337, %v1376
  %v1385 = vmul.f32 %v1339, %v1377
  %v1386 = vmul.f32 %v1341, %v1378
  %v1387 = vmul.f32 %v1343, %v1379
  %v1388 = vmul.f32 %v1345, %v1380
  %v1389 = vmul.f32 %v1347, %v1381
  %v1390 = vmul.f32 %v1349, %v1382
  %v1391 = vmul.f32 %v1351, %v1383
  %v1392 = vpack.c.bf16 %v1385, %v1384
  %v1393 = vpack.c.bf16 %v1387, %v1386
  %v1394 = vpack.c.bf16 %v1389, %v1388
  %v1395 = vpack.c.bf16 %v1391, %v1390
  %v1396 = vpack.c.bf16 %v1180, %v1177
  %v1397 = vpack.c.bf16 %v1188, %v1185
  %v1398 = vpack.c.bf16 %v1196, %v1193
  %v1399 = vpack.c.bf16 %v1204, %v1201
  %v1401 = vsel %vm38, %v1392, 0
  %v1404 = vsel %vm38, %v1393, 0
  %v1407 = vsel %vm38, %v1394, 0
  %v1410 = vsel %vm38, %v1395, 0
  %1412 = vmatprep.subr.bf16.mxu0 0
  %1413 = vmatpush1.bf16.msra.mxu0 0
  %1414 = vmatprep.subr.bf16.mxu0 0
  %1415 = vmatpush1.bf16.msra.mxu0 0
  %1416 = vmatprep.subr.bf16.mxu0 0
  %1417 = vmatpush1.bf16.msra.mxu0 0
  %1418 = vmatprep.subr.bf16.mxu0 0
  %1419 = vmatpush1.bf16.msra.mxu0 0
  %1420 = vmatprep.subr.bf16.mxu0 0
  %1421 = vmatpush1.bf16.msra.mxu0 %v1399
  %1422 = vmatprep.subr.bf16.mxu0 0
  %1423 = vmatpush1.bf16.msra.mxu0 %v1398
  %1424 = vmatprep.subr.bf16.mxu0 0
  %1425 = vmatpush1.bf16.msra.mxu0 %v1397
  %1426 = vmatprep.subr.bf16.mxu0 0
  %1427 = vmatpush1.bf16.msra.mxu0 %v1396
  %1428 = vmatprep.subr.bf16.mxu0 0
  %1429 = vmatpush2.bf16.msra.mxu0 0
  %1430 = vmatprep.subr.bf16.mxu0 0
  %1431 = vmatpush2.bf16.msra.mxu0 0
  %1432 = vmatprep.subr.bf16.mxu0 0
  %1433 = vmatpush2.bf16.msra.mxu0 0
  %1434 = vmatprep.subr.bf16.mxu0 0
  %1435 = vmatpush2.bf16.msra.mxu0 0
  %1436 = vmatprep.subr.bf16.mxu0 0
  %1437 = vmatpush2.bf16.msra.mxu0 0
  %1438 = vmatprep.subr.bf16.mxu0 0
  %1439 = vmatpush2.bf16.msra.mxu0 0
  %1440 = vmatprep.subr.bf16.mxu0 0
  %1441 = vmatpush2.bf16.msra.mxu0 0
  %1442 = vmatprep.subr.bf16.mxu0 0
  %1443 = vmatpush2.bf16.msra.mxu0 0
  %1444 = vmatprep.mubr.bf16.mxu0 0
  %1445 = vmatmul.mubr.bf16.gmra.mxu0 %v1401
  %v1446 = vpop.f32.mrf.mxu0
  %v1447 = vadd.f32 0.0, %v1446
  %v1448 = vpop.f32.mrf.mxu0
  %v1449 = vpop.f32.mrf.mxu0
  %v1450 = vadd.f32 0.0, %v1449
  %v1451 = vpop.f32.mrf.mxu0
  %1452 = vmatprep.mubr.bf16.mxu0 0
  %1453 = vmatmul.mubr.bf16.gmra.mxu0 %v1404
  %v1454 = vpop.f32.mrf.mxu0
  %v1455 = vadd.f32 0.0, %v1454
  %v1456 = vpop.f32.mrf.mxu0
  %v1457 = vpop.f32.mrf.mxu0
  %v1458 = vadd.f32 0.0, %v1457
  %v1459 = vpop.f32.mrf.mxu0
  %1460 = vmatprep.mubr.bf16.mxu0 0
  %1461 = vmatmul.mubr.bf16.gmra.mxu0 %v1407
  %v1462 = vpop.f32.mrf.mxu0
  %v1463 = vadd.f32 0.0, %v1462
  %v1464 = vpop.f32.mrf.mxu0
  %v1465 = vpop.f32.mrf.mxu0
  %v1466 = vadd.f32 0.0, %v1465
  %v1467 = vpop.f32.mrf.mxu0
  %1468 = vmatprep.mubr.bf16.mxu0 0
  %1469 = vmatmul.mubr.bf16.gmra.mxu0 %v1410
  %v1470 = vpop.f32.mrf.mxu0
  %v1471 = vadd.f32 0.0, %v1470
  %v1472 = vpop.f32.mrf.mxu0
  %v1473 = vpop.f32.mrf.mxu0
  %v1474 = vadd.f32 0.0, %v1473
  %v1475 = vpop.f32.mrf.mxu0
  %1476 = vdwg.mxu0
  %v1477 = vpack.c.bf16 %v1450, %v1447
  %v1478 = vpack.c.bf16 %v1458, %v1455
  %v1479 = vpack.c.bf16 %v1466, %v1463
  %v1480 = vpack.c.bf16 %v1474, %v1471
  %s1481 = scalar_lea.vmem %s3, 16
  %v1482 = vld [vmem:[%s1481] sm:$0xf]
  %v1483 = vld [vmem:[%s1481 + $0x4] sm:$0xf]
  %v1484 = vld [vmem:[%s1481 + $0x8] sm:$0xf]
  %v1485 = vld [vmem:[%s1481 + $0xc] sm:$0xf]
  %v1490 = vunpack.c.l.b16 %v1482
  %v1491 = vunpack.c.l.b16 %v1483
  %v1492 = vunpack.c.l.b16 %v1484
  %v1493 = vunpack.c.l.b16 %v1485
  %v1494 = vpack.c.b16 %v1491, %v1490
  %v1495 = vpack.c.b16 %v1493, %v1492
  %v1499 = vsel %vm526, %v1477, 0
  %v1502 = vsel %vm526, %v1478, 0
  %v1505 = vsel %vm526, %v1479, 0
  %v1508 = vsel %vm526, %v1480, 0
  %1510 = vmatprep.subr.bf16.mxu0 0
  %1511 = vmatpush1.bf16.msra.mxu0 0
  %1512 = vmatprep.subr.bf16.mxu0 0
  %1513 = vmatpush1.bf16.msra.mxu0 0
  %1514 = vmatprep.subr.bf16.mxu0 0
  %1515 = vmatpush1.bf16.msra.mxu0 0
  %1516 = vmatprep.subr.bf16.mxu0 0
  %1517 = vmatpush1.bf16.msra.mxu0 0
  %1518 = vmatprep.subr.bf16.mxu0 0
  %1519 = vmatpush1.bf16.msra.mxu0 0
  %1520 = vmatprep.subr.bf16.mxu0 0
  %1521 = vmatpush1.bf16.msra.mxu0 0
  %1522 = vmatprep.subr.bf16.mxu0 0
  %1523 = vmatpush1.bf16.msra.mxu0 %v1495
  %1524 = vmatprep.subr.bf16.mxu0 0
  %1525 = vmatpush1.bf16.msra.mxu0 %v1494
  %1526 = vmatprep.subr.bf16.mxu0 0
  %1527 = vmatpush2.bf16.msra.mxu0 0
  %1528 = vmatprep.subr.bf16.mxu0 0
  %1529 = vmatpush2.bf16.msra.mxu0 0
  %1530 = vmatprep.subr.bf16.mxu0 0
  %1531 = vmatpush2.bf16.msra.mxu0 0
  %1532 = vmatprep.subr.bf16.mxu0 0
  %1533 = vmatpush2.bf16.msra.mxu0 0
  %1534 = vmatprep.subr.bf16.mxu0 0
  %1535 = vmatpush2.bf16.msra.mxu0 0
  %1536 = vmatprep.subr.bf16.mxu0 0
  %1537 = vmatpush2.bf16.msra.mxu0 0
  %1538 = vmatprep.subr.bf16.mxu0 0
  %1539 = vmatpush2.bf16.msra.mxu0 0
  %1540 = vmatprep.subr.bf16.mxu0 0
  %1541 = vmatpush2.bf16.msra.mxu0 0
  %1542 = vmatprep.mubr.bf16.mxu0 0
  %1543 = vmatmul.mubr.bf16.gmra.mxu0 %v1499
  %v1544 = vpop.f32.mrf.mxu0
  %v1545 = vadd.f32 0.0, %v1544
  %v1546 = vpop.f32.mrf.mxu0
  %v1547 = vpop.f32.mrf.mxu0
  %v1548 = vadd.f32 0.0, %v1547
  %v1549 = vpop.f32.mrf.mxu0
  %1550 = vmatprep.mubr.bf16.mxu0 0
  %1551 = vmatmul.mubr.bf16.gmra.mxu0 %v1502
  %v1552 = vpop.f32.mrf.mxu0
  %v1553 = vadd.f32 0.0, %v1552
  %v1554 = vpop.f32.mrf.mxu0
  %v1555 = vpop.f32.mrf.mxu0
  %v1556 = vadd.f32 0.0, %v1555
  %v1557 = vpop.f32.mrf.mxu0
  %1558 = vmatprep.mubr.bf16.mxu0 0
  %1559 = vmatmul.mubr.bf16.gmra.mxu0 %v1505
  %v1560 = vpop.f32.mrf.mxu0
  %v1561 = vadd.f32 0.0, %v1560
  %v1562 = vpop.f32.mrf.mxu0
  %v1563 = vpop.f32.mrf.mxu0
  %v1564 = vadd.f32 0.0, %v1563
  %v1565 = vpop.f32.mrf.mxu0
  %1566 = vmatprep.mubr.bf16.mxu0 0
  %1567 = vmatmul.mubr.bf16.gmra.mxu0 %v1508
  %v1568 = vpop.f32.mrf.mxu0
  %v1569 = vadd.f32 0.0, %v1568
  %v1570 = vpop.f32.mrf.mxu0
  %v1571 = vpop.f32.mrf.mxu0
  %v1572 = vadd.f32 0.0, %v1571
  %v1573 = vpop.f32.mrf.mxu0
  %1574 = vdwg.mxu0
  %v1575 = vadd.f32 %v890, %v1545
  %v1576 = vadd.f32 %v891, %v1548
  %v1577 = vadd.f32 %v892, %v1553
  %v1578 = vadd.f32 %v893, %v1556
  %v1579 = vadd.f32 %v894, %v1561
  %v1580 = vadd.f32 %v895, %v1564
  %v1581 = vadd.f32 %v896, %v1569
  %v1582 = vadd.f32 %v897, %v1572
  %v1583 = vadd.f32 %v177, %v1575
  %v1584 = vadd.f32 %v178, %v1576
  %v1585 = vadd.f32 %v179, %v1577
  %v1586 = vadd.f32 %v180, %v1578
  %v1587 = vadd.f32 %v181, %v1579
  %v1588 = vadd.f32 %v182, %v1580
  %v1589 = vadd.f32 %v183, %v1581
  %v1590 = vadd.f32 %v184, %v1582
  %v1591 = vsel %vm38, %v1583, 0.0
  %1592 = vadd.xlane.f32.xlu0 %v1591
  %v1593 = vpop.xlane.xlu0 %1592
  %v1594 = vsel %vm38, %v1584, 0.0
  %1595 = vadd.xlane.f32.xlu0 %v1594
  %v1596 = vpop.xlane.xlu0 %1595
  %v1597 = vsel %vm38, %v1585, 0.0
  %1598 = vadd.xlane.f32.xlu0 %v1597
  %v1599 = vpop.xlane.xlu0 %1598
  %v1600 = vsel %vm38, %v1586, 0.0
  %1601 = vadd.xlane.f32.xlu0 %v1600
  %v1602 = vpop.xlane.xlu0 %1601
  %v1603 = vsel %vm38, %v1587, 0.0
  %1604 = vadd.xlane.f32.xlu0 %v1603
  %v1605 = vpop.xlane.xlu0 %1604
  %v1606 = vsel %vm38, %v1588, 0.0
  %1607 = vadd.xlane.f32.xlu0 %v1606
  %v1608 = vpop.xlane.xlu0 %1607
  %v1609 = vsel %vm38, %v1589, 0.0
  %1610 = vadd.xlane.f32.xlu0 %v1609
  %v1611 = vpop.xlane.xlu0 %1610
  %v1612 = vsel %vm38, %v1590, 0.0
  %1613 = vadd.xlane.f32.xlu0 %v1612
  %v1614 = vpop.xlane.xlu0 %1613
  %v1615 = vmul.f32 %v1583, %v1583
  %v1616 = vmul.f32 %v1584, %v1584
  %v1617 = vmul.f32 %v1585, %v1585
  %v1618 = vmul.f32 %v1586, %v1586
  %v1619 = vmul.f32 %v1587, %v1587
  %v1620 = vmul.f32 %v1588, %v1588
  %v1621 = vmul.f32 %v1589, %v1589
  %v1622 = vmul.f32 %v1590, %v1590
  %v1623 = vsel %vm38, %v1615, 0.0
  %1624 = vadd.xlane.f32.xlu0 %v1623
  %v1625 = vpop.xlane.xlu0 %1624
  %v1626 = vsel %vm38, %v1616, 0.0
  %1627 = vadd.xlane.f32.xlu0 %v1626
  %v1628 = vpop.xlane.xlu0 %1627
  %v1629 = vsel %vm38, %v1617, 0.0
  %1630 = vadd.xlane.f32.xlu0 %v1629
  %v1631 = vpop.xlane.xlu0 %1630
  %v1632 = vsel %vm38, %v1618, 0.0
  %1633 = vadd.xlane.f32.xlu0 %v1632
  %v1634 = vpop.xlane.xlu0 %1633
  %v1635 = vsel %vm38, %v1619, 0.0
  %1636 = vadd.xlane.f32.xlu0 %v1635
  %v1637 = vpop.xlane.xlu0 %1636
  %v1638 = vsel %vm38, %v1620, 0.0
  %1639 = vadd.xlane.f32.xlu0 %v1638
  %v1640 = vpop.xlane.xlu0 %1639
  %v1641 = vsel %vm38, %v1621, 0.0
  %1642 = vadd.xlane.f32.xlu0 %v1641
  %v1643 = vpop.xlane.xlu0 %1642
  %v1644 = vsel %vm38, %v1622, 0.0
  %1645 = vadd.xlane.f32.xlu0 %v1644
  %v1646 = vpop.xlane.xlu0 %1645
  %v1647 = vmul.f32 %v1593, 0.015625
  %v1648 = vmul.f32 %v1596, 0.015625
  %v1649 = vmul.f32 %v1599, 0.015625
  %v1650 = vmul.f32 %v1602, 0.015625
  %v1651 = vmul.f32 %v1605, 0.015625
  %v1652 = vmul.f32 %v1608, 0.015625
  %v1653 = vmul.f32 %v1611, 0.015625
  %v1654 = vmul.f32 %v1614, 0.015625
  %v1655 = vmul.f32 %v1625, 0.015625
  %v1656 = vmul.f32 %v1628, 0.015625
  %v1657 = vmul.f32 %v1631, 0.015625
  %v1658 = vmul.f32 %v1634, 0.015625
  %v1659 = vmul.f32 %v1637, 0.015625
  %v1660 = vmul.f32 %v1640, 0.015625
  %v1661 = vmul.f32 %v1643, 0.015625
  %v1662 = vmul.f32 %v1646, 0.015625
  %v1663 = vmul.f32 %v1647, %v1647
  %v1664 = vmul.f32 %v1648, %v1648
  %v1665 = vmul.f32 %v1649, %v1649
  %v1666 = vmul.f32 %v1650, %v1650
  %v1667 = vmul.f32 %v1651, %v1651
  %v1668 = vmul.f32 %v1652, %v1652
  %v1669 = vmul.f32 %v1653, %v1653
  %v1670 = vmul.f32 %v1654, %v1654
  %v1671 = vsub.f32 %v1655, %v1663
  %v1672 = vsub.f32 %v1656, %v1664
  %v1673 = vsub.f32 %v1657, %v1665
  %v1674 = vsub.f32 %v1658, %v1666
  %v1675 = vsub.f32 %v1659, %v1667
  %v1676 = vsub.f32 %v1660, %v1668
  %v1677 = vsub.f32 %v1661, %v1669
  %v1678 = vsub.f32 %v1662, %v1670
  %v1679 = vsub.f32 %v1583, %v1647
  %v1680 = vsub.f32 %v1584, %v1648
  %v1681 = vsub.f32 %v1585, %v1649
  %v1682 = vsub.f32 %v1586, %v1650
  %v1683 = vsub.f32 %v1587, %v1651
  %v1684 = vsub.f32 %v1588, %v1652
  %v1685 = vsub.f32 %v1589, %v1653
  %v1686 = vsub.f32 %v1590, %v1654
  %v1687 = vadd.f32 %v1671, 1e-12
  %v1688 = vadd.f32 %v1672, 1e-12
  %v1689 = vadd.f32 %v1673, 1e-12
  %v1690 = vadd.f32 %v1674, 1e-12
  %v1691 = vadd.f32 %v1675, 1e-12
  %v1692 = vadd.f32 %v1676, 1e-12
  %v1693 = vadd.f32 %v1677, 1e-12
  %v1694 = vadd.f32 %v1678, 1e-12
  %v1695 = vrsqrt.pop %v1687
  %v1696 = vrsqrt.pop %v1688
  %v1697 = vrsqrt.pop %v1689
  %v1698 = vrsqrt.pop %v1690
  %v1699 = vrsqrt.pop %v1691
  %v1700 = vrsqrt.pop %v1692
  %v1701 = vrsqrt.pop %v1693
  %v1702 = vrsqrt.pop %v1694
  %v1703 = vmul.f32 %v1679, %v1695
  %v1704 = vmul.f32 %v1680, %v1696
  %v1705 = vmul.f32 %v1681, %v1697
  %v1706 = vmul.f32 %v1682, %v1698
  %v1707 = vmul.f32 %v1683, %v1699
  %v1708 = vmul.f32 %v1684, %v1700
  %v1709 = vmul.f32 %v1685, %v1701
  %v1710 = vmul.f32 %v1686, %v1702
  %v1711 = vld [vmem:[%s7 + $0x9] sm:$0x1]
  %v1712 = vlaneseq
  %v1713 = vshrl.u32 %v1712, 7
  %v1714 = vsub.s32 0, %v1713
  %v1715 = vrot.slane %v1711, %v1714
  %v1716 = vmul.f32 %v1703, %v1715
  %v1717 = vmul.f32 %v1704, %v1715
  %v1718 = vmul.f32 %v1705, %v1715
  %v1719 = vmul.f32 %v1706, %v1715
  %v1720 = vmul.f32 %v1707, %v1715
  %v1721 = vmul.f32 %v1708, %v1715
  %v1722 = vmul.f32 %v1709, %v1715
  %v1723 = vmul.f32 %v1710, %v1715
  %v1724 = vld [vmem:[%s7 + $0xa] sm:$0x1]
  %v1725 = vlaneseq
  %v1726 = vshrl.u32 %v1725, 7
  %v1727 = vsub.s32 0, %v1726
  %v1728 = vrot.slane %v1724, %v1727
  %v1729 = vadd.f32 %v1716, %v1728
  %v1730 = vadd.f32 %v1717, %v1728
  %v1731 = vadd.f32 %v1718, %v1728
  %v1732 = vadd.f32 %v1719, %v1728
  %v1733 = vadd.f32 %v1720, %v1728
  %v1734 = vadd.f32 %v1721, %v1728
  %v1735 = vadd.f32 %v1722, %v1728
  %v1736 = vadd.f32 %v1723, %v1728
  %v1737 = vpack.c.bf16 %v1730, %v1729
  %v1738 = vpack.c.bf16 %v1732, %v1731
  %v1739 = vpack.c.bf16 %v1734, %v1733
  %v1740 = vpack.c.bf16 %v1736, %v1735
  %v1741 = vld [vmem:[%s4] sm:$0xf]
  %v1742 = vld [vmem:[%s4 + $0x4] sm:$0xf]
  %v1743 = vld [vmem:[%s4 + $0x8] sm:$0xf]
  %v1744 = vld [vmem:[%s4 + $0xc] sm:$0xf]
  %v1745 = vld [vmem:[%s4 + $0x10] sm:$0xf]
  %v1746 = vld [vmem:[%s4 + $0x14] sm:$0xf]
  %v1747 = vld [vmem:[%s4 + $0x18] sm:$0xf]
  %v1748 = vld [vmem:[%s4 + $0x1c] sm:$0xf]
  %v1749 = vld [vmem:[%s7 + $0xb] sm:$0x1]
  %v1750 = vlaneseq
  %v1751 = vshrl.u32 %v1750, 7
  %v1752 = vsub.s32 0, %v1751
  %v1753 = vrot.slane %v1749, %v1752
  %v1762 = vunpack.c.l.b16 %v1741
  %v1763 = vunpack.c.l.b16 %v1742
  %v1764 = vunpack.c.l.b16 %v1743
  %v1765 = vunpack.c.l.b16 %v1744
  %v1766 = vunpack.c.l.b16 %v1745
  %v1767 = vunpack.c.l.b16 %v1746
  %v1768 = vunpack.c.l.b16 %v1747
  %v1769 = vunpack.c.l.b16 %v1748
  %v1770 = vpack.c.b16 %v1763, %v1762
  %v1771 = vpack.c.b16 %v1765, %v1764
  %v1772 = vpack.c.b16 %v1767, %v1766
  %v1773 = vpack.c.b16 %v1769, %v1768
  %v1779 = vsel %vm38, %v1737, 0
  %v1782 = vsel %vm38, %v1738, 0
  %v1785 = vsel %vm38, %v1739, 0
  %v1788 = vsel %vm38, %v1740, 0
  %1790 = vmatprep.subr.bf16.mxu0 0
  %1791 = vmatpush1.bf16.msra.mxu0 0
  %1792 = vmatprep.subr.bf16.mxu0 0
  %1793 = vmatpush1.bf16.msra.mxu0 0
  %1794 = vmatprep.subr.bf16.mxu0 0
  %1795 = vmatpush1.bf16.msra.mxu0 0
  %1796 = vmatprep.subr.bf16.mxu0 0
  %1797 = vmatpush1.bf16.msra.mxu0 0
  %1798 = vmatprep.subr.bf16.mxu0 0
  %1799 = vmatpush1.bf16.msra.mxu0 %v1773
  %1800 = vmatprep.subr.bf16.mxu0 0
  %1801 = vmatpush1.bf16.msra.mxu0 %v1772
  %1802 = vmatprep.subr.bf16.mxu0 0
  %1803 = vmatpush1.bf16.msra.mxu0 %v1771
  %1804 = vmatprep.subr.bf16.mxu0 0
  %1805 = vmatpush1.bf16.msra.mxu0 %v1770
  %1806 = vmatprep.subr.bf16.mxu0 0
  %1807 = vmatpush2.bf16.msra.mxu0 0
  %1808 = vmatprep.subr.bf16.mxu0 0
  %1809 = vmatpush2.bf16.msra.mxu0 0
  %1810 = vmatprep.subr.bf16.mxu0 0
  %1811 = vmatpush2.bf16.msra.mxu0 0
  %1812 = vmatprep.subr.bf16.mxu0 0
  %1813 = vmatpush2.bf16.msra.mxu0 0
  %1814 = vmatprep.subr.bf16.mxu0 0
  %1815 = vmatpush2.bf16.msra.mxu0 0
  %1816 = vmatprep.subr.bf16.mxu0 0
  %1817 = vmatpush2.bf16.msra.mxu0 0
  %1818 = vmatprep.subr.bf16.mxu0 0
  %1819 = vmatpush2.bf16.msra.mxu0 0
  %1820 = vmatprep.subr.bf16.mxu0 0
  %1821 = vmatpush2.bf16.msra.mxu0 0
  %1822 = vmatprep.mubr.bf16.mxu0 0
  %1823 = vmatmul.mubr.bf16.gmra.mxu0 %v1779
  %v1824 = vpop.f32.mrf.mxu0
  %v1825 = vadd.f32 %v1753, %v1824
  %v1826 = vpop.f32.mrf.mxu0
  %v1827 = vpop.f32.mrf.mxu0
  %v1828 = vadd.f32 %v1753, %v1827
  %v1829 = vpop.f32.mrf.mxu0
  %1830 = vmatprep.mubr.bf16.mxu0 0
  %1831 = vmatmul.mubr.bf16.gmra.mxu0 %v1782
  %v1832 = vpop.f32.mrf.mxu0
  %v1833 = vadd.f32 %v1753, %v1832
  %v1834 = vpop.f32.mrf.mxu0
  %v1835 = vpop.f32.mrf.mxu0
  %v1836 = vadd.f32 %v1753, %v1835
  %v1837 = vpop.f32.mrf.mxu0
  %1838 = vmatprep.mubr.bf16.mxu0 0
  %1839 = vmatmul.mubr.bf16.gmra.mxu0 %v1785
  %v1840 = vpop.f32.mrf.mxu0
  %v1841 = vadd.f32 %v1753, %v1840
  %v1842 = vpop.f32.mrf.mxu0
  %v1843 = vpop.f32.mrf.mxu0
  %v1844 = vadd.f32 %v1753, %v1843
  %v1845 = vpop.f32.mrf.mxu0
  %1846 = vmatprep.mubr.bf16.mxu0 0
  %1847 = vmatmul.mubr.bf16.gmra.mxu0 %v1788
  %v1848 = vpop.f32.mrf.mxu0
  %v1849 = vadd.f32 %v1753, %v1848
  %v1850 = vpop.f32.mrf.mxu0
  %v1851 = vpop.f32.mrf.mxu0
  %v1852 = vadd.f32 %v1753, %v1851
  %v1853 = vpop.f32.mrf.mxu0
  %1854 = vdwg.mxu0
  %v1855 = vmul.f32 %v1825, %v1825
  %v1856 = vmul.f32 %v1828, %v1828
  %v1857 = vmul.f32 %v1833, %v1833
  %v1858 = vmul.f32 %v1836, %v1836
  %v1859 = vmul.f32 %v1841, %v1841
  %v1860 = vmul.f32 %v1844, %v1844
  %v1861 = vmul.f32 %v1849, %v1849
  %v1862 = vmul.f32 %v1852, %v1852
  %v1863 = vmul.f32 %v1825, %v1855
  %v1864 = vmul.f32 %v1828, %v1856
  %v1865 = vmul.f32 %v1833, %v1857
  %v1866 = vmul.f32 %v1836, %v1858
  %v1867 = vmul.f32 %v1841, %v1859
  %v1868 = vmul.f32 %v1844, %v1860
  %v1869 = vmul.f32 %v1849, %v1861
  %v1870 = vmul.f32 %v1852, %v1862
  %v1871 = vmul.f32 %v1863, 0.044715
  %v1872 = vmul.f32 %v1864, 0.044715
  %v1873 = vmul.f32 %v1865, 0.044715
  %v1874 = vmul.f32 %v1866, 0.044715
  %v1875 = vmul.f32 %v1867, 0.044715
  %v1876 = vmul.f32 %v1868, 0.044715
  %v1877 = vmul.f32 %v1869, 0.044715
  %v1878 = vmul.f32 %v1870, 0.044715
  %v1879 = vadd.f32 %v1825, %v1871
  %v1880 = vadd.f32 %v1828, %v1872
  %v1881 = vadd.f32 %v1833, %v1873
  %v1882 = vadd.f32 %v1836, %v1874
  %v1883 = vadd.f32 %v1841, %v1875
  %v1884 = vadd.f32 %v1844, %v1876
  %v1885 = vadd.f32 %v1849, %v1877
  %v1886 = vadd.f32 %v1852, %v1878
  %v1887 = vmul.f32 %v1879, 0.7978846
  %v1888 = vmul.f32 %v1880, 0.7978846
  %v1889 = vmul.f32 %v1881, 0.7978846
  %v1890 = vmul.f32 %v1882, 0.7978846
  %v1891 = vmul.f32 %v1883, 0.7978846
  %v1892 = vmul.f32 %v1884, 0.7978846
  %v1893 = vmul.f32 %v1885, 0.7978846
  %v1894 = vmul.f32 %v1886, 0.7978846
  %v1895 = vtanh.pop %v1887
  %v1896 = vtanh.pop %v1888
  %v1897 = vtanh.pop %v1889
  %v1898 = vtanh.pop %v1890
  %v1899 = vtanh.pop %v1891
  %v1900 = vtanh.pop %v1892
  %v1901 = vtanh.pop %v1893
  %v1902 = vtanh.pop %v1894
  %v1903 = vadd.f32 %v1895, 1.0
  %v1904 = vadd.f32 %v1896, 1.0
  %v1905 = vadd.f32 %v1897, 1.0
  %v1906 = vadd.f32 %v1898, 1.0
  %v1907 = vadd.f32 %v1899, 1.0
  %v1908 = vadd.f32 %v1900, 1.0
  %v1909 = vadd.f32 %v1901, 1.0
  %v1910 = vadd.f32 %v1902, 1.0
  %v1911 = vmul.f32 %v1903, 0.5
  %v1912 = vmul.f32 %v1904, 0.5
  %v1913 = vmul.f32 %v1905, 0.5
  %v1914 = vmul.f32 %v1906, 0.5
  %v1915 = vmul.f32 %v1907, 0.5
  %v1916 = vmul.f32 %v1908, 0.5
  %v1917 = vmul.f32 %v1909, 0.5
  %v1918 = vmul.f32 %v1910, 0.5
  %v1919 = vmul.f32 %v1825, %v1911
  %v1920 = vmul.f32 %v1828, %v1912
  %v1921 = vmul.f32 %v1833, %v1913
  %v1922 = vmul.f32 %v1836, %v1914
  %v1923 = vmul.f32 %v1841, %v1915
  %v1924 = vmul.f32 %v1844, %v1916
  %v1925 = vmul.f32 %v1849, %v1917
  %v1926 = vmul.f32 %v1852, %v1918
  %v1927 = vpack.c.bf16 %v1920, %v1919
  %v1928 = vpack.c.bf16 %v1922, %v1921
  %v1929 = vpack.c.bf16 %v1924, %v1923
  %v1930 = vpack.c.bf16 %v1926, %v1925
  %v1931 = vld [vmem:[%s5] sm:$0xf]
  %v1932 = vld [vmem:[%s5 + $0x4] sm:$0xf]
  %v1933 = vld [vmem:[%s5 + $0x8] sm:$0xf]
  %v1934 = vld [vmem:[%s5 + $0xc] sm:$0xf]
  %v1935 = vld [vmem:[%s5 + $0x10] sm:$0xf]
  %v1936 = vld [vmem:[%s5 + $0x14] sm:$0xf]
  %v1937 = vld [vmem:[%s5 + $0x18] sm:$0xf]
  %v1938 = vld [vmem:[%s5 + $0x1c] sm:$0xf]
  %v1939 = vld [vmem:[%s5 + $0x20] sm:$0xf]
  %v1940 = vld [vmem:[%s5 + $0x24] sm:$0xf]
  %v1941 = vld [vmem:[%s5 + $0x28] sm:$0xf]
  %v1942 = vld [vmem:[%s5 + $0x2c] sm:$0xf]
  %v1943 = vld [vmem:[%s5 + $0x30] sm:$0xf]
  %v1944 = vld [vmem:[%s5 + $0x34] sm:$0xf]
  %v1945 = vld [vmem:[%s5 + $0x38] sm:$0xf]
  %v1946 = vld [vmem:[%s5 + $0x3c] sm:$0xf]
  %v1947 = vld [vmem:[%s7 + $0xc] sm:$0x1]
  %v1948 = vlaneseq
  %v1949 = vshrl.u32 %v1948, 7
  %v1950 = vsub.s32 0, %v1949
  %v1951 = vrot.slane %v1947, %v1950
  %v1968 = vunpack.c.l.b16 %v1931
  %v1969 = vunpack.c.l.b16 %v1932
  %v1970 = vunpack.c.l.b16 %v1933
  %v1971 = vunpack.c.l.b16 %v1934
  %v1972 = vunpack.c.l.b16 %v1935
  %v1973 = vunpack.c.l.b16 %v1936
  %v1974 = vunpack.c.l.b16 %v1937
  %v1975 = vunpack.c.l.b16 %v1938
  %v1976 = vunpack.c.l.b16 %v1939
  %v1977 = vunpack.c.l.b16 %v1940
  %v1978 = vunpack.c.l.b16 %v1941
  %v1979 = vunpack.c.l.b16 %v1942
  %v1980 = vunpack.c.l.b16 %v1943
  %v1981 = vunpack.c.l.b16 %v1944
  %v1982 = vunpack.c.l.b16 %v1945
  %v1983 = vunpack.c.l.b16 %v1946
  %v1984 = vpack.c.b16 %v1969, %v1968
  %v1985 = vpack.c.b16 %v1971, %v1970
  %v1986 = vpack.c.b16 %v1973, %v1972
  %v1987 = vpack.c.b16 %v1975, %v1974
  %v1988 = vpack.c.b16 %v1977, %v1976
  %v1989 = vpack.c.b16 %v1979, %v1978
  %v1990 = vpack.c.b16 %v1981, %v1980
  %v1991 = vpack.c.b16 %v1983, %v1982
  %2000 = vmatprep.subr.bf16.mxu0 0
  %2001 = vmatpush1.bf16.msra.mxu0 %v1991
  %2002 = vmatprep.subr.bf16.mxu0 0
  %2003 = vmatpush1.bf16.msra.mxu0 %v1990
  %2004 = vmatprep.subr.bf16.mxu0 0
  %2005 = vmatpush1.bf16.msra.mxu0 %v1989
  %2006 = vmatprep.subr.bf16.mxu0 0
  %2007 = vmatpush1.bf16.msra.mxu0 %v1988
  %2008 = vmatprep.subr.bf16.mxu0 0
  %2009 = vmatpush1.bf16.msra.mxu0 %v1987
  %2010 = vmatprep.subr.bf16.mxu0 0
  %2011 = vmatpush1.bf16.msra.mxu0 %v1986
  %2012 = vmatprep.subr.bf16.mxu0 0
  %2013 = vmatpush1.bf16.msra.mxu0 %v1985
  %2014 = vmatprep.subr.bf16.mxu0 0
  %2015 = vmatpush1.bf16.msra.mxu0 %v1984
  %2016 = vmatprep.subr.bf16.mxu0 0
  %2017 = vmatpush2.bf16.msra.mxu0 0
  %2018 = vmatprep.subr.bf16.mxu0 0
  %2019 = vmatpush2.bf16.msra.mxu0 0
  %2020 = vmatprep.subr.bf16.mxu0 0
  %2021 = vmatpush2.bf16.msra.mxu0 0
  %2022 = vmatprep.subr.bf16.mxu0 0
  %2023 = vmatpush2.bf16.msra.mxu0 0
  %2024 = vmatprep.subr.bf16.mxu0 0
  %2025 = vmatpush2.bf16.msra.mxu0 0
  %2026 = vmatprep.subr.bf16.mxu0 0
  %2027 = vmatpush2.bf16.msra.mxu0 0
  %2028 = vmatprep.subr.bf16.mxu0 0
  %2029 = vmatpush2.bf16.msra.mxu0 0
  %2030 = vmatprep.subr.bf16.mxu0 0
  %2031 = vmatpush2.bf16.msra.mxu0 0
  %2032 = vmatprep.mubr.bf16.mxu0 0
  %2033 = vmatmul.mubr.bf16.gmra.mxu0 %v1927
  %v2034 = vpop.f32.mrf.mxu0
  %v2035 = vadd.f32 %v1951, %v2034
  %v2036 = vpop.f32.mrf.mxu0
  %v2037 = vpop.f32.mrf.mxu0
  %v2038 = vadd.f32 %v1951, %v2037
  %v2039 = vpop.f32.mrf.mxu0
  %2040 = vmatprep.mubr.bf16.mxu0 0
  %2041 = vmatmul.mubr.bf16.gmra.mxu0 %v1928
  %v2042 = vpop.f32.mrf.mxu0
  %v2043 = vadd.f32 %v1951, %v2042
  %v2044 = vpop.f32.mrf.mxu0
  %v2045 = vpop.f32.mrf.mxu0
  %v2046 = vadd.f32 %v1951, %v2045
  %v2047 = vpop.f32.mrf.mxu0
  %2048 = vmatprep.mubr.bf16.mxu0 0
  %2049 = vmatmul.mubr.bf16.gmra.mxu0 %v1929
  %v2050 = vpop.f32.mrf.mxu0
  %v2051 = vadd.f32 %v1951, %v2050
  %v2052 = vpop.f32.mrf.mxu0
  %v2053 = vpop.f32.mrf.mxu0
  %v2054 = vadd.f32 %v1951, %v2053
  %v2055 = vpop.f32.mrf.mxu0
  %2056 = vmatprep.mubr.bf16.mxu0 0
  %2057 = vmatmul.mubr.bf16.gmra.mxu0 %v1930
  %v2058 = vpop.f32.mrf.mxu0
  %v2059 = vadd.f32 %v1951, %v2058
  %v2060 = vpop.f32.mrf.mxu0
  %v2061 = vpop.f32.mrf.mxu0
  %v2062 = vadd.f32 %v1951, %v2061
  %v2063 = vpop.f32.mrf.mxu0
  %2064 = vdwg.mxu0
  %v2065 = vadd.f32 %v1729, %v2035
  %v2066 = vadd.f32 %v1730, %v2038
  %v2067 = vadd.f32 %v1731, %v2043
  %v2068 = vadd.f32 %v1732, %v2046
  %v2069 = vadd.f32 %v1733, %v2051
  %v2070 = vadd.f32 %v1734, %v2054
  %v2071 = vadd.f32 %v1735, %v2059
  %v2072 = vadd.f32 %v1736, %v2062
  %v2073 = vsel %vm38, %v2065, 0.0
  %2074 = vadd.xlane.f32.xlu0 %v2073
  %v2075 = vpop.xlane.xlu0 %2074
  %v2076 = vsel %vm38, %v2066, 0.0
  %2077 = vadd.xlane.f32.xlu0 %v2076
  %v2078 = vpop.xlane.xlu0 %2077
  %v2079 = vsel %vm38, %v2067, 0.0
  %2080 = vadd.xlane.f32.xlu0 %v2079
  %v2081 = vpop.xlane.xlu0 %2080
  %v2082 = vsel %vm38, %v2068, 0.0
  %2083 = vadd.xlane.f32.xlu0 %v2082
  %v2084 = vpop.xlane.xlu0 %2083
  %v2085 = vsel %vm38, %v2069, 0.0
  %2086 = vadd.xlane.f32.xlu0 %v2085
  %v2087 = vpop.xlane.xlu0 %2086
  %v2088 = vsel %vm38, %v2070, 0.0
  %2089 = vadd.xlane.f32.xlu0 %v2088
  %v2090 = vpop.xlane.xlu0 %2089
  %v2091 = vsel %vm38, %v2071, 0.0
  %2092 = vadd.xlane.f32.xlu0 %v2091
  %v2093 = vpop.xlane.xlu0 %2092
  %v2094 = vsel %vm38, %v2072, 0.0
  %2095 = vadd.xlane.f32.xlu0 %v2094
  %v2096 = vpop.xlane.xlu0 %2095
  %v2097 = vmul.f32 %v2065, %v2065
  %v2098 = vmul.f32 %v2066, %v2066
  %v2099 = vmul.f32 %v2067, %v2067
  %v2100 = vmul.f32 %v2068, %v2068
  %v2101 = vmul.f32 %v2069, %v2069
  %v2102 = vmul.f32 %v2070, %v2070
  %v2103 = vmul.f32 %v2071, %v2071
  %v2104 = vmul.f32 %v2072, %v2072
  %v2105 = vsel %vm38, %v2097, 0.0
  %2106 = vadd.xlane.f32.xlu0 %v2105
  %v2107 = vpop.xlane.xlu0 %2106
  %v2108 = vsel %vm38, %v2098, 0.0
  %2109 = vadd.xlane.f32.xlu0 %v2108
  %v2110 = vpop.xlane.xlu0 %2109
  %v2111 = vsel %vm38, %v2099, 0.0
  %2112 = vadd.xlane.f32.xlu0 %v2111
  %v2113 = vpop.xlane.xlu0 %2112
  %v2114 = vsel %vm38, %v2100, 0.0
  %2115 = vadd.xlane.f32.xlu0 %v2114
  %v2116 = vpop.xlane.xlu0 %2115
  %v2117 = vsel %vm38, %v2101, 0.0
  %2118 = vadd.xlane.f32.xlu0 %v2117
  %v2119 = vpop.xlane.xlu0 %2118
  %v2120 = vsel %vm38, %v2102, 0.0
  %2121 = vadd.xlane.f32.xlu0 %v2120
  %v2122 = vpop.xlane.xlu0 %2121
  %v2123 = vsel %vm38, %v2103, 0.0
  %2124 = vadd.xlane.f32.xlu0 %v2123
  %v2125 = vpop.xlane.xlu0 %2124
  %v2126 = vsel %vm38, %v2104, 0.0
  %2127 = vadd.xlane.f32.xlu0 %v2126
  %v2128 = vpop.xlane.xlu0 %2127
  %v2129 = vmul.f32 %v2075, 0.015625
  %v2130 = vmul.f32 %v2078, 0.015625
  %v2131 = vmul.f32 %v2081, 0.015625
  %v2132 = vmul.f32 %v2084, 0.015625
  %v2133 = vmul.f32 %v2087, 0.015625
  %v2134 = vmul.f32 %v2090, 0.015625
  %v2135 = vmul.f32 %v2093, 0.015625
  %v2136 = vmul.f32 %v2096, 0.015625
  %v2137 = vmul.f32 %v2107, 0.015625
  %v2138 = vmul.f32 %v2110, 0.015625
  %v2139 = vmul.f32 %v2113, 0.015625
  %v2140 = vmul.f32 %v2116, 0.015625
  %v2141 = vmul.f32 %v2119, 0.015625
  %v2142 = vmul.f32 %v2122, 0.015625
  %v2143 = vmul.f32 %v2125, 0.015625
  %v2144 = vmul.f32 %v2128, 0.015625
  %v2145 = vmul.f32 %v2129, %v2129
  %v2146 = vmul.f32 %v2130, %v2130
  %v2147 = vmul.f32 %v2131, %v2131
  %v2148 = vmul.f32 %v2132, %v2132
  %v2149 = vmul.f32 %v2133, %v2133
  %v2150 = vmul.f32 %v2134, %v2134
  %v2151 = vmul.f32 %v2135, %v2135
  %v2152 = vmul.f32 %v2136, %v2136
  %v2153 = vsub.f32 %v2137, %v2145
  %v2154 = vsub.f32 %v2138, %v2146
  %v2155 = vsub.f32 %v2139, %v2147
  %v2156 = vsub.f32 %v2140, %v2148
  %v2157 = vsub.f32 %v2141, %v2149
  %v2158 = vsub.f32 %v2142, %v2150
  %v2159 = vsub.f32 %v2143, %v2151
  %v2160 = vsub.f32 %v2144, %v2152
  %v2161 = vsub.f32 %v2065, %v2129
  %v2162 = vsub.f32 %v2066, %v2130
  %v2163 = vsub.f32 %v2067, %v2131
  %v2164 = vsub.f32 %v2068, %v2132
  %v2165 = vsub.f32 %v2069, %v2133
  %v2166 = vsub.f32 %v2070, %v2134
  %v2167 = vsub.f32 %v2071, %v2135
  %v2168 = vsub.f32 %v2072, %v2136
  %v2169 = vadd.f32 %v2153, 1e-12
  %v2170 = vadd.f32 %v2154, 1e-12
  %v2171 = vadd.f32 %v2155, 1e-12
  %v2172 = vadd.f32 %v2156, 1e-12
  %v2173 = vadd.f32 %v2157, 1e-12
  %v2174 = vadd.f32 %v2158, 1e-12
  %v2175 = vadd.f32 %v2159, 1e-12
  %v2176 = vadd.f32 %v2160, 1e-12
  %v2177 = vrsqrt.pop %v2169
  %v2178 = vrsqrt.pop %v2170
  %v2179 = vrsqrt.pop %v2171
  %v2180 = vrsqrt.pop %v2172
  %v2181 = vrsqrt.pop %v2173
  %v2182 = vrsqrt.pop %v2174
  %v2183 = vrsqrt.pop %v2175
  %v2184 = vrsqrt.pop %v2176
  %v2185 = vmul.f32 %v2161, %v2177
  %v2186 = vmul.f32 %v2162, %v2178
  %v2187 = vmul.f32 %v2163, %v2179
  %v2188 = vmul.f32 %v2164, %v2180
  %v2189 = vmul.f32 %v2165, %v2181
  %v2190 = vmul.f32 %v2166, %v2182
  %v2191 = vmul.f32 %v2167, %v2183
  %v2192 = vmul.f32 %v2168, %v2184
  %v2193 = vld [vmem:[%s7 + $0xd] sm:$0x1]
  %v2194 = vlaneseq
  %v2195 = vshrl.u32 %v2194, 7
  %v2196 = vsub.s32 0, %v2195
  %v2197 = vrot.slane %v2193, %v2196
  %v2198 = vmul.f32 %v2185, %v2197
  %v2199 = vmul.f32 %v2186, %v2197
  %v2200 = vmul.f32 %v2187, %v2197
  %v2201 = vmul.f32 %v2188, %v2197
  %v2202 = vmul.f32 %v2189, %v2197
  %v2203 = vmul.f32 %v2190, %v2197
  %v2204 = vmul.f32 %v2191, %v2197
  %v2205 = vmul.f32 %v2192, %v2197
  %v2206 = vld [vmem:[%s7 + $0xe] sm:$0x1]
  %v2207 = vlaneseq
  %v2208 = vshrl.u32 %v2207, 7
  %v2209 = vsub.s32 0, %v2208
  %v2210 = vrot.slane %v2206, %v2209
  %v2211 = vadd.f32 %v2198, %v2210
  %v2212 = vadd.f32 %v2199, %v2210
  %v2213 = vadd.f32 %v2200, %v2210
  %v2214 = vadd.f32 %v2201, %v2210
  %v2215 = vadd.f32 %v2202, %v2210
  %v2216 = vadd.f32 %v2203, %v2210
  %v2217 = vadd.f32 %v2204, %v2210
  %v2218 = vadd.f32 %v2205, %v2210
  %v2219 = vpack.c.bf16 %v2212, %v2211
  %v2220 = vpack.c.bf16 %v2214, %v2213
  %v2221 = vpack.c.bf16 %v2216, %v2215
  %v2222 = vpack.c.bf16 %v2218, %v2217
  %v2223 = vld [vmem:[%s7 + $0x15] sm:$0x1]
  %s2224 = scalar_lea.vmem %s2, 192
  %v2225 = vld [vmem:[%s2224] sm:$0xf]
  %v2226 = vld [vmem:[%s2224 + $0x4] sm:$0xf]
  %v2227 = vld [vmem:[%s2224 + $0x8] sm:$0xf]
  %v2228 = vld [vmem:[%s2224 + $0xc] sm:$0xf]
  %v2229 = vld [vmem:[%s2224 + $0x10] sm:$0xf]
  %v2230 = vld [vmem:[%s2224 + $0x14] sm:$0xf]
  %v2231 = vld [vmem:[%s2224 + $0x18] sm:$0xf]
  %v2232 = vld [vmem:[%s2224 + $0x1c] sm:$0xf]
  %v2233 = vld [vmem:[%s7 + $0xf] sm:$0x1]
  %v2234 = vlaneseq
  %v2235 = vshrl.u32 %v2234, 7
  %v2236 = vsub.s32 0, %v2235
  %v2237 = vrot.slane %v2233, %v2236
  %v2246 = vunpack.c.l.b16 %v2225
  %v2247 = vunpack.c.l.b16 %v2226
  %v2248 = vunpack.c.l.b16 %v2227
  %v2249 = vunpack.c.l.b16 %v2228
  %v2250 = vunpack.c.l.b16 %v2229
  %v2251 = vunpack.c.l.b16 %v2230
  %v2252 = vunpack.c.l.b16 %v2231
  %v2253 = vunpack.c.l.b16 %v2232
  %v2254 = vpack.c.b16 %v2247, %v2246
  %v2255 = vpack.c.b16 %v2249, %v2248
  %v2256 = vpack.c.b16 %v2251, %v2250
  %v2257 = vpack.c.b16 %v2253, %v2252
  %v2263 = vsel %vm38, %v2219, 0
  %v2266 = vsel %vm38, %v2220, 0
  %v2269 = vsel %vm38, %v2221, 0
  %v2272 = vsel %vm38, %v2222, 0
  %2274 = vmatprep.subr.bf16.mxu0 0
  %2275 = vmatpush1.bf16.msra.mxu0 0
  %2276 = vmatprep.subr.bf16.mxu0 0
  %2277 = vmatpush1.bf16.msra.mxu0 0
  %2278 = vmatprep.subr.bf16.mxu0 0
  %2279 = vmatpush1.bf16.msra.mxu0 0
  %2280 = vmatprep.subr.bf16.mxu0 0
  %2281 = vmatpush1.bf16.msra.mxu0 0
  %2282 = vmatprep.subr.bf16.mxu0 0
  %2283 = vmatpush1.bf16.msra.mxu0 %v2257
  %2284 = vmatprep.subr.bf16.mxu0 0
  %2285 = vmatpush1.bf16.msra.mxu0 %v2256
  %2286 = vmatprep.subr.bf16.mxu0 0
  %2287 = vmatpush1.bf16.msra.mxu0 %v2255
  %2288 = vmatprep.subr.bf16.mxu0 0
  %2289 = vmatpush1.bf16.msra.mxu0 %v2254
  %2290 = vmatprep.subr.bf16.mxu0 0
  %2291 = vmatpush2.bf16.msra.mxu0 0
  %2292 = vmatprep.subr.bf16.mxu0 0
  %2293 = vmatpush2.bf16.msra.mxu0 0
  %2294 = vmatprep.subr.bf16.mxu0 0
  %2295 = vmatpush2.bf16.msra.mxu0 0
  %2296 = vmatprep.subr.bf16.mxu0 0
  %2297 = vmatpush2.bf16.msra.mxu0 0
  %2298 = vmatprep.subr.bf16.mxu0 0
  %2299 = vmatpush2.bf16.msra.mxu0 0
  %2300 = vmatprep.subr.bf16.mxu0 0
  %2301 = vmatpush2.bf16.msra.mxu0 0
  %2302 = vmatprep.subr.bf16.mxu0 0
  %2303 = vmatpush2.bf16.msra.mxu0 0
  %2304 = vmatprep.subr.bf16.mxu0 0
  %2305 = vmatpush2.bf16.msra.mxu0 0
  %2306 = vmatprep.mubr.bf16.mxu0 0
  %2307 = vmatmul.mubr.bf16.gmra.mxu0 %v2263
  %v2308 = vpop.f32.mrf.mxu0
  %v2309 = vadd.f32 %v2237, %v2308
  %v2310 = vpop.f32.mrf.mxu0
  %v2311 = vpop.f32.mrf.mxu0
  %v2312 = vadd.f32 %v2237, %v2311
  %v2313 = vpop.f32.mrf.mxu0
  %2314 = vmatprep.mubr.bf16.mxu0 0
  %2315 = vmatmul.mubr.bf16.gmra.mxu0 %v2266
  %v2316 = vpop.f32.mrf.mxu0
  %v2317 = vadd.f32 %v2237, %v2316
  %v2318 = vpop.f32.mrf.mxu0
  %v2319 = vpop.f32.mrf.mxu0
  %v2320 = vadd.f32 %v2237, %v2319
  %v2321 = vpop.f32.mrf.mxu0
  %2322 = vmatprep.mubr.bf16.mxu0 0
  %2323 = vmatmul.mubr.bf16.gmra.mxu0 %v2269
  %v2324 = vpop.f32.mrf.mxu0
  %v2325 = vadd.f32 %v2237, %v2324
  %v2326 = vpop.f32.mrf.mxu0
  %v2327 = vpop.f32.mrf.mxu0
  %v2328 = vadd.f32 %v2237, %v2327
  %v2329 = vpop.f32.mrf.mxu0
  %2330 = vmatprep.mubr.bf16.mxu0 0
  %2331 = vmatmul.mubr.bf16.gmra.mxu0 %v2272
  %v2332 = vpop.f32.mrf.mxu0
  %v2333 = vadd.f32 %v2237, %v2332
  %v2334 = vpop.f32.mrf.mxu0
  %v2335 = vpop.f32.mrf.mxu0
  %v2336 = vadd.f32 %v2237, %v2335
  %v2337 = vpop.f32.mrf.mxu0
  %2338 = vdwg.mxu0
  %s2339 = scalar_lea.vmem %s2, 256
  %v2340 = vld [vmem:[%s2339] sm:$0xf]
  %v2341 = vld [vmem:[%s2339 + $0x4] sm:$0xf]
  %v2342 = vld [vmem:[%s2339 + $0x8] sm:$0xf]
  %v2343 = vld [vmem:[%s2339 + $0xc] sm:$0xf]
  %v2344 = vld [vmem:[%s2339 + $0x10] sm:$0xf]
  %v2345 = vld [vmem:[%s2339 + $0x14] sm:$0xf]
  %v2346 = vld [vmem:[%s2339 + $0x18] sm:$0xf]
  %v2347 = vld [vmem:[%s2339 + $0x1c] sm:$0xf]
  %v2348 = vld [vmem:[%s7 + $0x11] sm:$0x1]
  %v2349 = vlaneseq
  %v2350 = vshrl.u32 %v2349, 7
  %v2351 = vsub.s32 0, %v2350
  %v2352 = vrot.slane %v2348, %v2351
  %v2361 = vunpack.c.l.b16 %v2340
  %v2362 = vunpack.c.l.b16 %v2341
  %v2363 = vunpack.c.l.b16 %v2342
  %v2364 = vunpack.c.l.b16 %v2343
  %v2365 = vunpack.c.l.b16 %v2344
  %v2366 = vunpack.c.l.b16 %v2345
  %v2367 = vunpack.c.l.b16 %v2346
  %v2368 = vunpack.c.l.b16 %v2347
  %v2369 = vpack.c.b16 %v2362, %v2361
  %v2370 = vpack.c.b16 %v2364, %v2363
  %v2371 = vpack.c.b16 %v2366, %v2365
  %v2372 = vpack.c.b16 %v2368, %v2367
  %2377 = vmatprep.subr.bf16.mxu0 0
  %2378 = vmatpush1.bf16.msra.mxu0 0
  %2379 = vmatprep.subr.bf16.mxu0 0
  %2380 = vmatpush1.bf16.msra.mxu0 0
  %2381 = vmatprep.subr.bf16.mxu0 0
  %2382 = vmatpush1.bf16.msra.mxu0 0
  %2383 = vmatprep.subr.bf16.mxu0 0
  %2384 = vmatpush1.bf16.msra.mxu0 0
  %2385 = vmatprep.subr.bf16.mxu0 0
  %2386 = vmatpush1.bf16.msra.mxu0 %v2372
  %2387 = vmatprep.subr.bf16.mxu0 0
  %2388 = vmatpush1.bf16.msra.mxu0 %v2371
  %2389 = vmatprep.subr.bf16.mxu0 0
  %2390 = vmatpush1.bf16.msra.mxu0 %v2370
  %2391 = vmatprep.subr.bf16.mxu0 0
  %2392 = vmatpush1.bf16.msra.mxu0 %v2369
  %2393 = vmatprep.subr.bf16.mxu0 0
  %2394 = vmatpush2.bf16.msra.mxu0 0
  %2395 = vmatprep.subr.bf16.mxu0 0
  %2396 = vmatpush2.bf16.msra.mxu0 0
  %2397 = vmatprep.subr.bf16.mxu0 0
  %2398 = vmatpush2.bf16.msra.mxu0 0
  %2399 = vmatprep.subr.bf16.mxu0 0
  %2400 = vmatpush2.bf16.msra.mxu0 0
  %2401 = vmatprep.subr.bf16.mxu0 0
  %2402 = vmatpush2.bf16.msra.mxu0 0
  %2403 = vmatprep.subr.bf16.mxu0 0
  %2404 = vmatpush2.bf16.msra.mxu0 0
  %2405 = vmatprep.subr.bf16.mxu0 0
  %2406 = vmatpush2.bf16.msra.mxu0 0
  %2407 = vmatprep.subr.bf16.mxu0 0
  %2408 = vmatpush2.bf16.msra.mxu0 0
  %2409 = vmatprep.mubr.bf16.mxu0 0
  %2410 = vmatmul.mubr.bf16.gmra.mxu0 %v2263
  %v2411 = vpop.f32.mrf.mxu0
  %v2412 = vadd.f32 %v2352, %v2411
  %v2413 = vpop.f32.mrf.mxu0
  %v2414 = vpop.f32.mrf.mxu0
  %v2415 = vadd.f32 %v2352, %v2414
  %v2416 = vpop.f32.mrf.mxu0
  %2417 = vmatprep.mubr.bf16.mxu0 0
  %2418 = vmatmul.mubr.bf16.gmra.mxu0 %v2266
  %v2419 = vpop.f32.mrf.mxu0
  %v2420 = vadd.f32 %v2352, %v2419
  %v2421 = vpop.f32.mrf.mxu0
  %v2422 = vpop.f32.mrf.mxu0
  %v2423 = vadd.f32 %v2352, %v2422
  %v2424 = vpop.f32.mrf.mxu0
  %2425 = vmatprep.mubr.bf16.mxu0 0
  %2426 = vmatmul.mubr.bf16.gmra.mxu0 %v2269
  %v2427 = vpop.f32.mrf.mxu0
  %v2428 = vadd.f32 %v2352, %v2427
  %v2429 = vpop.f32.mrf.mxu0
  %v2430 = vpop.f32.mrf.mxu0
  %v2431 = vadd.f32 %v2352, %v2430
  %v2432 = vpop.f32.mrf.mxu0
  %2433 = vmatprep.mubr.bf16.mxu0 0
  %2434 = vmatmul.mubr.bf16.gmra.mxu0 %v2272
  %v2435 = vpop.f32.mrf.mxu0
  %v2436 = vadd.f32 %v2352, %v2435
  %v2437 = vpop.f32.mrf.mxu0
  %v2438 = vpop.f32.mrf.mxu0
  %v2439 = vadd.f32 %v2352, %v2438
  %v2440 = vpop.f32.mrf.mxu0
  %2441 = vdwg.mxu0
  %s2442 = scalar_lea.vmem %s2, 320
  %v2443 = vld [vmem:[%s2442] sm:$0xf]
  %v2444 = vld [vmem:[%s2442 + $0x4] sm:$0xf]
  %v2445 = vld [vmem:[%s2442 + $0x8] sm:$0xf]
  %v2446 = vld [vmem:[%s2442 + $0xc] sm:$0xf]
  %v2447 = vld [vmem:[%s2442 + $0x10] sm:$0xf]
  %v2448 = vld [vmem:[%s2442 + $0x14] sm:$0xf]
  %v2449 = vld [vmem:[%s2442 + $0x18] sm:$0xf]
  %v2450 = vld [vmem:[%s2442 + $0x1c] sm:$0xf]
  %v2451 = vld [vmem:[%s7 + $0x13] sm:$0x1]
  %v2452 = vlaneseq
  %v2453 = vshrl.u32 %v2452, 7
  %v2454 = vsub.s32 0, %v2453
  %v2455 = vrot.slane %v2451, %v2454
  %v2464 = vunpack.c.l.b16 %v2443
  %v2465 = vunpack.c.l.b16 %v2444
  %v2466 = vunpack.c.l.b16 %v2445
  %v2467 = vunpack.c.l.b16 %v2446
  %v2468 = vunpack.c.l.b16 %v2447
  %v2469 = vunpack.c.l.b16 %v2448
  %v2470 = vunpack.c.l.b16 %v2449
  %v2471 = vunpack.c.l.b16 %v2450
  %v2472 = vpack.c.b16 %v2465, %v2464
  %v2473 = vpack.c.b16 %v2467, %v2466
  %v2474 = vpack.c.b16 %v2469, %v2468
  %v2475 = vpack.c.b16 %v2471, %v2470
  %2480 = vmatprep.subr.bf16.mxu0 0
  %2481 = vmatpush1.bf16.msra.mxu0 0
  %2482 = vmatprep.subr.bf16.mxu0 0
  %2483 = vmatpush1.bf16.msra.mxu0 0
  %2484 = vmatprep.subr.bf16.mxu0 0
  %2485 = vmatpush1.bf16.msra.mxu0 0
  %2486 = vmatprep.subr.bf16.mxu0 0
  %2487 = vmatpush1.bf16.msra.mxu0 0
  %2488 = vmatprep.subr.bf16.mxu0 0
  %2489 = vmatpush1.bf16.msra.mxu0 %v2475
  %2490 = vmatprep.subr.bf16.mxu0 0
  %2491 = vmatpush1.bf16.msra.mxu0 %v2474
  %2492 = vmatprep.subr.bf16.mxu0 0
  %2493 = vmatpush1.bf16.msra.mxu0 %v2473
  %2494 = vmatprep.subr.bf16.mxu0 0
  %2495 = vmatpush1.bf16.msra.mxu0 %v2472
  %2496 = vmatprep.subr.bf16.mxu0 0
  %2497 = vmatpush2.bf16.msra.mxu0 0
  %2498 = vmatprep.subr.bf16.mxu0 0
  %2499 = vmatpush2.bf16.msra.mxu0 0
  %2500 = vmatprep.subr.bf16.mxu0 0
  %2501 = vmatpush2.bf16.msra.mxu0 0
  %2502 = vmatprep.subr.bf16.mxu0 0
  %2503 = vmatpush2.bf16.msra.mxu0 0
  %2504 = vmatprep.subr.bf16.mxu0 0
  %2505 = vmatpush2.bf16.msra.mxu0 0
  %2506 = vmatprep.subr.bf16.mxu0 0
  %2507 = vmatpush2.bf16.msra.mxu0 0
  %2508 = vmatprep.subr.bf16.mxu0 0
  %2509 = vmatpush2.bf16.msra.mxu0 0
  %2510 = vmatprep.subr.bf16.mxu0 0
  %2511 = vmatpush2.bf16.msra.mxu0 0
  %2512 = vmatprep.mubr.bf16.mxu0 0
  %2513 = vmatmul.mubr.bf16.gmra.mxu0 %v2263
  %v2514 = vpop.f32.mrf.mxu0
  %v2515 = vadd.f32 %v2455, %v2514
  %v2516 = vpop.f32.mrf.mxu0
  %v2517 = vpop.f32.mrf.mxu0
  %v2518 = vadd.f32 %v2455, %v2517
  %v2519 = vpop.f32.mrf.mxu0
  %2520 = vmatprep.mubr.bf16.mxu0 0
  %2521 = vmatmul.mubr.bf16.gmra.mxu0 %v2266
  %v2522 = vpop.f32.mrf.mxu0
  %v2523 = vadd.f32 %v2455, %v2522
  %v2524 = vpop.f32.mrf.mxu0
  %v2525 = vpop.f32.mrf.mxu0
  %v2526 = vadd.f32 %v2455, %v2525
  %v2527 = vpop.f32.mrf.mxu0
  %2528 = vmatprep.mubr.bf16.mxu0 0
  %2529 = vmatmul.mubr.bf16.gmra.mxu0 %v2269
  %v2530 = vpop.f32.mrf.mxu0
  %v2531 = vadd.f32 %v2455, %v2530
  %v2532 = vpop.f32.mrf.mxu0
  %v2533 = vpop.f32.mrf.mxu0
  %v2534 = vadd.f32 %v2455, %v2533
  %v2535 = vpop.f32.mrf.mxu0
  %2536 = vmatprep.mubr.bf16.mxu0 0
  %2537 = vmatmul.mubr.bf16.gmra.mxu0 %v2272
  %v2538 = vpop.f32.mrf.mxu0
  %v2539 = vadd.f32 %v2455, %v2538
  %v2540 = vpop.f32.mrf.mxu0
  %v2541 = vpop.f32.mrf.mxu0
  %v2542 = vadd.f32 %v2455, %v2541
  %v2543 = vpop.f32.mrf.mxu0
  %2544 = vdwg.mxu0
  %v2545 = vpack.c.bf16 %v2312, %v2309
  %v2546 = vpack.c.bf16 %v2320, %v2317
  %v2547 = vpack.c.bf16 %v2328, %v2325
  %v2548 = vpack.c.bf16 %v2336, %v2333
  %v2549 = vpack.c.bf16 %v2415, %v2412
  %v2550 = vpack.c.bf16 %v2423, %v2420
  %v2551 = vpack.c.bf16 %v2431, %v2428
  %v2552 = vpack.c.bf16 %v2439, %v2436
  %v2554 = vsel %vm526, %v2545, 0
  %v2557 = vsel %vm526, %v2546, 0
  %v2560 = vsel %vm526, %v2547, 0
  %v2563 = vsel %vm526, %v2548, 0
  %v2566 = vsel %vm526, %v2549, 0
  %v2569 = vsel %vm526, %v2550, 0
  %v2572 = vsel %vm526, %v2551, 0
  %v2575 = vsel %vm526, %v2552, 0
  %2577 = vmatprep.subr.bf16.mxu0 0
  %2578 = vmatpush1.bf16.xpose.msra.mxu0 0
  %2579 = vmatprep.subr.bf16.mxu0 0
  %2580 = vmatpush1.bf16.xpose.msra.mxu0 0
  %2581 = vmatprep.subr.bf16.mxu0 0
  %2582 = vmatpush1.bf16.xpose.msra.mxu0 0
  %2583 = vmatprep.subr.bf16.mxu0 0
  %2584 = vmatpush1.bf16.xpose.msra.mxu0 0
  %2585 = vmatprep.subr.bf16.mxu0 0
  %2586 = vmatpush1.bf16.xpose.msra.mxu0 %v2575
  %2587 = vmatprep.subr.bf16.mxu0 0
  %2588 = vmatpush1.bf16.xpose.msra.mxu0 %v2572
  %2589 = vmatprep.subr.bf16.mxu0 0
  %2590 = vmatpush1.bf16.xpose.msra.mxu0 %v2569
  %2591 = vmatprep.subr.bf16.mxu0 0
  %2592 = vmatpush1.bf16.xpose.msra.mxu0 %v2566
  %2593 = vmatprep.subr.bf16.mxu0 0
  %2594 = vmatpush2.bf16.xpose.msra.mxu0 0
  %2595 = vmatprep.subr.bf16.mxu0 0
  %2596 = vmatpush2.bf16.xpose.msra.mxu0 0
  %2597 = vmatprep.subr.bf16.mxu0 0
  %2598 = vmatpush2.bf16.xpose.msra.mxu0 0
  %2599 = vmatprep.subr.bf16.mxu0 0
  %2600 = vmatpush2.bf16.xpose.msra.mxu0 0
  %2601 = vmatprep.subr.bf16.mxu0 0
  %2602 = vmatpush2.bf16.xpose.msra.mxu0 0
  %2603 = vmatprep.subr.bf16.mxu0 0
  %2604 = vmatpush2.bf16.xpose.msra.mxu0 0
  %2605 = vmatprep.subr.bf16.mxu0 0
  %2606 = vmatpush2.bf16.xpose.msra.mxu0 0
  %2607 = vmatprep.subr.bf16.mxu0 0
  %2608 = vmatpush2.bf16.xpose.msra.mxu0 0
  %2609 = vmatprep.mubr.bf16.mxu0 0
  %2610 = vmatmul.mubr.bf16.gmra.mxu0 %v2554
  %v2611 = vpop.f32.mrf.mxu0
  %v2612 = vadd.f32 %v185, %v2611
  %v2613 = vpop.f32.mrf.mxu0
  %v2614 = vpop.f32.mrf.mxu0
  %v2615 = vadd.f32 %v186, %v2614
  %v2616 = vpop.f32.mrf.mxu0
  %2617 = vmatprep.mubr.bf16.mxu0 0
  %2618 = vmatmul.mubr.bf16.gmra.mxu0 %v2557
  %v2619 = vpop.f32.mrf.mxu0
  %v2620 = vadd.f32 %v187, %v2619
  %v2621 = vpop.f32.mrf.mxu0
  %v2622 = vpop.f32.mrf.mxu0
  %v2623 = vadd.f32 %v188, %v2622
  %v2624 = vpop.f32.mrf.mxu0
  %2625 = vmatprep.mubr.bf16.mxu0 0
  %2626 = vmatmul.mubr.bf16.gmra.mxu0 %v2560
  %v2627 = vpop.f32.mrf.mxu0
  %v2628 = vadd.f32 %v189, %v2627
  %v2629 = vpop.f32.mrf.mxu0
  %v2630 = vpop.f32.mrf.mxu0
  %v2631 = vadd.f32 %v190, %v2630
  %v2632 = vpop.f32.mrf.mxu0
  %2633 = vmatprep.mubr.bf16.mxu0 0
  %2634 = vmatmul.mubr.bf16.gmra.mxu0 %v2563
  %v2635 = vpop.f32.mrf.mxu0
  %v2636 = vadd.f32 %v191, %v2635
  %v2637 = vpop.f32.mrf.mxu0
  %v2638 = vpop.f32.mrf.mxu0
  %v2639 = vadd.f32 %v192, %v2638
  %v2640 = vpop.f32.mrf.mxu0
  %2641 = vdwg.mxu0
  %v2642 = vsel %vm38, %v2612, -inf
  %2643 = vmax.xlane.f32.xlu0 %v2642
  %v2644 = vpop.xlane.xlu0 %2643
  %v2645 = vsel %vm38, %v2615, -inf
  %2646 = vmax.xlane.f32.xlu0 %v2645
  %v2647 = vpop.xlane.xlu0 %2646
  %v2648 = vsel %vm38, %v2620, -inf
  %2649 = vmax.xlane.f32.xlu0 %v2648
  %v2650 = vpop.xlane.xlu0 %2649
  %v2651 = vsel %vm38, %v2623, -inf
  %2652 = vmax.xlane.f32.xlu0 %v2651
  %v2653 = vpop.xlane.xlu0 %2652
  %v2654 = vsel %vm38, %v2628, -inf
  %2655 = vmax.xlane.f32.xlu0 %v2654
  %v2656 = vpop.xlane.xlu0 %2655
  %v2657 = vsel %vm38, %v2631, -inf
  %2658 = vmax.xlane.f32.xlu0 %v2657
  %v2659 = vpop.xlane.xlu0 %2658
  %v2660 = vsel %vm38, %v2636, -inf
  %2661 = vmax.xlane.f32.xlu0 %v2660
  %v2662 = vpop.xlane.xlu0 %2661
  %v2663 = vsel %vm38, %v2639, -inf
  %2664 = vmax.xlane.f32.xlu0 %v2663
  %v2665 = vpop.xlane.xlu0 %2664
  %v2666 = vsub.f32 %v2612, %v2644
  %v2667 = vsub.f32 %v2615, %v2647
  %v2668 = vsub.f32 %v2620, %v2650
  %v2669 = vsub.f32 %v2623, %v2653
  %v2670 = vsub.f32 %v2628, %v2656
  %v2671 = vsub.f32 %v2631, %v2659
  %v2672 = vsub.f32 %v2636, %v2662
  %v2673 = vsub.f32 %v2639, %v2665
  %v2674 = vmul.f32 %v2666, 1.442695
  %v2675 = vpow.pop %v2674
  %v2676 = vmul.f32 %v2667, 1.442695
  %v2677 = vpow.pop %v2676
  %v2678 = vmul.f32 %v2668, 1.442695
  %v2679 = vpow.pop %v2678
  %v2680 = vmul.f32 %v2669, 1.442695
  %v2681 = vpow.pop %v2680
  %v2682 = vmul.f32 %v2670, 1.442695
  %v2683 = vpow.pop %v2682
  %v2684 = vmul.f32 %v2671, 1.442695
  %v2685 = vpow.pop %v2684
  %v2686 = vmul.f32 %v2672, 1.442695
  %v2687 = vpow.pop %v2686
  %v2688 = vmul.f32 %v2673, 1.442695
  %v2689 = vpow.pop %v2688
  %v2690 = vsel %vm38, %v2675, 0.0
  %2691 = vadd.xlane.f32.xlu0 %v2690
  %v2692 = vpop.xlane.xlu0 %2691
  %v2693 = vsel %vm38, %v2677, 0.0
  %2694 = vadd.xlane.f32.xlu0 %v2693
  %v2695 = vpop.xlane.xlu0 %2694
  %v2696 = vsel %vm38, %v2679, 0.0
  %2697 = vadd.xlane.f32.xlu0 %v2696
  %v2698 = vpop.xlane.xlu0 %2697
  %v2699 = vsel %vm38, %v2681, 0.0
  %2700 = vadd.xlane.f32.xlu0 %v2699
  %v2701 = vpop.xlane.xlu0 %2700
  %v2702 = vsel %vm38, %v2683, 0.0
  %2703 = vadd.xlane.f32.xlu0 %v2702
  %v2704 = vpop.xlane.xlu0 %2703
  %v2705 = vsel %vm38, %v2685, 0.0
  %2706 = vadd.xlane.f32.xlu0 %v2705
  %v2707 = vpop.xlane.xlu0 %2706
  %v2708 = vsel %vm38, %v2687, 0.0
  %2709 = vadd.xlane.f32.xlu0 %v2708
  %v2710 = vpop.xlane.xlu0 %2709
  %v2711 = vsel %vm38, %v2689, 0.0
  %2712 = vadd.xlane.f32.xlu0 %v2711
  %v2713 = vpop.xlane.xlu0 %2712
  %v2714 = vrcp.pop %v2692
  %v2715 = vrcp.pop %v2695
  %v2716 = vrcp.pop %v2698
  %v2717 = vrcp.pop %v2701
  %v2718 = vrcp.pop %v2704
  %v2719 = vrcp.pop %v2707
  %v2720 = vrcp.pop %v2710
  %v2721 = vrcp.pop %v2713
  %v2722 = vmul.f32 %v2675, %v2714
  %v2723 = vmul.f32 %v2677, %v2715
  %v2724 = vmul.f32 %v2679, %v2716
  %v2725 = vmul.f32 %v2681, %v2717
  %v2726 = vmul.f32 %v2683, %v2718
  %v2727 = vmul.f32 %v2685, %v2719
  %v2728 = vmul.f32 %v2687, %v2720
  %v2729 = vmul.f32 %v2689, %v2721
  %v2730 = vpack.c.bf16 %v2723, %v2722
  %v2731 = vpack.c.bf16 %v2725, %v2724
  %v2732 = vpack.c.bf16 %v2727, %v2726
  %v2733 = vpack.c.bf16 %v2729, %v2728
  %v2734 = vpack.c.bf16 %v2518, %v2515
  %v2735 = vpack.c.bf16 %v2526, %v2523
  %v2736 = vpack.c.bf16 %v2534, %v2531
  %v2737 = vpack.c.bf16 %v2542, %v2539
  %v2739 = vsel %vm38, %v2730, 0
  %v2742 = vsel %vm38, %v2731, 0
  %v2745 = vsel %vm38, %v2732, 0
  %v2748 = vsel %vm38, %v2733, 0
  %2750 = vmatprep.subr.bf16.mxu0 0
  %2751 = vmatpush1.bf16.msra.mxu0 0
  %2752 = vmatprep.subr.bf16.mxu0 0
  %2753 = vmatpush1.bf16.msra.mxu0 0
  %2754 = vmatprep.subr.bf16.mxu0 0
  %2755 = vmatpush1.bf16.msra.mxu0 0
  %2756 = vmatprep.subr.bf16.mxu0 0
  %2757 = vmatpush1.bf16.msra.mxu0 0
  %2758 = vmatprep.subr.bf16.mxu0 0
  %2759 = vmatpush1.bf16.msra.mxu0 %v2737
  %2760 = vmatprep.subr.bf16.mxu0 0
  %2761 = vmatpush1.bf16.msra.mxu0 %v2736
  %2762 = vmatprep.subr.bf16.mxu0 0
  %2763 = vmatpush1.bf16.msra.mxu0 %v2735
  %2764 = vmatprep.subr.bf16.mxu0 0
  %2765 = vmatpush1.bf16.msra.mxu0 %v2734
  %2766 = vmatprep.subr.bf16.mxu0 0
  %2767 = vmatpush2.bf16.msra.mxu0 0
  %2768 = vmatprep.subr.bf16.mxu0 0
  %2769 = vmatpush2.bf16.msra.mxu0 0
  %2770 = vmatprep.subr.bf16.mxu0 0
  %2771 = vmatpush2.bf16.msra.mxu0 0
  %2772 = vmatprep.subr.bf16.mxu0 0
  %2773 = vmatpush2.bf16.msra.mxu0 0
  %2774 = vmatprep.subr.bf16.mxu0 0
  %2775 = vmatpush2.bf16.msra.mxu0 0
  %2776 = vmatprep.subr.bf16.mxu0 0
  %2777 = vmatpush2.bf16.msra.mxu0 0
  %2778 = vmatprep.subr.bf16.mxu0 0
  %2779 = vmatpush2.bf16.msra.mxu0 0
  %2780 = vmatprep.subr.bf16.mxu0 0
  %2781 = vmatpush2.bf16.msra.mxu0 0
  %2782 = vmatprep.mubr.bf16.mxu0 0
  %2783 = vmatmul.mubr.bf16.gmra.mxu0 %v2739
  %v2784 = vpop.f32.mrf.mxu0
  %v2785 = vadd.f32 0.0, %v2784
  %v2786 = vpop.f32.mrf.mxu0
  %v2787 = vpop.f32.mrf.mxu0
  %v2788 = vadd.f32 0.0, %v2787
  %v2789 = vpop.f32.mrf.mxu0
  %2790 = vmatprep.mubr.bf16.mxu0 0
  %2791 = vmatmul.mubr.bf16.gmra.mxu0 %v2742
  %v2792 = vpop.f32.mrf.mxu0
  %v2793 = vadd.f32 0.0, %v2792
  %v2794 = vpop.f32.mrf.mxu0
  %v2795 = vpop.f32.mrf.mxu0
  %v2796 = vadd.f32 0.0, %v2795
  %v2797 = vpop.f32.mrf.mxu0
  %2798 = vmatprep.mubr.bf16.mxu0 0
  %2799 = vmatmul.mubr.bf16.gmra.mxu0 %v2745
  %v2800 = vpop.f32.mrf.mxu0
  %v2801 = vadd.f32 0.0, %v2800
  %v2802 = vpop.f32.mrf.mxu0
  %v2803 = vpop.f32.mrf.mxu0
  %v2804 = vadd.f32 0.0, %v2803
  %v2805 = vpop.f32.mrf.mxu0
  %2806 = vmatprep.mubr.bf16.mxu0 0
  %2807 = vmatmul.mubr.bf16.gmra.mxu0 %v2748
  %v2808 = vpop.f32.mrf.mxu0
  %v2809 = vadd.f32 0.0, %v2808
  %v2810 = vpop.f32.mrf.mxu0
  %v2811 = vpop.f32.mrf.mxu0
  %v2812 = vadd.f32 0.0, %v2811
  %v2813 = vpop.f32.mrf.mxu0
  %2814 = vdwg.mxu0
  %v2815 = vpack.c.bf16 %v2788, %v2785
  %v2816 = vpack.c.bf16 %v2796, %v2793
  %v2817 = vpack.c.bf16 %v2804, %v2801
  %v2818 = vpack.c.bf16 %v2812, %v2809
  %s2819 = scalar_lea.vmem %s3, 32
  %v2820 = vld [vmem:[%s2819] sm:$0xf]
  %v2821 = vld [vmem:[%s2819 + $0x4] sm:$0xf]
  %v2822 = vld [vmem:[%s2819 + $0x8] sm:$0xf]
  %v2823 = vld [vmem:[%s2819 + $0xc] sm:$0xf]
  %v2828 = vunpack.c.l.b16 %v2820
  %v2829 = vunpack.c.l.b16 %v2821
  %v2830 = vunpack.c.l.b16 %v2822
  %v2831 = vunpack.c.l.b16 %v2823
  %v2832 = vpack.c.b16 %v2829, %v2828
  %v2833 = vpack.c.b16 %v2831, %v2830
  %v2837 = vsel %vm526, %v2815, 0
  %v2840 = vsel %vm526, %v2816, 0
  %v2843 = vsel %vm526, %v2817, 0
  %v2846 = vsel %vm526, %v2818, 0
  %2848 = vmatprep.subr.bf16.mxu0 0
  %2849 = vmatpush1.bf16.msra.mxu0 0
  %2850 = vmatprep.subr.bf16.mxu0 0
  %2851 = vmatpush1.bf16.msra.mxu0 0
  %2852 = vmatprep.subr.bf16.mxu0 0
  %2853 = vmatpush1.bf16.msra.mxu0 0
  %2854 = vmatprep.subr.bf16.mxu0 0
  %2855 = vmatpush1.bf16.msra.mxu0 0
  %2856 = vmatprep.subr.bf16.mxu0 0
  %2857 = vmatpush1.bf16.msra.mxu0 0
  %2858 = vmatprep.subr.bf16.mxu0 0
  %2859 = vmatpush1.bf16.msra.mxu0 0
  %2860 = vmatprep.subr.bf16.mxu0 0
  %2861 = vmatpush1.bf16.msra.mxu0 %v2833
  %2862 = vmatprep.subr.bf16.mxu0 0
  %2863 = vmatpush1.bf16.msra.mxu0 %v2832
  %2864 = vmatprep.subr.bf16.mxu0 0
  %2865 = vmatpush2.bf16.msra.mxu0 0
  %2866 = vmatprep.subr.bf16.mxu0 0
  %2867 = vmatpush2.bf16.msra.mxu0 0
  %2868 = vmatprep.subr.bf16.mxu0 0
  %2869 = vmatpush2.bf16.msra.mxu0 0
  %2870 = vmatprep.subr.bf16.mxu0 0
  %2871 = vmatpush2.bf16.msra.mxu0 0
  %2872 = vmatprep.subr.bf16.mxu0 0
  %2873 = vmatpush2.bf16.msra.mxu0 0
  %2874 = vmatprep.subr.bf16.mxu0 0
  %2875 = vmatpush2.bf16.msra.mxu0 0
  %2876 = vmatprep.subr.bf16.mxu0 0
  %2877 = vmatpush2.bf16.msra.mxu0 0
  %2878 = vmatprep.subr.bf16.mxu0 0
  %2879 = vmatpush2.bf16.msra.mxu0 0
  %2880 = vmatprep.mubr.bf16.mxu0 0
  %2881 = vmatmul.mubr.bf16.gmra.mxu0 %v2837
  %v2882 = vpop.f32.mrf.mxu0
  %v2883 = vadd.f32 0.0, %v2882
  %v2884 = vpop.f32.mrf.mxu0
  %v2885 = vpop.f32.mrf.mxu0
  %v2886 = vadd.f32 0.0, %v2885
  %v2887 = vpop.f32.mrf.mxu0
  %2888 = vmatprep.mubr.bf16.mxu0 0
  %2889 = vmatmul.mubr.bf16.gmra.mxu0 %v2840
  %v2890 = vpop.f32.mrf.mxu0
  %v2891 = vadd.f32 0.0, %v2890
  %v2892 = vpop.f32.mrf.mxu0
  %v2893 = vpop.f32.mrf.mxu0
  %v2894 = vadd.f32 0.0, %v2893
  %v2895 = vpop.f32.mrf.mxu0
  %2896 = vmatprep.mubr.bf16.mxu0 0
  %2897 = vmatmul.mubr.bf16.gmra.mxu0 %v2843
  %v2898 = vpop.f32.mrf.mxu0
  %v2899 = vadd.f32 0.0, %v2898
  %v2900 = vpop.f32.mrf.mxu0
  %v2901 = vpop.f32.mrf.mxu0
  %v2902 = vadd.f32 0.0, %v2901
  %v2903 = vpop.f32.mrf.mxu0
  %2904 = vmatprep.mubr.bf16.mxu0 0
  %2905 = vmatmul.mubr.bf16.gmra.mxu0 %v2846
  %v2906 = vpop.f32.mrf.mxu0
  %v2907 = vadd.f32 0.0, %v2906
  %v2908 = vpop.f32.mrf.mxu0
  %v2909 = vpop.f32.mrf.mxu0
  %v2910 = vadd.f32 0.0, %v2909
  %v2911 = vpop.f32.mrf.mxu0
  %2912 = vdwg.mxu0
  %v2913 = vlaneseq
  %v2914 = vshrl.u32 %v2913, 7
  %v2915 = vsub.s32 0, %v2914
  %v2916 = vrot.slane %v2223, %v2915
  %v2917 = vadd.f32 %v2916, %v2883
  %v2918 = vadd.f32 %v2916, %v2886
  %v2919 = vadd.f32 %v2916, %v2891
  %v2920 = vadd.f32 %v2916, %v2894
  %v2921 = vadd.f32 %v2916, %v2899
  %v2922 = vadd.f32 %v2916, %v2902
  %v2923 = vadd.f32 %v2916, %v2907
  %v2924 = vadd.f32 %v2916, %v2910
  %s2925 = scalar_lea.vmem %s2, 224
  %v2926 = vld [vmem:[%s2925] sm:$0xf]
  %v2927 = vld [vmem:[%s2925 + $0x4] sm:$0xf]
  %v2928 = vld [vmem:[%s2925 + $0x8] sm:$0xf]
  %v2929 = vld [vmem:[%s2925 + $0xc] sm:$0xf]
  %v2930 = vld [vmem:[%s2925 + $0x10] sm:$0xf]
  %v2931 = vld [vmem:[%s2925 + $0x14] sm:$0xf]
  %v2932 = vld [vmem:[%s2925 + $0x18] sm:$0xf]
  %v2933 = vld [vmem:[%s2925 + $0x1c] sm:$0xf]
  %v2934 = vld [vmem:[%s7 + $0x10] sm:$0x1]
  %v2935 = vlaneseq
  %v2936 = vshrl.u32 %v2935, 7
  %v2937 = vsub.s32 0, %v2936
  %v2938 = vrot.slane %v2934, %v2937
  %v2947 = vunpack.c.l.b16 %v2926
  %v2948 = vunpack.c.l.b16 %v2927
  %v2949 = vunpack.c.l.b16 %v2928
  %v2950 = vunpack.c.l.b16 %v2929
  %v2951 = vunpack.c.l.b16 %v2930
  %v2952 = vunpack.c.l.b16 %v2931
  %v2953 = vunpack.c.l.b16 %v2932
  %v2954 = vunpack.c.l.b16 %v2933
  %v2955 = vpack.c.b16 %v2948, %v2947
  %v2956 = vpack.c.b16 %v2950, %v2949
  %v2957 = vpack.c.b16 %v2952, %v2951
  %v2958 = vpack.c.b16 %v2954, %v2953
  %2963 = vmatprep.subr.bf16.mxu0 0
  %2964 = vmatpush1.bf16.msra.mxu0 0
  %2965 = vmatprep.subr.bf16.mxu0 0
  %2966 = vmatpush1.bf16.msra.mxu0 0
  %2967 = vmatprep.subr.bf16.mxu0 0
  %2968 = vmatpush1.bf16.msra.mxu0 0
  %2969 = vmatprep.subr.bf16.mxu0 0
  %2970 = vmatpush1.bf16.msra.mxu0 0
  %2971 = vmatprep.subr.bf16.mxu0 0
  %2972 = vmatpush1.bf16.msra.mxu0 %v2958
  %2973 = vmatprep.subr.bf16.mxu0 0
  %2974 = vmatpush1.bf16.msra.mxu0 %v2957
  %2975 = vmatprep.subr.bf16.mxu0 0
  %2976 = vmatpush1.bf16.msra.mxu0 %v2956
  %2977 = vmatprep.subr.bf16.mxu0 0
  %2978 = vmatpush1.bf16.msra.mxu0 %v2955
  %2979 = vmatprep.subr.bf16.mxu0 0
  %2980 = vmatpush2.bf16.msra.mxu0 0
  %2981 = vmatprep.subr.bf16.mxu0 0
  %2982 = vmatpush2.bf16.msra.mxu0 0
  %2983 = vmatprep.subr.bf16.mxu0 0
  %2984 = vmatpush2.bf16.msra.mxu0 0
  %2985 = vmatprep.subr.bf16.mxu0 0
  %2986 = vmatpush2.bf16.msra.mxu0 0
  %2987 = vmatprep.subr.bf16.mxu0 0
  %2988 = vmatpush2.bf16.msra.mxu0 0
  %2989 = vmatprep.subr.bf16.mxu0 0
  %2990 = vmatpush2.bf16.msra.mxu0 0
  %2991 = vmatprep.subr.bf16.mxu0 0
  %2992 = vmatpush2.bf16.msra.mxu0 0
  %2993 = vmatprep.subr.bf16.mxu0 0
  %2994 = vmatpush2.bf16.msra.mxu0 0
  %2995 = vmatprep.mubr.bf16.mxu0 0
  %2996 = vmatmul.mubr.bf16.gmra.mxu0 %v2263
  %v2997 = vpop.f32.mrf.mxu0
  %v2998 = vadd.f32 %v2938, %v2997
  %v2999 = vpop.f32.mrf.mxu0
  %v3000 = vpop.f32.mrf.mxu0
  %v3001 = vadd.f32 %v2938, %v3000
  %v3002 = vpop.f32.mrf.mxu0
  %3003 = vmatprep.mubr.bf16.mxu0 0
  %3004 = vmatmul.mubr.bf16.gmra.mxu0 %v2266
  %v3005 = vpop.f32.mrf.mxu0
  %v3006 = vadd.f32 %v2938, %v3005
  %v3007 = vpop.f32.mrf.mxu0
  %v3008 = vpop.f32.mrf.mxu0
  %v3009 = vadd.f32 %v2938, %v3008
  %v3010 = vpop.f32.mrf.mxu0
  %3011 = vmatprep.mubr.bf16.mxu0 0
  %3012 = vmatmul.mubr.bf16.gmra.mxu0 %v2269
  %v3013 = vpop.f32.mrf.mxu0
  %v3014 = vadd.f32 %v2938, %v3013
  %v3015 = vpop.f32.mrf.mxu0
  %v3016 = vpop.f32.mrf.mxu0
  %v3017 = vadd.f32 %v2938, %v3016
  %v3018 = vpop.f32.mrf.mxu0
  %3019 = vmatprep.mubr.bf16.mxu0 0
  %3020 = vmatmul.mubr.bf16.gmra.mxu0 %v2272
  %v3021 = vpop.f32.mrf.mxu0
  %v3022 = vadd.f32 %v2938, %v3021
  %v3023 = vpop.f32.mrf.mxu0
  %v3024 = vpop.f32.mrf.mxu0
  %v3025 = vadd.f32 %v2938, %v3024
  %v3026 = vpop.f32.mrf.mxu0
  %3027 = vdwg.mxu0
  %s3028 = scalar_lea.vmem %s2, 288
  %v3029 = vld [vmem:[%s3028] sm:$0xf]
  %v3030 = vld [vmem:[%s3028 + $0x4] sm:$0xf]
  %v3031 = vld [vmem:[%s3028 + $0x8] sm:$0xf]
  %v3032 = vld [vmem:[%s3028 + $0xc] sm:$0xf]
  %v3033 = vld [vmem:[%s3028 + $0x10] sm:$0xf]
  %v3034 = vld [vmem:[%s3028 + $0x14] sm:$0xf]
  %v3035 = vld [vmem:[%s3028 + $0x18] sm:$0xf]
  %v3036 = vld [vmem:[%s3028 + $0x1c] sm:$0xf]
  %v3037 = vld [vmem:[%s7 + $0x12] sm:$0x1]
  %v3038 = vlaneseq
  %v3039 = vshrl.u32 %v3038, 7
  %v3040 = vsub.s32 0, %v3039
  %v3041 = vrot.slane %v3037, %v3040
  %v3050 = vunpack.c.l.b16 %v3029
  %v3051 = vunpack.c.l.b16 %v3030
  %v3052 = vunpack.c.l.b16 %v3031
  %v3053 = vunpack.c.l.b16 %v3032
  %v3054 = vunpack.c.l.b16 %v3033
  %v3055 = vunpack.c.l.b16 %v3034
  %v3056 = vunpack.c.l.b16 %v3035
  %v3057 = vunpack.c.l.b16 %v3036
  %v3058 = vpack.c.b16 %v3051, %v3050
  %v3059 = vpack.c.b16 %v3053, %v3052
  %v3060 = vpack.c.b16 %v3055, %v3054
  %v3061 = vpack.c.b16 %v3057, %v3056
  %3066 = vmatprep.subr.bf16.mxu0 0
  %3067 = vmatpush1.bf16.msra.mxu0 0
  %3068 = vmatprep.subr.bf16.mxu0 0
  %3069 = vmatpush1.bf16.msra.mxu0 0
  %3070 = vmatprep.subr.bf16.mxu0 0
  %3071 = vmatpush1.bf16.msra.mxu0 0
  %3072 = vmatprep.subr.bf16.mxu0 0
  %3073 = vmatpush1.bf16.msra.mxu0 0
  %3074 = vmatprep.subr.bf16.mxu0 0
  %3075 = vmatpush1.bf16.msra.mxu0 %v3061
  %3076 = vmatprep.subr.bf16.mxu0 0
  %3077 = vmatpush1.bf16.msra.mxu0 %v3060
  %3078 = vmatprep.subr.bf16.mxu0 0
  %3079 = vmatpush1.bf16.msra.mxu0 %v3059
  %3080 = vmatprep.subr.bf16.mxu0 0
  %3081 = vmatpush1.bf16.msra.mxu0 %v3058
  %3082 = vmatprep.subr.bf16.mxu0 0
  %3083 = vmatpush2.bf16.msra.mxu0 0
  %3084 = vmatprep.subr.bf16.mxu0 0
  %3085 = vmatpush2.bf16.msra.mxu0 0
  %3086 = vmatprep.subr.bf16.mxu0 0
  %3087 = vmatpush2.bf16.msra.mxu0 0
  %3088 = vmatprep.subr.bf16.mxu0 0
  %3089 = vmatpush2.bf16.msra.mxu0 0
  %3090 = vmatprep.subr.bf16.mxu0 0
  %3091 = vmatpush2.bf16.msra.mxu0 0
  %3092 = vmatprep.subr.bf16.mxu0 0
  %3093 = vmatpush2.bf16.msra.mxu0 0
  %3094 = vmatprep.subr.bf16.mxu0 0
  %3095 = vmatpush2.bf16.msra.mxu0 0
  %3096 = vmatprep.subr.bf16.mxu0 0
  %3097 = vmatpush2.bf16.msra.mxu0 0
  %3098 = vmatprep.mubr.bf16.mxu0 0
  %3099 = vmatmul.mubr.bf16.gmra.mxu0 %v2263
  %v3100 = vpop.f32.mrf.mxu0
  %v3101 = vadd.f32 %v3041, %v3100
  %v3102 = vpop.f32.mrf.mxu0
  %v3103 = vpop.f32.mrf.mxu0
  %v3104 = vadd.f32 %v3041, %v3103
  %v3105 = vpop.f32.mrf.mxu0
  %3106 = vmatprep.mubr.bf16.mxu0 0
  %3107 = vmatmul.mubr.bf16.gmra.mxu0 %v2266
  %v3108 = vpop.f32.mrf.mxu0
  %v3109 = vadd.f32 %v3041, %v3108
  %v3110 = vpop.f32.mrf.mxu0
  %v3111 = vpop.f32.mrf.mxu0
  %v3112 = vadd.f32 %v3041, %v3111
  %v3113 = vpop.f32.mrf.mxu0
  %3114 = vmatprep.mubr.bf16.mxu0 0
  %3115 = vmatmul.mubr.bf16.gmra.mxu0 %v2269
  %v3116 = vpop.f32.mrf.mxu0
  %v3117 = vadd.f32 %v3041, %v3116
  %v3118 = vpop.f32.mrf.mxu0
  %v3119 = vpop.f32.mrf.mxu0
  %v3120 = vadd.f32 %v3041, %v3119
  %v3121 = vpop.f32.mrf.mxu0
  %3122 = vmatprep.mubr.bf16.mxu0 0
  %3123 = vmatmul.mubr.bf16.gmra.mxu0 %v2272
  %v3124 = vpop.f32.mrf.mxu0
  %v3125 = vadd.f32 %v3041, %v3124
  %v3126 = vpop.f32.mrf.mxu0
  %v3127 = vpop.f32.mrf.mxu0
  %v3128 = vadd.f32 %v3041, %v3127
  %v3129 = vpop.f32.mrf.mxu0
  %3130 = vdwg.mxu0
  %s3131 = scalar_lea.vmem %s2, 352
  %v3132 = vld [vmem:[%s3131] sm:$0xf]
  %v3133 = vld [vmem:[%s3131 + $0x4] sm:$0xf]
  %v3134 = vld [vmem:[%s3131 + $0x8] sm:$0xf]
  %v3135 = vld [vmem:[%s3131 + $0xc] sm:$0xf]
  %v3136 = vld [vmem:[%s3131 + $0x10] sm:$0xf]
  %v3137 = vld [vmem:[%s3131 + $0x14] sm:$0xf]
  %v3138 = vld [vmem:[%s3131 + $0x18] sm:$0xf]
  %v3139 = vld [vmem:[%s3131 + $0x1c] sm:$0xf]
  %v3140 = vld [vmem:[%s7 + $0x14] sm:$0x1]
  %v3141 = vlaneseq
  %v3142 = vshrl.u32 %v3141, 7
  %v3143 = vsub.s32 0, %v3142
  %v3144 = vrot.slane %v3140, %v3143
  %v3153 = vunpack.c.l.b16 %v3132
  %v3154 = vunpack.c.l.b16 %v3133
  %v3155 = vunpack.c.l.b16 %v3134
  %v3156 = vunpack.c.l.b16 %v3135
  %v3157 = vunpack.c.l.b16 %v3136
  %v3158 = vunpack.c.l.b16 %v3137
  %v3159 = vunpack.c.l.b16 %v3138
  %v3160 = vunpack.c.l.b16 %v3139
  %v3161 = vpack.c.b16 %v3154, %v3153
  %v3162 = vpack.c.b16 %v3156, %v3155
  %v3163 = vpack.c.b16 %v3158, %v3157
  %v3164 = vpack.c.b16 %v3160, %v3159
  %3169 = vmatprep.subr.bf16.mxu0 0
  %3170 = vmatpush1.bf16.msra.mxu0 0
  %3171 = vmatprep.subr.bf16.mxu0 0
  %3172 = vmatpush1.bf16.msra.mxu0 0
  %3173 = vmatprep.subr.bf16.mxu0 0
  %3174 = vmatpush1.bf16.msra.mxu0 0
  %3175 = vmatprep.subr.bf16.mxu0 0
  %3176 = vmatpush1.bf16.msra.mxu0 0
  %3177 = vmatprep.subr.bf16.mxu0 0
  %3178 = vmatpush1.bf16.msra.mxu0 %v3164
  %3179 = vmatprep.subr.bf16.mxu0 0
  %3180 = vmatpush1.bf16.msra.mxu0 %v3163
  %3181 = vmatprep.subr.bf16.mxu0 0
  %3182 = vmatpush1.bf16.msra.mxu0 %v3162
  %3183 = vmatprep.subr.bf16.mxu0 0
  %3184 = vmatpush1.bf16.msra.mxu0 %v3161
  %3185 = vmatprep.subr.bf16.mxu0 0
  %3186 = vmatpush2.bf16.msra.mxu0 0
  %3187 = vmatprep.subr.bf16.mxu0 0
  %3188 = vmatpush2.bf16.msra.mxu0 0
  %3189 = vmatprep.subr.bf16.mxu0 0
  %3190 = vmatpush2.bf16.msra.mxu0 0
  %3191 = vmatprep.subr.bf16.mxu0 0
  %3192 = vmatpush2.bf16.msra.mxu0 0
  %3193 = vmatprep.subr.bf16.mxu0 0
  %3194 = vmatpush2.bf16.msra.mxu0 0
  %3195 = vmatprep.subr.bf16.mxu0 0
  %3196 = vmatpush2.bf16.msra.mxu0 0
  %3197 = vmatprep.subr.bf16.mxu0 0
  %3198 = vmatpush2.bf16.msra.mxu0 0
  %3199 = vmatprep.subr.bf16.mxu0 0
  %3200 = vmatpush2.bf16.msra.mxu0 0
  %3201 = vmatprep.mubr.bf16.mxu0 0
  %3202 = vmatmul.mubr.bf16.gmra.mxu0 %v2263
  %v3203 = vpop.f32.mrf.mxu0
  %v3204 = vadd.f32 %v3144, %v3203
  %v3205 = vpop.f32.mrf.mxu0
  %v3206 = vpop.f32.mrf.mxu0
  %v3207 = vadd.f32 %v3144, %v3206
  %v3208 = vpop.f32.mrf.mxu0
  %3209 = vmatprep.mubr.bf16.mxu0 0
  %3210 = vmatmul.mubr.bf16.gmra.mxu0 %v2266
  %v3211 = vpop.f32.mrf.mxu0
  %v3212 = vadd.f32 %v3144, %v3211
  %v3213 = vpop.f32.mrf.mxu0
  %v3214 = vpop.f32.mrf.mxu0
  %v3215 = vadd.f32 %v3144, %v3214
  %v3216 = vpop.f32.mrf.mxu0
  %3217 = vmatprep.mubr.bf16.mxu0 0
  %3218 = vmatmul.mubr.bf16.gmra.mxu0 %v2269
  %v3219 = vpop.f32.mrf.mxu0
  %v3220 = vadd.f32 %v3144, %v3219
  %v3221 = vpop.f32.mrf.mxu0
  %v3222 = vpop.f32.mrf.mxu0
  %v3223 = vadd.f32 %v3144, %v3222
  %v3224 = vpop.f32.mrf.mxu0
  %3225 = vmatprep.mubr.bf16.mxu0 0
  %3226 = vmatmul.mubr.bf16.gmra.mxu0 %v2272
  %v3227 = vpop.f32.mrf.mxu0
  %v3228 = vadd.f32 %v3144, %v3227
  %v3229 = vpop.f32.mrf.mxu0
  %v3230 = vpop.f32.mrf.mxu0
  %v3231 = vadd.f32 %v3144, %v3230
  %v3232 = vpop.f32.mrf.mxu0
  %3233 = vdwg.mxu0
  %v3234 = vpack.c.bf16 %v3001, %v2998
  %v3235 = vpack.c.bf16 %v3009, %v3006
  %v3236 = vpack.c.bf16 %v3017, %v3014
  %v3237 = vpack.c.bf16 %v3025, %v3022
  %v3238 = vpack.c.bf16 %v3104, %v3101
  %v3239 = vpack.c.bf16 %v3112, %v3109
  %v3240 = vpack.c.bf16 %v3120, %v3117
  %v3241 = vpack.c.bf16 %v3128, %v3125
  %v3243 = vsel %vm526, %v3234, 0
  %v3246 = vsel %vm526, %v3235, 0
  %v3249 = vsel %vm526, %v3236, 0
  %v3252 = vsel %vm526, %v3237, 0
  %v3255 = vsel %vm526, %v3238, 0
  %v3258 = vsel %vm526, %v3239, 0
  %v3261 = vsel %vm526, %v3240, 0
  %v3264 = vsel %vm526, %v3241, 0
  %3266 = vmatprep.subr.bf16.mxu0 0
  %3267 = vmatpush1.bf16.xpose.msra.mxu0 0
  %3268 = vmatprep.subr.bf16.mxu0 0
  %3269 = vmatpush1.bf16.xpose.msra.mxu0 0
  %3270 = vmatprep.subr.bf16.mxu0 0
  %3271 = vmatpush1.bf16.xpose.msra.mxu0 0
  %3272 = vmatprep.subr.bf16.mxu0 0
  %3273 = vmatpush1.bf16.xpose.msra.mxu0 0
  %3274 = vmatprep.subr.bf16.mxu0 0
  %3275 = vmatpush1.bf16.xpose.msra.mxu0 %v3264
  %3276 = vmatprep.subr.bf16.mxu0 0
  %3277 = vmatpush1.bf16.xpose.msra.mxu0 %v3261
  %3278 = vmatprep.subr.bf16.mxu0 0
  %3279 = vmatpush1.bf16.xpose.msra.mxu0 %v3258
  %3280 = vmatprep.subr.bf16.mxu0 0
  %3281 = vmatpush1.bf16.xpose.msra.mxu0 %v3255
  %3282 = vmatprep.subr.bf16.mxu0 0
  %3283 = vmatpush2.bf16.xpose.msra.mxu0 0
  %3284 = vmatprep.subr.bf16.mxu0 0
  %3285 = vmatpush2.bf16.xpose.msra.mxu0 0
  %3286 = vmatprep.subr.bf16.mxu0 0
  %3287 = vmatpush2.bf16.xpose.msra.mxu0 0
  %3288 = vmatprep.subr.bf16.mxu0 0
  %3289 = vmatpush2.bf16.xpose.msra.mxu0 0
  %3290 = vmatprep.subr.bf16.mxu0 0
  %3291 = vmatpush2.bf16.xpose.msra.mxu0 0
  %3292 = vmatprep.subr.bf16.mxu0 0
  %3293 = vmatpush2.bf16.xpose.msra.mxu0 0
  %3294 = vmatprep.subr.bf16.mxu0 0
  %3295 = vmatpush2.bf16.xpose.msra.mxu0 0
  %3296 = vmatprep.subr.bf16.mxu0 0
  %3297 = vmatpush2.bf16.xpose.msra.mxu0 0
  %3298 = vmatprep.mubr.bf16.mxu0 0
  %3299 = vmatmul.mubr.bf16.gmra.mxu0 %v3243
  %v3300 = vpop.f32.mrf.mxu0
  %v3301 = vadd.f32 %v185, %v3300
  %v3302 = vpop.f32.mrf.mxu0
  %v3303 = vpop.f32.mrf.mxu0
  %v3304 = vadd.f32 %v186, %v3303
  %v3305 = vpop.f32.mrf.mxu0
  %3306 = vmatprep.mubr.bf16.mxu0 0
  %3307 = vmatmul.mubr.bf16.gmra.mxu0 %v3246
  %v3308 = vpop.f32.mrf.mxu0
  %v3309 = vadd.f32 %v187, %v3308
  %v3310 = vpop.f32.mrf.mxu0
  %v3311 = vpop.f32.mrf.mxu0
  %v3312 = vadd.f32 %v188, %v3311
  %v3313 = vpop.f32.mrf.mxu0
  %3314 = vmatprep.mubr.bf16.mxu0 0
  %3315 = vmatmul.mubr.bf16.gmra.mxu0 %v3249
  %v3316 = vpop.f32.mrf.mxu0
  %v3317 = vadd.f32 %v189, %v3316
  %v3318 = vpop.f32.mrf.mxu0
  %v3319 = vpop.f32.mrf.mxu0
  %v3320 = vadd.f32 %v190, %v3319
  %v3321 = vpop.f32.mrf.mxu0
  %3322 = vmatprep.mubr.bf16.mxu0 0
  %3323 = vmatmul.mubr.bf16.gmra.mxu0 %v3252
  %v3324 = vpop.f32.mrf.mxu0
  %v3325 = vadd.f32 %v191, %v3324
  %v3326 = vpop.f32.mrf.mxu0
  %v3327 = vpop.f32.mrf.mxu0
  %v3328 = vadd.f32 %v192, %v3327
  %v3329 = vpop.f32.mrf.mxu0
  %3330 = vdwg.mxu0
  %v3331 = vsel %vm38, %v3301, -inf
  %3332 = vmax.xlane.f32.xlu0 %v3331
  %v3333 = vpop.xlane.xlu0 %3332
  %v3334 = vsel %vm38, %v3304, -inf
  %3335 = vmax.xlane.f32.xlu0 %v3334
  %v3336 = vpop.xlane.xlu0 %3335
  %v3337 = vsel %vm38, %v3309, -inf
  %3338 = vmax.xlane.f32.xlu0 %v3337
  %v3339 = vpop.xlane.xlu0 %3338
  %v3340 = vsel %vm38, %v3312, -inf
  %3341 = vmax.xlane.f32.xlu0 %v3340
  %v3342 = vpop.xlane.xlu0 %3341
  %v3343 = vsel %vm38, %v3317, -inf
  %3344 = vmax.xlane.f32.xlu0 %v3343
  %v3345 = vpop.xlane.xlu0 %3344
  %v3346 = vsel %vm38, %v3320, -inf
  %3347 = vmax.xlane.f32.xlu0 %v3346
  %v3348 = vpop.xlane.xlu0 %3347
  %v3349 = vsel %vm38, %v3325, -inf
  %3350 = vmax.xlane.f32.xlu0 %v3349
  %v3351 = vpop.xlane.xlu0 %3350
  %v3352 = vsel %vm38, %v3328, -inf
  %3353 = vmax.xlane.f32.xlu0 %v3352
  %v3354 = vpop.xlane.xlu0 %3353
  %v3355 = vsub.f32 %v3301, %v3333
  %v3356 = vsub.f32 %v3304, %v3336
  %v3357 = vsub.f32 %v3309, %v3339
  %v3358 = vsub.f32 %v3312, %v3342
  %v3359 = vsub.f32 %v3317, %v3345
  %v3360 = vsub.f32 %v3320, %v3348
  %v3361 = vsub.f32 %v3325, %v3351
  %v3362 = vsub.f32 %v3328, %v3354
  %v3363 = vmul.f32 %v3355, 1.442695
  %v3364 = vpow.pop %v3363
  %v3365 = vmul.f32 %v3356, 1.442695
  %v3366 = vpow.pop %v3365
  %v3367 = vmul.f32 %v3357, 1.442695
  %v3368 = vpow.pop %v3367
  %v3369 = vmul.f32 %v3358, 1.442695
  %v3370 = vpow.pop %v3369
  %v3371 = vmul.f32 %v3359, 1.442695
  %v3372 = vpow.pop %v3371
  %v3373 = vmul.f32 %v3360, 1.442695
  %v3374 = vpow.pop %v3373
  %v3375 = vmul.f32 %v3361, 1.442695
  %v3376 = vpow.pop %v3375
  %v3377 = vmul.f32 %v3362, 1.442695
  %v3378 = vpow.pop %v3377
  %v3379 = vsel %vm38, %v3364, 0.0
  %3380 = vadd.xlane.f32.xlu0 %v3379
  %v3381 = vpop.xlane.xlu0 %3380
  %v3382 = vsel %vm38, %v3366, 0.0
  %3383 = vadd.xlane.f32.xlu0 %v3382
  %v3384 = vpop.xlane.xlu0 %3383
  %v3385 = vsel %vm38, %v3368, 0.0
  %3386 = vadd.xlane.f32.xlu0 %v3385
  %v3387 = vpop.xlane.xlu0 %3386
  %v3388 = vsel %vm38, %v3370, 0.0
  %3389 = vadd.xlane.f32.xlu0 %v3388
  %v3390 = vpop.xlane.xlu0 %3389
  %v3391 = vsel %vm38, %v3372, 0.0
  %3392 = vadd.xlane.f32.xlu0 %v3391
  %v3393 = vpop.xlane.xlu0 %3392
  %v3394 = vsel %vm38, %v3374, 0.0
  %3395 = vadd.xlane.f32.xlu0 %v3394
  %v3396 = vpop.xlane.xlu0 %3395
  %v3397 = vsel %vm38, %v3376, 0.0
  %3398 = vadd.xlane.f32.xlu0 %v3397
  %v3399 = vpop.xlane.xlu0 %3398
  %v3400 = vsel %vm38, %v3378, 0.0
  %3401 = vadd.xlane.f32.xlu0 %v3400
  %v3402 = vpop.xlane.xlu0 %3401
  %v3403 = vrcp.pop %v3381
  %v3404 = vrcp.pop %v3384
  %v3405 = vrcp.pop %v3387
  %v3406 = vrcp.pop %v3390
  %v3407 = vrcp.pop %v3393
  %v3408 = vrcp.pop %v3396
  %v3409 = vrcp.pop %v3399
  %v3410 = vrcp.pop %v3402
  %v3411 = vmul.f32 %v3364, %v3403
  %v3412 = vmul.f32 %v3366, %v3404
  %v3413 = vmul.f32 %v3368, %v3405
  %v3414 = vmul.f32 %v3370, %v3406
  %v3415 = vmul.f32 %v3372, %v3407
  %v3416 = vmul.f32 %v3374, %v3408
  %v3417 = vmul.f32 %v3376, %v3409
  %v3418 = vmul.f32 %v3378, %v3410
  %v3419 = vpack.c.bf16 %v3412, %v3411
  %v3420 = vpack.c.bf16 %v3414, %v3413
  %v3421 = vpack.c.bf16 %v3416, %v3415
  %v3422 = vpack.c.bf16 %v3418, %v3417
  %v3423 = vpack.c.bf16 %v3207, %v3204
  %v3424 = vpack.c.bf16 %v3215, %v3212
  %v3425 = vpack.c.bf16 %v3223, %v3220
  %v3426 = vpack.c.bf16 %v3231, %v3228
  %v3428 = vsel %vm38, %v3419, 0
  %v3431 = vsel %vm38, %v3420, 0
  %v3434 = vsel %vm38, %v3421, 0
  %v3437 = vsel %vm38, %v3422, 0
  %3439 = vmatprep.subr.bf16.mxu0 0
  %3440 = vmatpush1.bf16.msra.mxu0 0
  %3441 = vmatprep.subr.bf16.mxu0 0
  %3442 = vmatpush1.bf16.msra.mxu0 0
  %3443 = vmatprep.subr.bf16.mxu0 0
  %3444 = vmatpush1.bf16.msra.mxu0 0
  %3445 = vmatprep.subr.bf16.mxu0 0
  %3446 = vmatpush1.bf16.msra.mxu0 0
  %3447 = vmatprep.subr.bf16.mxu0 0
  %3448 = vmatpush1.bf16.msra.mxu0 %v3426
  %3449 = vmatprep.subr.bf16.mxu0 0
  %3450 = vmatpush1.bf16.msra.mxu0 %v3425
  %3451 = vmatprep.subr.bf16.mxu0 0
  %3452 = vmatpush1.bf16.msra.mxu0 %v3424
  %3453 = vmatprep.subr.bf16.mxu0 0
  %3454 = vmatpush1.bf16.msra.mxu0 %v3423
  %3455 = vmatprep.subr.bf16.mxu0 0
  %3456 = vmatpush2.bf16.msra.mxu0 0
  %3457 = vmatprep.subr.bf16.mxu0 0
  %3458 = vmatpush2.bf16.msra.mxu0 0
  %3459 = vmatprep.subr.bf16.mxu0 0
  %3460 = vmatpush2.bf16.msra.mxu0 0
  %3461 = vmatprep.subr.bf16.mxu0 0
  %3462 = vmatpush2.bf16.msra.mxu0 0
  %3463 = vmatprep.subr.bf16.mxu0 0
  %3464 = vmatpush2.bf16.msra.mxu0 0
  %3465 = vmatprep.subr.bf16.mxu0 0
  %3466 = vmatpush2.bf16.msra.mxu0 0
  %3467 = vmatprep.subr.bf16.mxu0 0
  %3468 = vmatpush2.bf16.msra.mxu0 0
  %3469 = vmatprep.subr.bf16.mxu0 0
  %3470 = vmatpush2.bf16.msra.mxu0 0
  %3471 = vmatprep.mubr.bf16.mxu0 0
  %3472 = vmatmul.mubr.bf16.gmra.mxu0 %v3428
  %v3473 = vpop.f32.mrf.mxu0
  %v3474 = vadd.f32 0.0, %v3473
  %v3475 = vpop.f32.mrf.mxu0
  %v3476 = vpop.f32.mrf.mxu0
  %v3477 = vadd.f32 0.0, %v3476
  %v3478 = vpop.f32.mrf.mxu0
  %3479 = vmatprep.mubr.bf16.mxu0 0
  %3480 = vmatmul.mubr.bf16.gmra.mxu0 %v3431
  %v3481 = vpop.f32.mrf.mxu0
  %v3482 = vadd.f32 0.0, %v3481
  %v3483 = vpop.f32.mrf.mxu0
  %v3484 = vpop.f32.mrf.mxu0
  %v3485 = vadd.f32 0.0, %v3484
  %v3486 = vpop.f32.mrf.mxu0
  %3487 = vmatprep.mubr.bf16.mxu0 0
  %3488 = vmatmul.mubr.bf16.gmra.mxu0 %v3434
  %v3489 = vpop.f32.mrf.mxu0
  %v3490 = vadd.f32 0.0, %v3489
  %v3491 = vpop.f32.mrf.mxu0
  %v3492 = vpop.f32.mrf.mxu0
  %v3493 = vadd.f32 0.0, %v3492
  %v3494 = vpop.f32.mrf.mxu0
  %3495 = vmatprep.mubr.bf16.mxu0 0
  %3496 = vmatmul.mubr.bf16.gmra.mxu0 %v3437
  %v3497 = vpop.f32.mrf.mxu0
  %v3498 = vadd.f32 0.0, %v3497
  %v3499 = vpop.f32.mrf.mxu0
  %v3500 = vpop.f32.mrf.mxu0
  %v3501 = vadd.f32 0.0, %v3500
  %v3502 = vpop.f32.mrf.mxu0
  %3503 = vdwg.mxu0
  %v3504 = vpack.c.bf16 %v3477, %v3474
  %v3505 = vpack.c.bf16 %v3485, %v3482
  %v3506 = vpack.c.bf16 %v3493, %v3490
  %v3507 = vpack.c.bf16 %v3501, %v3498
  %s3508 = scalar_lea.vmem %s3, 48
  %v3509 = vld [vmem:[%s3508] sm:$0xf]
  %v3510 = vld [vmem:[%s3508 + $0x4] sm:$0xf]
  %v3511 = vld [vmem:[%s3508 + $0x8] sm:$0xf]
  %v3512 = vld [vmem:[%s3508 + $0xc] sm:$0xf]
  %v3517 = vunpack.c.l.b16 %v3509
  %v3518 = vunpack.c.l.b16 %v3510
  %v3519 = vunpack.c.l.b16 %v3511
  %v3520 = vunpack.c.l.b16 %v3512
  %v3521 = vpack.c.b16 %v3518, %v3517
  %v3522 = vpack.c.b16 %v3520, %v3519
  %v3526 = vsel %vm526, %v3504, 0
  %v3529 = vsel %vm526, %v3505, 0
  %v3532 = vsel %vm526, %v3506, 0
  %v3535 = vsel %vm526, %v3507, 0
  %3537 = vmatprep.subr.bf16.mxu0 0
  %3538 = vmatpush1.bf16.msra.mxu0 0
  %3539 = vmatprep.subr.bf16.mxu0 0
  %3540 = vmatpush1.bf16.msra.mxu0 0
  %3541 = vmatprep.subr.bf16.mxu0 0
  %3542 = vmatpush1.bf16.msra.mxu0 0
  %3543 = vmatprep.subr.bf16.mxu0 0
  %3544 = vmatpush1.bf16.msra.mxu0 0
  %3545 = vmatprep.subr.bf16.mxu0 0
  %3546 = vmatpush1.bf16.msra.mxu0 0
  %3547 = vmatprep.subr.bf16.mxu0 0
  %3548 = vmatpush1.bf16.msra.mxu0 0
  %3549 = vmatprep.subr.bf16.mxu0 0
  %3550 = vmatpush1.bf16.msra.mxu0 %v3522
  %3551 = vmatprep.subr.bf16.mxu0 0
  %3552 = vmatpush1.bf16.msra.mxu0 %v3521
  %3553 = vmatprep.subr.bf16.mxu0 0
  %3554 = vmatpush2.bf16.msra.mxu0 0
  %3555 = vmatprep.subr.bf16.mxu0 0
  %3556 = vmatpush2.bf16.msra.mxu0 0
  %3557 = vmatprep.subr.bf16.mxu0 0
  %3558 = vmatpush2.bf16.msra.mxu0 0
  %3559 = vmatprep.subr.bf16.mxu0 0
  %3560 = vmatpush2.bf16.msra.mxu0 0
  %3561 = vmatprep.subr.bf16.mxu0 0
  %3562 = vmatpush2.bf16.msra.mxu0 0
  %3563 = vmatprep.subr.bf16.mxu0 0
  %3564 = vmatpush2.bf16.msra.mxu0 0
  %3565 = vmatprep.subr.bf16.mxu0 0
  %3566 = vmatpush2.bf16.msra.mxu0 0
  %3567 = vmatprep.subr.bf16.mxu0 0
  %3568 = vmatpush2.bf16.msra.mxu0 0
  %3569 = vmatprep.mubr.bf16.mxu0 0
  %3570 = vmatmul.mubr.bf16.gmra.mxu0 %v3526
  %v3571 = vpop.f32.mrf.mxu0
  %v3572 = vadd.f32 0.0, %v3571
  %v3573 = vpop.f32.mrf.mxu0
  %v3574 = vpop.f32.mrf.mxu0
  %v3575 = vadd.f32 0.0, %v3574
  %v3576 = vpop.f32.mrf.mxu0
  %3577 = vmatprep.mubr.bf16.mxu0 0
  %3578 = vmatmul.mubr.bf16.gmra.mxu0 %v3529
  %v3579 = vpop.f32.mrf.mxu0
  %v3580 = vadd.f32 0.0, %v3579
  %v3581 = vpop.f32.mrf.mxu0
  %v3582 = vpop.f32.mrf.mxu0
  %v3583 = vadd.f32 0.0, %v3582
  %v3584 = vpop.f32.mrf.mxu0
  %3585 = vmatprep.mubr.bf16.mxu0 0
  %3586 = vmatmul.mubr.bf16.gmra.mxu0 %v3532
  %v3587 = vpop.f32.mrf.mxu0
  %v3588 = vadd.f32 0.0, %v3587
  %v3589 = vpop.f32.mrf.mxu0
  %v3590 = vpop.f32.mrf.mxu0
  %v3591 = vadd.f32 0.0, %v3590
  %v3592 = vpop.f32.mrf.mxu0
  %3593 = vmatprep.mubr.bf16.mxu0 0
  %3594 = vmatmul.mubr.bf16.gmra.mxu0 %v3535
  %v3595 = vpop.f32.mrf.mxu0
  %v3596 = vadd.f32 0.0, %v3595
  %v3597 = vpop.f32.mrf.mxu0
  %v3598 = vpop.f32.mrf.mxu0
  %v3599 = vadd.f32 0.0, %v3598
  %v3600 = vpop.f32.mrf.mxu0
  %3601 = vdwg.mxu0
  %v3602 = vadd.f32 %v2917, %v3572
  %v3603 = vadd.f32 %v2918, %v3575
  %v3604 = vadd.f32 %v2919, %v3580
  %v3605 = vadd.f32 %v2920, %v3583
  %v3606 = vadd.f32 %v2921, %v3588
  %v3607 = vadd.f32 %v2922, %v3591
  %v3608 = vadd.f32 %v2923, %v3596
  %v3609 = vadd.f32 %v2924, %v3599
  %v3610 = vadd.f32 %v2211, %v3602
  %v3611 = vadd.f32 %v2212, %v3603
  %v3612 = vadd.f32 %v2213, %v3604
  %v3613 = vadd.f32 %v2214, %v3605
  %v3614 = vadd.f32 %v2215, %v3606
  %v3615 = vadd.f32 %v2216, %v3607
  %v3616 = vadd.f32 %v2217, %v3608
  %v3617 = vadd.f32 %v2218, %v3609
  %v3618 = vsel %vm38, %v3610, 0.0
  %3619 = vadd.xlane.f32.xlu0 %v3618
  %v3620 = vpop.xlane.xlu0 %3619
  %v3621 = vsel %vm38, %v3611, 0.0
  %3622 = vadd.xlane.f32.xlu0 %v3621
  %v3623 = vpop.xlane.xlu0 %3622
  %v3624 = vsel %vm38, %v3612, 0.0
  %3625 = vadd.xlane.f32.xlu0 %v3624
  %v3626 = vpop.xlane.xlu0 %3625
  %v3627 = vsel %vm38, %v3613, 0.0
  %3628 = vadd.xlane.f32.xlu0 %v3627
  %v3629 = vpop.xlane.xlu0 %3628
  %v3630 = vsel %vm38, %v3614, 0.0
  %3631 = vadd.xlane.f32.xlu0 %v3630
  %v3632 = vpop.xlane.xlu0 %3631
  %v3633 = vsel %vm38, %v3615, 0.0
  %3634 = vadd.xlane.f32.xlu0 %v3633
  %v3635 = vpop.xlane.xlu0 %3634
  %v3636 = vsel %vm38, %v3616, 0.0
  %3637 = vadd.xlane.f32.xlu0 %v3636
  %v3638 = vpop.xlane.xlu0 %3637
  %v3639 = vsel %vm38, %v3617, 0.0
  %3640 = vadd.xlane.f32.xlu0 %v3639
  %v3641 = vpop.xlane.xlu0 %3640
  %v3642 = vmul.f32 %v3610, %v3610
  %v3643 = vmul.f32 %v3611, %v3611
  %v3644 = vmul.f32 %v3612, %v3612
  %v3645 = vmul.f32 %v3613, %v3613
  %v3646 = vmul.f32 %v3614, %v3614
  %v3647 = vmul.f32 %v3615, %v3615
  %v3648 = vmul.f32 %v3616, %v3616
  %v3649 = vmul.f32 %v3617, %v3617
  %v3650 = vsel %vm38, %v3642, 0.0
  %3651 = vadd.xlane.f32.xlu0 %v3650
  %v3652 = vpop.xlane.xlu0 %3651
  %v3653 = vsel %vm38, %v3643, 0.0
  %3654 = vadd.xlane.f32.xlu0 %v3653
  %v3655 = vpop.xlane.xlu0 %3654
  %v3656 = vsel %vm38, %v3644, 0.0
  %3657 = vadd.xlane.f32.xlu0 %v3656
  %v3658 = vpop.xlane.xlu0 %3657
  %v3659 = vsel %vm38, %v3645, 0.0
  %3660 = vadd.xlane.f32.xlu0 %v3659
  %v3661 = vpop.xlane.xlu0 %3660
  %v3662 = vsel %vm38, %v3646, 0.0
  %3663 = vadd.xlane.f32.xlu0 %v3662
  %v3664 = vpop.xlane.xlu0 %3663
  %v3665 = vsel %vm38, %v3647, 0.0
  %3666 = vadd.xlane.f32.xlu0 %v3665
  %v3667 = vpop.xlane.xlu0 %3666
  %v3668 = vsel %vm38, %v3648, 0.0
  %3669 = vadd.xlane.f32.xlu0 %v3668
  %v3670 = vpop.xlane.xlu0 %3669
  %v3671 = vsel %vm38, %v3649, 0.0
  %3672 = vadd.xlane.f32.xlu0 %v3671
  %v3673 = vpop.xlane.xlu0 %3672
  %v3674 = vmul.f32 %v3620, 0.015625
  %v3675 = vmul.f32 %v3623, 0.015625
  %v3676 = vmul.f32 %v3626, 0.015625
  %v3677 = vmul.f32 %v3629, 0.015625
  %v3678 = vmul.f32 %v3632, 0.015625
  %v3679 = vmul.f32 %v3635, 0.015625
  %v3680 = vmul.f32 %v3638, 0.015625
  %v3681 = vmul.f32 %v3641, 0.015625
  %v3682 = vmul.f32 %v3652, 0.015625
  %v3683 = vmul.f32 %v3655, 0.015625
  %v3684 = vmul.f32 %v3658, 0.015625
  %v3685 = vmul.f32 %v3661, 0.015625
  %v3686 = vmul.f32 %v3664, 0.015625
  %v3687 = vmul.f32 %v3667, 0.015625
  %v3688 = vmul.f32 %v3670, 0.015625
  %v3689 = vmul.f32 %v3673, 0.015625
  %v3690 = vmul.f32 %v3674, %v3674
  %v3691 = vmul.f32 %v3675, %v3675
  %v3692 = vmul.f32 %v3676, %v3676
  %v3693 = vmul.f32 %v3677, %v3677
  %v3694 = vmul.f32 %v3678, %v3678
  %v3695 = vmul.f32 %v3679, %v3679
  %v3696 = vmul.f32 %v3680, %v3680
  %v3697 = vmul.f32 %v3681, %v3681
  %v3698 = vsub.f32 %v3682, %v3690
  %v3699 = vsub.f32 %v3683, %v3691
  %v3700 = vsub.f32 %v3684, %v3692
  %v3701 = vsub.f32 %v3685, %v3693
  %v3702 = vsub.f32 %v3686, %v3694
  %v3703 = vsub.f32 %v3687, %v3695
  %v3704 = vsub.f32 %v3688, %v3696
  %v3705 = vsub.f32 %v3689, %v3697
  %v3706 = vsub.f32 %v3610, %v3674
  %v3707 = vsub.f32 %v3611, %v3675
  %v3708 = vsub.f32 %v3612, %v3676
  %v3709 = vsub.f32 %v3613, %v3677
  %v3710 = vsub.f32 %v3614, %v3678
  %v3711 = vsub.f32 %v3615, %v3679
  %v3712 = vsub.f32 %v3616, %v3680
  %v3713 = vsub.f32 %v3617, %v3681
  %v3714 = vadd.f32 %v3698, 1e-12
  %v3715 = vadd.f32 %v3699, 1e-12
  %v3716 = vadd.f32 %v3700, 1e-12
  %v3717 = vadd.f32 %v3701, 1e-12
  %v3718 = vadd.f32 %v3702, 1e-12
  %v3719 = vadd.f32 %v3703, 1e-12
  %v3720 = vadd.f32 %v3704, 1e-12
  %v3721 = vadd.f32 %v3705, 1e-12
  %v3722 = vrsqrt.pop %v3714
  %v3723 = vrsqrt.pop %v3715
  %v3724 = vrsqrt.pop %v3716
  %v3725 = vrsqrt.pop %v3717
  %v3726 = vrsqrt.pop %v3718
  %v3727 = vrsqrt.pop %v3719
  %v3728 = vrsqrt.pop %v3720
  %v3729 = vrsqrt.pop %v3721
  %v3730 = vmul.f32 %v3706, %v3722
  %v3731 = vmul.f32 %v3707, %v3723
  %v3732 = vmul.f32 %v3708, %v3724
  %v3733 = vmul.f32 %v3709, %v3725
  %v3734 = vmul.f32 %v3710, %v3726
  %v3735 = vmul.f32 %v3711, %v3727
  %v3736 = vmul.f32 %v3712, %v3728
  %v3737 = vmul.f32 %v3713, %v3729
  %v3738 = vld [vmem:[%s7 + $0x16] sm:$0x1]
  %v3739 = vlaneseq
  %v3740 = vshrl.u32 %v3739, 7
  %v3741 = vsub.s32 0, %v3740
  %v3742 = vrot.slane %v3738, %v3741
  %v3743 = vmul.f32 %v3730, %v3742
  %v3744 = vmul.f32 %v3731, %v3742
  %v3745 = vmul.f32 %v3732, %v3742
  %v3746 = vmul.f32 %v3733, %v3742
  %v3747 = vmul.f32 %v3734, %v3742
  %v3748 = vmul.f32 %v3735, %v3742
  %v3749 = vmul.f32 %v3736, %v3742
  %v3750 = vmul.f32 %v3737, %v3742
  %v3751 = vld [vmem:[%s7 + $0x17] sm:$0x1]
  %v3752 = vlaneseq
  %v3753 = vshrl.u32 %v3752, 7
  %v3754 = vsub.s32 0, %v3753
  %v3755 = vrot.slane %v3751, %v3754
  %v3756 = vadd.f32 %v3743, %v3755
  %v3757 = vadd.f32 %v3744, %v3755
  %v3758 = vadd.f32 %v3745, %v3755
  %v3759 = vadd.f32 %v3746, %v3755
  %v3760 = vadd.f32 %v3747, %v3755
  %v3761 = vadd.f32 %v3748, %v3755
  %v3762 = vadd.f32 %v3749, %v3755
  %v3763 = vadd.f32 %v3750, %v3755
  %v3764 = vpack.c.bf16 %v3757, %v3756
  %v3765 = vpack.c.bf16 %v3759, %v3758
  %v3766 = vpack.c.bf16 %v3761, %v3760
  %v3767 = vpack.c.bf16 %v3763, %v3762
  %s3768 = scalar_lea.vmem %s4, 32
  %v3769 = vld [vmem:[%s3768] sm:$0xf]
  %v3770 = vld [vmem:[%s3768 + $0x4] sm:$0xf]
  %v3771 = vld [vmem:[%s3768 + $0x8] sm:$0xf]
  %v3772 = vld [vmem:[%s3768 + $0xc] sm:$0xf]
  %v3773 = vld [vmem:[%s3768 + $0x10] sm:$0xf]
  %v3774 = vld [vmem:[%s3768 + $0x14] sm:$0xf]
  %v3775 = vld [vmem:[%s3768 + $0x18] sm:$0xf]
  %v3776 = vld [vmem:[%s3768 + $0x1c] sm:$0xf]
  %v3777 = vld [vmem:[%s7 + $0x18] sm:$0x1]
  %v3778 = vlaneseq
  %v3779 = vshrl.u32 %v3778, 7
  %v3780 = vsub.s32 0, %v3779
  %v3781 = vrot.slane %v3777, %v3780
  %v3790 = vunpack.c.l.b16 %v3769
  %v3791 = vunpack.c.l.b16 %v3770
  %v3792 = vunpack.c.l.b16 %v3771
  %v3793 = vunpack.c.l.b16 %v3772
  %v3794 = vunpack.c.l.b16 %v3773
  %v3795 = vunpack.c.l.b16 %v3774
  %v3796 = vunpack.c.l.b16 %v3775
  %v3797 = vunpack.c.l.b16 %v3776
  %v3798 = vpack.c.b16 %v3791, %v3790
  %v3799 = vpack.c.b16 %v3793, %v3792
  %v3800 = vpack.c.b16 %v3795, %v3794
  %v3801 = vpack.c.b16 %v3797, %v3796
  %v3807 = vsel %vm38, %v3764, 0
  %v3810 = vsel %vm38, %v3765, 0
  %v3813 = vsel %vm38, %v3766, 0
  %v3816 = vsel %vm38, %v3767, 0
  %3818 = vmatprep.subr.bf16.mxu0 0
  %3819 = vmatpush1.bf16.msra.mxu0 0
  %3820 = vmatprep.subr.bf16.mxu0 0
  %3821 = vmatpush1.bf16.msra.mxu0 0
  %3822 = vmatprep.subr.bf16.mxu0 0
  %3823 = vmatpush1.bf16.msra.mxu0 0
  %3824 = vmatprep.subr.bf16.mxu0 0
  %3825 = vmatpush1.bf16.msra.mxu0 0
  %3826 = vmatprep.subr.bf16.mxu0 0
  %3827 = vmatpush1.bf16.msra.mxu0 %v3801
  %3828 = vmatprep.subr.bf16.mxu0 0
  %3829 = vmatpush1.bf16.msra.mxu0 %v3800
  %3830 = vmatprep.subr.bf16.mxu0 0
  %3831 = vmatpush1.bf16.msra.mxu0 %v3799
  %3832 = vmatprep.subr.bf16.mxu0 0
  %3833 = vmatpush1.bf16.msra.mxu0 %v3798
  %3834 = vmatprep.subr.bf16.mxu0 0
  %3835 = vmatpush2.bf16.msra.mxu0 0
  %3836 = vmatprep.subr.bf16.mxu0 0
  %3837 = vmatpush2.bf16.msra.mxu0 0
  %3838 = vmatprep.subr.bf16.mxu0 0
  %3839 = vmatpush2.bf16.msra.mxu0 0
  %3840 = vmatprep.subr.bf16.mxu0 0
  %3841 = vmatpush2.bf16.msra.mxu0 0
  %3842 = vmatprep.subr.bf16.mxu0 0
  %3843 = vmatpush2.bf16.msra.mxu0 0
  %3844 = vmatprep.subr.bf16.mxu0 0
  %3845 = vmatpush2.bf16.msra.mxu0 0
  %3846 = vmatprep.subr.bf16.mxu0 0
  %3847 = vmatpush2.bf16.msra.mxu0 0
  %3848 = vmatprep.subr.bf16.mxu0 0
  %3849 = vmatpush2.bf16.msra.mxu0 0
  %3850 = vmatprep.mubr.bf16.mxu0 0
  %3851 = vmatmul.mubr.bf16.gmra.mxu0 %v3807
  %v3852 = vpop.f32.mrf.mxu0
  %v3853 = vadd.f32 %v3781, %v3852
  %v3854 = vpop.f32.mrf.mxu0
  %v3855 = vpop.f32.mrf.mxu0
  %v3856 = vadd.f32 %v3781, %v3855
  %v3857 = vpop.f32.mrf.mxu0
  %3858 = vmatprep.mubr.bf16.mxu0 0
  %3859 = vmatmul.mubr.bf16.gmra.mxu0 %v3810
  %v3860 = vpop.f32.mrf.mxu0
  %v3861 = vadd.f32 %v3781, %v3860
  %v3862 = vpop.f32.mrf.mxu0
  %v3863 = vpop.f32.mrf.mxu0
  %v3864 = vadd.f32 %v3781, %v3863
  %v3865 = vpop.f32.mrf.mxu0
  %3866 = vmatprep.mubr.bf16.mxu0 0
  %3867 = vmatmul.mubr.bf16.gmra.mxu0 %v3813
  %v3868 = vpop.f32.mrf.mxu0
  %v3869 = vadd.f32 %v3781, %v3868
  %v3870 = vpop.f32.mrf.mxu0
  %v3871 = vpop.f32.mrf.mxu0
  %v3872 = vadd.f32 %v3781, %v3871
  %v3873 = vpop.f32.mrf.mxu0
  %3874 = vmatprep.mubr.bf16.mxu0 0
  %3875 = vmatmul.mubr.bf16.gmra.mxu0 %v3816
  %v3876 = vpop.f32.mrf.mxu0
  %v3877 = vadd.f32 %v3781, %v3876
  %v3878 = vpop.f32.mrf.mxu0
  %v3879 = vpop.f32.mrf.mxu0
  %v3880 = vadd.f32 %v3781, %v3879
  %v3881 = vpop.f32.mrf.mxu0
  %3882 = vdwg.mxu0
  %v3883 = vmul.f32 %v3853, %v3853
  %v3884 = vmul.f32 %v3856, %v3856
  %v3885 = vmul.f32 %v3861, %v3861
  %v3886 = vmul.f32 %v3864, %v3864
  %v3887 = vmul.f32 %v3869, %v3869
  %v3888 = vmul.f32 %v3872, %v3872
  %v3889 = vmul.f32 %v3877, %v3877
  %v3890 = vmul.f32 %v3880, %v3880
  %v3891 = vmul.f32 %v3853, %v3883
  %v3892 = vmul.f32 %v3856, %v3884
  %v3893 = vmul.f32 %v3861, %v3885
  %v3894 = vmul.f32 %v3864, %v3886
  %v3895 = vmul.f32 %v3869, %v3887
  %v3896 = vmul.f32 %v3872, %v3888
  %v3897 = vmul.f32 %v3877, %v3889
  %v3898 = vmul.f32 %v3880, %v3890
  %v3899 = vmul.f32 %v3891, 0.044715
  %v3900 = vmul.f32 %v3892, 0.044715
  %v3901 = vmul.f32 %v3893, 0.044715
  %v3902 = vmul.f32 %v3894, 0.044715
  %v3903 = vmul.f32 %v3895, 0.044715
  %v3904 = vmul.f32 %v3896, 0.044715
  %v3905 = vmul.f32 %v3897, 0.044715
  %v3906 = vmul.f32 %v3898, 0.044715
  %v3907 = vadd.f32 %v3853, %v3899
  %v3908 = vadd.f32 %v3856, %v3900
  %v3909 = vadd.f32 %v3861, %v3901
  %v3910 = vadd.f32 %v3864, %v3902
  %v3911 = vadd.f32 %v3869, %v3903
  %v3912 = vadd.f32 %v3872, %v3904
  %v3913 = vadd.f32 %v3877, %v3905
  %v3914 = vadd.f32 %v3880, %v3906
  %v3915 = vmul.f32 %v3907, 0.7978846
  %v3916 = vmul.f32 %v3908, 0.7978846
  %v3917 = vmul.f32 %v3909, 0.7978846
  %v3918 = vmul.f32 %v3910, 0.7978846
  %v3919 = vmul.f32 %v3911, 0.7978846
  %v3920 = vmul.f32 %v3912, 0.7978846
  %v3921 = vmul.f32 %v3913, 0.7978846
  %v3922 = vmul.f32 %v3914, 0.7978846
  %v3923 = vtanh.pop %v3915
  %v3924 = vtanh.pop %v3916
  %v3925 = vtanh.pop %v3917
  %v3926 = vtanh.pop %v3918
  %v3927 = vtanh.pop %v3919
  %v3928 = vtanh.pop %v3920
  %v3929 = vtanh.pop %v3921
  %v3930 = vtanh.pop %v3922
  %v3931 = vadd.f32 %v3923, 1.0
  %v3932 = vadd.f32 %v3924, 1.0
  %v3933 = vadd.f32 %v3925, 1.0
  %v3934 = vadd.f32 %v3926, 1.0
  %v3935 = vadd.f32 %v3927, 1.0
  %v3936 = vadd.f32 %v3928, 1.0
  %v3937 = vadd.f32 %v3929, 1.0
  %v3938 = vadd.f32 %v3930, 1.0
  %v3939 = vmul.f32 %v3931, 0.5
  %v3940 = vmul.f32 %v3932, 0.5
  %v3941 = vmul.f32 %v3933, 0.5
  %v3942 = vmul.f32 %v3934, 0.5
  %v3943 = vmul.f32 %v3935, 0.5
  %v3944 = vmul.f32 %v3936, 0.5
  %v3945 = vmul.f32 %v3937, 0.5
  %v3946 = vmul.f32 %v3938, 0.5
  %v3947 = vmul.f32 %v3853, %v3939
  %v3948 = vmul.f32 %v3856, %v3940
  %v3949 = vmul.f32 %v3861, %v3941
  %v3950 = vmul.f32 %v3864, %v3942
  %v3951 = vmul.f32 %v3869, %v3943
  %v3952 = vmul.f32 %v3872, %v3944
  %v3953 = vmul.f32 %v3877, %v3945
  %v3954 = vmul.f32 %v3880, %v3946
  %v3955 = vpack.c.bf16 %v3948, %v3947
  %v3956 = vpack.c.bf16 %v3950, %v3949
  %v3957 = vpack.c.bf16 %v3952, %v3951
  %v3958 = vpack.c.bf16 %v3954, %v3953
  %s3959 = scalar_lea.vmem %s5, 64
  %v3960 = vld [vmem:[%s3959] sm:$0xf]
  %v3961 = vld [vmem:[%s3959 + $0x4] sm:$0xf]
  %v3962 = vld [vmem:[%s3959 + $0x8] sm:$0xf]
  %v3963 = vld [vmem:[%s3959 + $0xc] sm:$0xf]
  %v3964 = vld [vmem:[%s3959 + $0x10] sm:$0xf]
  %v3965 = vld [vmem:[%s3959 + $0x14] sm:$0xf]
  %v3966 = vld [vmem:[%s3959 + $0x18] sm:$0xf]
  %v3967 = vld [vmem:[%s3959 + $0x1c] sm:$0xf]
  %v3968 = vld [vmem:[%s3959 + $0x20] sm:$0xf]
  %v3969 = vld [vmem:[%s3959 + $0x24] sm:$0xf]
  %v3970 = vld [vmem:[%s3959 + $0x28] sm:$0xf]
  %v3971 = vld [vmem:[%s3959 + $0x2c] sm:$0xf]
  %v3972 = vld [vmem:[%s3959 + $0x30] sm:$0xf]
  %v3973 = vld [vmem:[%s3959 + $0x34] sm:$0xf]
  %v3974 = vld [vmem:[%s3959 + $0x38] sm:$0xf]
  %v3975 = vld [vmem:[%s3959 + $0x3c] sm:$0xf]
  %v3976 = vld [vmem:[%s7 + $0x19] sm:$0x1]
  %v3977 = vlaneseq
  %v3978 = vshrl.u32 %v3977, 7
  %v3979 = vsub.s32 0, %v3978
  %v3980 = vrot.slane %v3976, %v3979
  %v3997 = vunpack.c.l.b16 %v3960
  %v3998 = vunpack.c.l.b16 %v3961
  %v3999 = vunpack.c.l.b16 %v3962
  %v4000 = vunpack.c.l.b16 %v3963
  %v4001 = vunpack.c.l.b16 %v3964
  %v4002 = vunpack.c.l.b16 %v3965
  %v4003 = vunpack.c.l.b16 %v3966
  %v4004 = vunpack.c.l.b16 %v3967
  %v4005 = vunpack.c.l.b16 %v3968
  %v4006 = vunpack.c.l.b16 %v3969
  %v4007 = vunpack.c.l.b16 %v3970
  %v4008 = vunpack.c.l.b16 %v3971
  %v4009 = vunpack.c.l.b16 %v3972
  %v4010 = vunpack.c.l.b16 %v3973
  %v4011 = vunpack.c.l.b16 %v3974
  %v4012 = vunpack.c.l.b16 %v3975
  %v4013 = vpack.c.b16 %v3998, %v3997
  %v4014 = vpack.c.b16 %v4000, %v3999
  %v4015 = vpack.c.b16 %v4002, %v4001
  %v4016 = vpack.c.b16 %v4004, %v4003
  %v4017 = vpack.c.b16 %v4006, %v4005
  %v4018 = vpack.c.b16 %v4008, %v4007
  %v4019 = vpack.c.b16 %v4010, %v4009
  %v4020 = vpack.c.b16 %v4012, %v4011
  %4029 = vmatprep.subr.bf16.mxu0 0
  %4030 = vmatpush1.bf16.msra.mxu0 %v4020
  %4031 = vmatprep.subr.bf16.mxu0 0
  %4032 = vmatpush1.bf16.msra.mxu0 %v4019
  %4033 = vmatprep.subr.bf16.mxu0 0
  %4034 = vmatpush1.bf16.msra.mxu0 %v4018
  %4035 = vmatprep.subr.bf16.mxu0 0
  %4036 = vmatpush1.bf16.msra.mxu0 %v4017
  %4037 = vmatprep.subr.bf16.mxu0 0
  %4038 = vmatpush1.bf16.msra.mxu0 %v4016
  %4039 = vmatprep.subr.bf16.mxu0 0
  %4040 = vmatpush1.bf16.msra.mxu0 %v4015
  %4041 = vmatprep.subr.bf16.mxu0 0
  %4042 = vmatpush1.bf16.msra.mxu0 %v4014
  %4043 = vmatprep.subr.bf16.mxu0 0
  %4044 = vmatpush1.bf16.msra.mxu0 %v4013
  %4045 = vmatprep.subr.bf16.mxu0 0
  %4046 = vmatpush2.bf16.msra.mxu0 0
  %4047 = vmatprep.subr.bf16.mxu0 0
  %4048 = vmatpush2.bf16.msra.mxu0 0
  %4049 = vmatprep.subr.bf16.mxu0 0
  %4050 = vmatpush2.bf16.msra.mxu0 0
  %4051 = vmatprep.subr.bf16.mxu0 0
  %4052 = vmatpush2.bf16.msra.mxu0 0
  %4053 = vmatprep.subr.bf16.mxu0 0
  %4054 = vmatpush2.bf16.msra.mxu0 0
  %4055 = vmatprep.subr.bf16.mxu0 0
  %4056 = vmatpush2.bf16.msra.mxu0 0
  %4057 = vmatprep.subr.bf16.mxu0 0
  %4058 = vmatpush2.bf16.msra.mxu0 0
  %4059 = vmatprep.subr.bf16.mxu0 0
  %4060 = vmatpush2.bf16.msra.mxu0 0
  %4061 = vmatprep.mubr.bf16.mxu0 0
  %4062 = vmatmul.mubr.bf16.gmra.mxu0 %v3955
  %v4063 = vpop.f32.mrf.mxu0
  %v4064 = vadd.f32 %v3980, %v4063
  %v4065 = vpop.f32.mrf.mxu0
  %v4066 = vpop.f32.mrf.mxu0
  %v4067 = vadd.f32 %v3980, %v4066
  %v4068 = vpop.f32.mrf.mxu0
  %4069 = vmatprep.mubr.bf16.mxu0 0
  %4070 = vmatmul.mubr.bf16.gmra.mxu0 %v3956
  %v4071 = vpop.f32.mrf.mxu0
  %v4072 = vadd.f32 %v3980, %v4071
  %v4073 = vpop.f32.mrf.mxu0
  %v4074 = vpop.f32.mrf.mxu0
  %v4075 = vadd.f32 %v3980, %v4074
  %v4076 = vpop.f32.mrf.mxu0
  %4077 = vmatprep.mubr.bf16.mxu0 0
  %4078 = vmatmul.mubr.bf16.gmra.mxu0 %v3957
  %v4079 = vpop.f32.mrf.mxu0
  %v4080 = vadd.f32 %v3980, %v4079
  %v4081 = vpop.f32.mrf.mxu0
  %v4082 = vpop.f32.mrf.mxu0
  %v4083 = vadd.f32 %v3980, %v4082
  %v4084 = vpop.f32.mrf.mxu0
  %4085 = vmatprep.mubr.bf16.mxu0 0
  %4086 = vmatmul.mubr.bf16.gmra.mxu0 %v3958
  %v4087 = vpop.f32.mrf.mxu0
  %v4088 = vadd.f32 %v3980, %v4087
  %v4089 = vpop.f32.mrf.mxu0
  %v4090 = vpop.f32.mrf.mxu0
  %v4091 = vadd.f32 %v3980, %v4090
  %v4092 = vpop.f32.mrf.mxu0
  %4093 = vdwg.mxu0
  %v4094 = vadd.f32 %v3756, %v4064
  %v4095 = vadd.f32 %v3757, %v4067
  %v4096 = vadd.f32 %v3758, %v4072
  %v4097 = vadd.f32 %v3759, %v4075
  %v4098 = vadd.f32 %v3760, %v4080
  %v4099 = vadd.f32 %v3761, %v4083
  %v4100 = vadd.f32 %v3762, %v4088
  %v4101 = vadd.f32 %v3763, %v4091
  %v4102 = vsel %vm38, %v4094, 0.0
  %4103 = vadd.xlane.f32.xlu0 %v4102
  %v4104 = vpop.xlane.xlu0 %4103
  %v4105 = vsel %vm38, %v4095, 0.0
  %4106 = vadd.xlane.f32.xlu0 %v4105
  %v4107 = vpop.xlane.xlu0 %4106
  %v4108 = vsel %vm38, %v4096, 0.0
  %4109 = vadd.xlane.f32.xlu0 %v4108
  %v4110 = vpop.xlane.xlu0 %4109
  %v4111 = vsel %vm38, %v4097, 0.0
  %4112 = vadd.xlane.f32.xlu0 %v4111
  %v4113 = vpop.xlane.xlu0 %4112
  %v4114 = vsel %vm38, %v4098, 0.0
  %4115 = vadd.xlane.f32.xlu0 %v4114
  %v4116 = vpop.xlane.xlu0 %4115
  %v4117 = vsel %vm38, %v4099, 0.0
  %4118 = vadd.xlane.f32.xlu0 %v4117
  %v4119 = vpop.xlane.xlu0 %4118
  %v4120 = vsel %vm38, %v4100, 0.0
  %4121 = vadd.xlane.f32.xlu0 %v4120
  %v4122 = vpop.xlane.xlu0 %4121
  %v4123 = vsel %vm38, %v4101, 0.0
  %4124 = vadd.xlane.f32.xlu0 %v4123
  %v4125 = vpop.xlane.xlu0 %4124
  %v4126 = vmul.f32 %v4094, %v4094
  %v4127 = vmul.f32 %v4095, %v4095
  %v4128 = vmul.f32 %v4096, %v4096
  %v4129 = vmul.f32 %v4097, %v4097
  %v4130 = vmul.f32 %v4098, %v4098
  %v4131 = vmul.f32 %v4099, %v4099
  %v4132 = vmul.f32 %v4100, %v4100
  %v4133 = vmul.f32 %v4101, %v4101
  %v4134 = vsel %vm38, %v4126, 0.0
  %4135 = vadd.xlane.f32.xlu0 %v4134
  %v4136 = vpop.xlane.xlu0 %4135
  %v4137 = vsel %vm38, %v4127, 0.0
  %4138 = vadd.xlane.f32.xlu0 %v4137
  %v4139 = vpop.xlane.xlu0 %4138
  %v4140 = vsel %vm38, %v4128, 0.0
  %4141 = vadd.xlane.f32.xlu0 %v4140
  %v4142 = vpop.xlane.xlu0 %4141
  %v4143 = vsel %vm38, %v4129, 0.0
  %4144 = vadd.xlane.f32.xlu0 %v4143
  %v4145 = vpop.xlane.xlu0 %4144
  %v4146 = vsel %vm38, %v4130, 0.0
  %4147 = vadd.xlane.f32.xlu0 %v4146
  %v4148 = vpop.xlane.xlu0 %4147
  %v4149 = vsel %vm38, %v4131, 0.0
  %4150 = vadd.xlane.f32.xlu0 %v4149
  %v4151 = vpop.xlane.xlu0 %4150
  %v4152 = vsel %vm38, %v4132, 0.0
  %4153 = vadd.xlane.f32.xlu0 %v4152
  %v4154 = vpop.xlane.xlu0 %4153
  %v4155 = vsel %vm38, %v4133, 0.0
  %4156 = vadd.xlane.f32.xlu0 %v4155
  %v4157 = vpop.xlane.xlu0 %4156
  %v4158 = vmul.f32 %v4104, 0.015625
  %v4159 = vmul.f32 %v4107, 0.015625
  %v4160 = vmul.f32 %v4110, 0.015625
  %v4161 = vmul.f32 %v4113, 0.015625
  %v4162 = vmul.f32 %v4116, 0.015625
  %v4163 = vmul.f32 %v4119, 0.015625
  %v4164 = vmul.f32 %v4122, 0.015625
  %v4165 = vmul.f32 %v4125, 0.015625
  %v4166 = vmul.f32 %v4136, 0.015625
  %v4167 = vmul.f32 %v4139, 0.015625
  %v4168 = vmul.f32 %v4142, 0.015625
  %v4169 = vmul.f32 %v4145, 0.015625
  %v4170 = vmul.f32 %v4148, 0.015625
  %v4171 = vmul.f32 %v4151, 0.015625
  %v4172 = vmul.f32 %v4154, 0.015625
  %v4173 = vmul.f32 %v4157, 0.015625
  %v4174 = vmul.f32 %v4158, %v4158
  %v4175 = vmul.f32 %v4159, %v4159
  %v4176 = vmul.f32 %v4160, %v4160
  %v4177 = vmul.f32 %v4161, %v4161
  %v4178 = vmul.f32 %v4162, %v4162
  %v4179 = vmul.f32 %v4163, %v4163
  %v4180 = vmul.f32 %v4164, %v4164
  %v4181 = vmul.f32 %v4165, %v4165
  %v4182 = vsub.f32 %v4166, %v4174
  %v4183 = vsub.f32 %v4167, %v4175
  %v4184 = vsub.f32 %v4168, %v4176
  %v4185 = vsub.f32 %v4169, %v4177
  %v4186 = vsub.f32 %v4170, %v4178
  %v4187 = vsub.f32 %v4171, %v4179
  %v4188 = vsub.f32 %v4172, %v4180
  %v4189 = vsub.f32 %v4173, %v4181
  %v4190 = vsub.f32 %v4094, %v4158
  %v4191 = vsub.f32 %v4095, %v4159
  %v4192 = vsub.f32 %v4096, %v4160
  %v4193 = vsub.f32 %v4097, %v4161
  %v4194 = vsub.f32 %v4098, %v4162
  %v4195 = vsub.f32 %v4099, %v4163
  %v4196 = vsub.f32 %v4100, %v4164
  %v4197 = vsub.f32 %v4101, %v4165
  %v4198 = vadd.f32 %v4182, 1e-12
  %v4199 = vadd.f32 %v4183, 1e-12
  %v4200 = vadd.f32 %v4184, 1e-12
  %v4201 = vadd.f32 %v4185, 1e-12
  %v4202 = vadd.f32 %v4186, 1e-12
  %v4203 = vadd.f32 %v4187, 1e-12
  %v4204 = vadd.f32 %v4188, 1e-12
  %v4205 = vadd.f32 %v4189, 1e-12
  %v4206 = vrsqrt.pop %v4198
  %v4207 = vrsqrt.pop %v4199
  %v4208 = vrsqrt.pop %v4200
  %v4209 = vrsqrt.pop %v4201
  %v4210 = vrsqrt.pop %v4202
  %v4211 = vrsqrt.pop %v4203
  %v4212 = vrsqrt.pop %v4204
  %v4213 = vrsqrt.pop %v4205
  %v4214 = vmul.f32 %v4190, %v4206
  %v4215 = vmul.f32 %v4191, %v4207
  %v4216 = vmul.f32 %v4192, %v4208
  %v4217 = vmul.f32 %v4193, %v4209
  %v4218 = vmul.f32 %v4194, %v4210
  %v4219 = vmul.f32 %v4195, %v4211
  %v4220 = vmul.f32 %v4196, %v4212
  %v4221 = vmul.f32 %v4197, %v4213
  %v4222 = vld [vmem:[%s7 + $0x1a] sm:$0x1]
  %v4223 = vlaneseq
  %v4224 = vshrl.u32 %v4223, 7
  %v4225 = vsub.s32 0, %v4224
  %v4226 = vrot.slane %v4222, %v4225
  %v4227 = vmul.f32 %v4214, %v4226
  %v4228 = vmul.f32 %v4215, %v4226
  %v4229 = vmul.f32 %v4216, %v4226
  %v4230 = vmul.f32 %v4217, %v4226
  %v4231 = vmul.f32 %v4218, %v4226
  %v4232 = vmul.f32 %v4219, %v4226
  %v4233 = vmul.f32 %v4220, %v4226
  %v4234 = vmul.f32 %v4221, %v4226
  %v4235 = vld [vmem:[%s7 + $0x1b] sm:$0x1]
  %v4236 = vlaneseq
  %v4237 = vshrl.u32 %v4236, 7
  %v4238 = vsub.s32 0, %v4237
  %v4239 = vrot.slane %v4235, %v4238
  %v4240 = vadd.f32 %v4227, %v4239
  %v4241 = vadd.f32 %v4228, %v4239
  %v4242 = vadd.f32 %v4229, %v4239
  %v4243 = vadd.f32 %v4230, %v4239
  %v4244 = vadd.f32 %v4231, %v4239
  %v4245 = vadd.f32 %v4232, %v4239
  %v4246 = vadd.f32 %v4233, %v4239
  %v4247 = vadd.f32 %v4234, %v4239
  %v4248 = vsel %vm38, %v4240, 0.0
  %v4249 = vsel %vm38, %v4241, 0.0
  %v4250 = vadd.f32 %v4248, %v4249
  %v4251 = vrot.slane %v4250, 4
  %v4252 = vadd.f32 %v4250, %v4251
  %v4253 = vrot.slane %v4252, 2
  %v4254 = vadd.f32 %v4252, %v4253
  %v4255 = vrot.slane %v4254, 1
  %v4256 = vadd.f32 %v4254, %v4255
  %v4257 = vsel %vm38, %v4242, 0.0
  %v4258 = vsel %vm38, %v4243, 0.0
  %v4259 = vadd.f32 %v4257, %v4258
  %v4260 = vrot.slane %v4259, 4
  %v4261 = vadd.f32 %v4259, %v4260
  %v4262 = vrot.slane %v4261, 2
  %v4263 = vadd.f32 %v4261, %v4262
  %v4264 = vrot.slane %v4263, 1
  %v4265 = vadd.f32 %v4263, %v4264
  %v4266 = vsel %vm38, %v4244, 0.0
  %v4267 = vsel %vm38, %v4245, 0.0
  %v4268 = vadd.f32 %v4266, %v4267
  %v4269 = vrot.slane %v4268, 4
  %v4270 = vadd.f32 %v4268, %v4269
  %v4271 = vrot.slane %v4270, 2
  %v4272 = vadd.f32 %v4270, %v4271
  %v4273 = vrot.slane %v4272, 1
  %v4274 = vadd.f32 %v4272, %v4273
  %v4275 = vsel %vm38, %v4246, 0.0
  %v4276 = vsel %vm38, %v4247, 0.0
  %v4277 = vadd.f32 %v4275, %v4276
  %v4278 = vrot.slane %v4277, 4
  %v4279 = vadd.f32 %v4277, %v4278
  %v4280 = vrot.slane %v4279, 2
  %v4281 = vadd.f32 %v4279, %v4280
  %v4282 = vrot.slane %v4281, 1
  %v4283 = vadd.f32 %v4281, %v4282
  %v4284 = vrcp.pop 16.0
  %v4285 = vmul.f32 %v4256, %v4284
  %v4286 = vmul.f32 %v4265, %v4284
  %v4287 = vmul.f32 %v4274, %v4284
  %v4288 = vmul.f32 %v4283, %v4284
  %v4289 = vpack.c.bf16 %v4285, %v4285
  %v4290 = vpack.c.bf16 %v4286, %v4286
  %v4291 = vpack.c.bf16 %v4287, %v4287
  %v4292 = vpack.c.bf16 %v4288, %v4288
  %v4293 = vld [vmem:[%s6] sm:$0xf]
  %v4294 = vld [vmem:[%s6 + $0x4] sm:$0xf]
  %v4295 = vld [vmem:[%s6 + $0x8] sm:$0xf]
  %v4296 = vld [vmem:[%s6 + $0xc] sm:$0xf]
  %v4297 = vld [vmem:[%s6 + $0x10] sm:$0xf]
  %v4298 = vld [vmem:[%s6 + $0x14] sm:$0xf]
  %v4299 = vld [vmem:[%s6 + $0x18] sm:$0xf]
  %v4300 = vld [vmem:[%s6 + $0x1c] sm:$0xf]
  %v4301 = vld [vmem:[%s7 + $0x1c] sm:$0x1]
  %v4302 = vlaneseq
  %v4303 = vshrl.u32 %v4302, 7
  %v4304 = vsub.s32 0, %v4303
  %v4305 = vrot.slane %v4301, %v4304
  %v4310 = vunpack.c.l.b16 %v4289
  %v4311 = vunpack.c.l.b16 %v4290
  %v4312 = vunpack.c.l.b16 %v4291
  %v4313 = vunpack.c.l.b16 %v4292
  %vm4314 = vcmask 1041409
  %v4315 = vsel %vm4314, %v4311, %v4310
  %vm4316 = vcmask 1042434
  %v4317 = vsel %vm4316, %v4312, %v4315
  %vm4318 = vcmask 1043459
  %v4319 = vsel %vm4318, %v4313, %v4317
  %v4320 = vpack.c.b16 %v4319, %v4319
  %v4329 = vunpack.c.l.b16 %v4293
  %v4330 = vunpack.c.l.b16 %v4294
  %v4331 = vunpack.c.l.b16 %v4295
  %v4332 = vunpack.c.l.b16 %v4296
  %v4333 = vunpack.c.l.b16 %v4297
  %v4334 = vunpack.c.l.b16 %v4298
  %v4335 = vunpack.c.l.b16 %v4299
  %v4336 = vunpack.c.l.b16 %v4300
  %v4337 = vpack.c.b16 %v4330, %v4329
  %v4338 = vpack.c.b16 %v4332, %v4331
  %v4339 = vpack.c.b16 %v4334, %v4333
  %v4340 = vpack.c.b16 %v4336, %v4335
  %v4346 = vsel %vm38, %v4320, 0
  %4348 = vmatprep.subr.bf16.mxu0 0
  %4349 = vmatpush1.bf16.msra.mxu0 0
  %4350 = vmatprep.subr.bf16.mxu0 0
  %4351 = vmatpush1.bf16.msra.mxu0 0
  %4352 = vmatprep.subr.bf16.mxu0 0
  %4353 = vmatpush1.bf16.msra.mxu0 0
  %4354 = vmatprep.subr.bf16.mxu0 0
  %4355 = vmatpush1.bf16.msra.mxu0 0
  %4356 = vmatprep.subr.bf16.mxu0 0
  %4357 = vmatpush1.bf16.msra.mxu0 %v4340
  %4358 = vmatprep.subr.bf16.mxu0 0
  %4359 = vmatpush1.bf16.msra.mxu0 %v4339
  %4360 = vmatprep.subr.bf16.mxu0 0
  %4361 = vmatpush1.bf16.msra.mxu0 %v4338
  %4362 = vmatprep.subr.bf16.mxu0 0
  %4363 = vmatpush1.bf16.msra.mxu0 %v4337
  %4364 = vmatprep.subr.bf16.mxu0 0
  %4365 = vmatpush2.bf16.msra.mxu0 0
  %4366 = vmatprep.subr.bf16.mxu0 0
  %4367 = vmatpush2.bf16.msra.mxu0 0
  %4368 = vmatprep.subr.bf16.mxu0 0
  %4369 = vmatpush2.bf16.msra.mxu0 0
  %4370 = vmatprep.subr.bf16.mxu0 0
  %4371 = vmatpush2.bf16.msra.mxu0 0
  %4372 = vmatprep.subr.bf16.mxu0 0
  %4373 = vmatpush2.bf16.msra.mxu0 0
  %4374 = vmatprep.subr.bf16.mxu0 0
  %4375 = vmatpush2.bf16.msra.mxu0 0
  %4376 = vmatprep.subr.bf16.mxu0 0
  %4377 = vmatpush2.bf16.msra.mxu0 0
  %4378 = vmatprep.subr.bf16.mxu0 0
  %4379 = vmatpush2.bf16.msra.mxu0 0
  %4380 = vmatprep.mubr.bf16.mxu0 0
  %4381 = vmatmul.mubr.bf16.gmra.mxu0 %v4346
  %v4382 = vpop.f32.mrf.mxu0
  %v4383 = vadd.f32 %v4305, %v4382
  %v4384 = vpop.f32.mrf.mxu0
  %v4385 = vpop.f32.mrf.mxu0
  %v4386 = vpop.f32.mrf.mxu0
  %4387 = vdwg.mxu0
  %v4388 = vmax.f32 %v4383, 0.0
  %v4389 = vpack.c.bf16 %v4388, %v4388
  %s4390 = scalar_lea.vmem %s6, 64
  %v4391 = vld [vmem:[%s4390] sm:$0xf]
  %v4392 = vld [vmem:[%s4390 + $0x4] sm:$0xf]
  %v4393 = vld [vmem:[%s4390 + $0x8] sm:$0xf]
  %v4394 = vld [vmem:[%s4390 + $0xc] sm:$0xf]
  %v4395 = vld [vmem:[%s4390 + $0x10] sm:$0xf]
  %v4396 = vld [vmem:[%s4390 + $0x14] sm:$0xf]
  %v4397 = vld [vmem:[%s4390 + $0x18] sm:$0xf]
  %v4398 = vld [vmem:[%s4390 + $0x1c] sm:$0xf]
  %v4399 = vld [vmem:[%s4390 + $0x20] sm:$0xf]
  %v4400 = vld [vmem:[%s4390 + $0x24] sm:$0xf]
  %v4401 = vld [vmem:[%s4390 + $0x28] sm:$0xf]
  %v4402 = vld [vmem:[%s4390 + $0x2c] sm:$0xf]
  %v4403 = vld [vmem:[%s4390 + $0x30] sm:$0xf]
  %v4404 = vld [vmem:[%s4390 + $0x34] sm:$0xf]
  %v4405 = vld [vmem:[%s4390 + $0x38] sm:$0xf]
  %v4406 = vld [vmem:[%s4390 + $0x3c] sm:$0xf]
  %v4407 = vld [vmem:[%s7 + $0x1d] sm:$0x1]
  %v4408 = vlaneseq
  %v4409 = vshrl.u32 %v4408, 7
  %v4410 = vsub.s32 0, %v4409
  %v4411 = vrot.slane %v4407, %v4410
  %v4428 = vunpack.c.l.b16 %v4391
  %v4429 = vunpack.c.l.b16 %v4392
  %v4430 = vunpack.c.l.b16 %v4393
  %v4431 = vunpack.c.l.b16 %v4394
  %v4432 = vunpack.c.l.b16 %v4395
  %v4433 = vunpack.c.l.b16 %v4396
  %v4434 = vunpack.c.l.b16 %v4397
  %v4435 = vunpack.c.l.b16 %v4398
  %v4436 = vunpack.c.l.b16 %v4399
  %v4437 = vunpack.c.l.b16 %v4400
  %v4438 = vunpack.c.l.b16 %v4401
  %v4439 = vunpack.c.l.b16 %v4402
  %v4440 = vunpack.c.l.b16 %v4403
  %v4441 = vunpack.c.l.b16 %v4404
  %v4442 = vunpack.c.l.b16 %v4405
  %v4443 = vunpack.c.l.b16 %v4406
  %v4444 = vpack.c.b16 %v4429, %v4428
  %v4445 = vpack.c.b16 %v4431, %v4430
  %v4446 = vpack.c.b16 %v4433, %v4432
  %v4447 = vpack.c.b16 %v4435, %v4434
  %v4448 = vpack.c.b16 %v4437, %v4436
  %v4449 = vpack.c.b16 %v4439, %v4438
  %v4450 = vpack.c.b16 %v4441, %v4440
  %v4451 = vpack.c.b16 %v4443, %v4442
  %4460 = vmatprep.subr.bf16.mxu0 0
  %4461 = vmatpush1.bf16.msra.mxu0 %v4451
  %4462 = vmatprep.subr.bf16.mxu0 0
  %4463 = vmatpush1.bf16.msra.mxu0 %v4450
  %4464 = vmatprep.subr.bf16.mxu0 0
  %4465 = vmatpush1.bf16.msra.mxu0 %v4449
  %4466 = vmatprep.subr.bf16.mxu0 0
  %4467 = vmatpush1.bf16.msra.mxu0 %v4448
  %4468 = vmatprep.subr.bf16.mxu0 0
  %4469 = vmatpush1.bf16.msra.mxu0 %v4447
  %4470 = vmatprep.subr.bf16.mxu0 0
  %4471 = vmatpush1.bf16.msra.mxu0 %v4446
  %4472 = vmatprep.subr.bf16.mxu0 0
  %4473 = vmatpush1.bf16.msra.mxu0 %v4445
  %4474 = vmatprep.subr.bf16.mxu0 0
  %4475 = vmatpush1.bf16.msra.mxu0 %v4444
  %4476 = vmatprep.subr.bf16.mxu0 0
  %4477 = vmatpush2.bf16.msra.mxu0 0
  %4478 = vmatprep.subr.bf16.mxu0 0
  %4479 = vmatpush2.bf16.msra.mxu0 0
  %4480 = vmatprep.subr.bf16.mxu0 0
  %4481 = vmatpush2.bf16.msra.mxu0 0
  %4482 = vmatprep.subr.bf16.mxu0 0
  %4483 = vmatpush2.bf16.msra.mxu0 0
  %4484 = vmatprep.subr.bf16.mxu0 0
  %4485 = vmatpush2.bf16.msra.mxu0 0
  %4486 = vmatprep.subr.bf16.mxu0 0
  %4487 = vmatpush2.bf16.msra.mxu0 0
  %4488 = vmatprep.subr.bf16.mxu0 0
  %4489 = vmatpush2.bf16.msra.mxu0 0
  %4490 = vmatprep.subr.bf16.mxu0 0
  %4491 = vmatpush2.bf16.msra.mxu0 0
  %4492 = vmatprep.mubr.bf16.mxu0 0
  %4493 = vmatmul.mubr.bf16.gmra.mxu0 %v4389
  %v4494 = vpop.f32.mrf.mxu0
  %v4495 = vadd.f32 %v4411, %v4494
  %v4496 = vpop.f32.mrf.mxu0
  %v4497 = vpop.f32.mrf.mxu0
  %v4498 = vpop.f32.mrf.mxu0
  %4499 = vdwg.mxu0
  %v4500 = vmax.f32 %v4495, 0.0
  %v4501 = vpack.c.bf16 %v4500, %v4500
  %s4502 = scalar_lea.vmem %s6, 128
  %v4503 = vld [vmem:[%s4502] sm:$0xf]
  %v4504 = vld [vmem:[%s4502 + $0x4] sm:$0xf]
  %v4505 = vld [vmem:[%s4502 + $0x8] sm:$0xf]
  %v4506 = vld [vmem:[%s4502 + $0xc] sm:$0xf]
  %v4507 = vld [vmem:[%s4502 + $0x10] sm:$0xf]
  %v4508 = vld [vmem:[%s4502 + $0x14] sm:$0xf]
  %v4509 = vld [vmem:[%s4502 + $0x18] sm:$0xf]
  %v4510 = vld [vmem:[%s4502 + $0x1c] sm:$0xf]
  %v4511 = vld [vmem:[%s4502 + $0x20] sm:$0xf]
  %v4512 = vld [vmem:[%s4502 + $0x24] sm:$0xf]
  %v4513 = vld [vmem:[%s4502 + $0x28] sm:$0xf]
  %v4514 = vld [vmem:[%s4502 + $0x2c] sm:$0xf]
  %v4515 = vld [vmem:[%s4502 + $0x30] sm:$0xf]
  %v4516 = vld [vmem:[%s4502 + $0x34] sm:$0xf]
  %v4517 = vld [vmem:[%s4502 + $0x38] sm:$0xf]
  %v4518 = vld [vmem:[%s4502 + $0x3c] sm:$0xf]
  %v4519 = vld [vmem:[%s7 + $0x1e] sm:$0x1]
  %v4520 = vlaneseq
  %v4521 = vshrl.u32 %v4520, 7
  %v4522 = vsub.s32 0, %v4521
  %v4523 = vrot.slane %v4519, %v4522
  %v4540 = vunpack.c.l.b16 %v4503
  %v4541 = vunpack.c.l.b16 %v4504
  %v4542 = vunpack.c.l.b16 %v4505
  %v4543 = vunpack.c.l.b16 %v4506
  %v4544 = vunpack.c.l.b16 %v4507
  %v4545 = vunpack.c.l.b16 %v4508
  %v4546 = vunpack.c.l.b16 %v4509
  %v4547 = vunpack.c.l.b16 %v4510
  %v4548 = vunpack.c.l.b16 %v4511
  %v4549 = vunpack.c.l.b16 %v4512
  %v4550 = vunpack.c.l.b16 %v4513
  %v4551 = vunpack.c.l.b16 %v4514
  %v4552 = vunpack.c.l.b16 %v4515
  %v4553 = vunpack.c.l.b16 %v4516
  %v4554 = vunpack.c.l.b16 %v4517
  %v4555 = vunpack.c.l.b16 %v4518
  %v4556 = vpack.c.b16 %v4541, %v4540
  %v4557 = vpack.c.b16 %v4543, %v4542
  %v4558 = vpack.c.b16 %v4545, %v4544
  %v4559 = vpack.c.b16 %v4547, %v4546
  %v4560 = vpack.c.b16 %v4549, %v4548
  %v4561 = vpack.c.b16 %v4551, %v4550
  %v4562 = vpack.c.b16 %v4553, %v4552
  %v4563 = vpack.c.b16 %v4555, %v4554
  %4572 = vmatprep.subr.bf16.mxu0 0
  %4573 = vmatpush1.bf16.msra.mxu0 %v4563
  %4574 = vmatprep.subr.bf16.mxu0 0
  %4575 = vmatpush1.bf16.msra.mxu0 %v4562
  %4576 = vmatprep.subr.bf16.mxu0 0
  %4577 = vmatpush1.bf16.msra.mxu0 %v4561
  %4578 = vmatprep.subr.bf16.mxu0 0
  %4579 = vmatpush1.bf16.msra.mxu0 %v4560
  %4580 = vmatprep.subr.bf16.mxu0 0
  %4581 = vmatpush1.bf16.msra.mxu0 %v4559
  %4582 = vmatprep.subr.bf16.mxu0 0
  %4583 = vmatpush1.bf16.msra.mxu0 %v4558
  %4584 = vmatprep.subr.bf16.mxu0 0
  %4585 = vmatpush1.bf16.msra.mxu0 %v4557
  %4586 = vmatprep.subr.bf16.mxu0 0
  %4587 = vmatpush1.bf16.msra.mxu0 %v4556
  %4588 = vmatprep.subr.bf16.mxu0 0
  %4589 = vmatpush2.bf16.msra.mxu0 0
  %4590 = vmatprep.subr.bf16.mxu0 0
  %4591 = vmatpush2.bf16.msra.mxu0 0
  %4592 = vmatprep.subr.bf16.mxu0 0
  %4593 = vmatpush2.bf16.msra.mxu0 0
  %4594 = vmatprep.subr.bf16.mxu0 0
  %4595 = vmatpush2.bf16.msra.mxu0 0
  %4596 = vmatprep.subr.bf16.mxu0 0
  %4597 = vmatpush2.bf16.msra.mxu0 0
  %4598 = vmatprep.subr.bf16.mxu0 0
  %4599 = vmatpush2.bf16.msra.mxu0 0
  %4600 = vmatprep.subr.bf16.mxu0 0
  %4601 = vmatpush2.bf16.msra.mxu0 0
  %4602 = vmatprep.subr.bf16.mxu0 0
  %4603 = vmatpush2.bf16.msra.mxu0 0
  %4604 = vmatprep.mubr.bf16.mxu0 0
  %4605 = vmatmul.mubr.bf16.gmra.mxu0 %v4501
  %v4606 = vpop.f32.mrf.mxu0
  %v4607 = vadd.f32 %v4523, %v4606
  %v4608 = vpop.f32.mrf.mxu0
  %v4609 = vpop.f32.mrf.mxu0
  %v4610 = vpop.f32.mrf.mxu0
  %4611 = vdwg.mxu0
  %4612 = vst [vmem:[%s8] sm:$0xf] %v4607
  // Predicated region
  $region34: #{bert_ranker_forward.1} parent=0 // pred_check
    _
  $region35: #{bert_ranker_forward.1} parent=0 // pred_check_branch
    %4614 = sbr.rel (0) target = $region37
  $region36: #{bert_ranker_forward.1} parent=0 // pred_region
    _
  $region37: #{bert_ranker_forward.1} parent=0 // pred_fallthru
    _
  // Predicated region
  $region38: #{bert_ranker_forward.1} parent=0 // pred_check
    _
  $region39: #{bert_ranker_forward.1} parent=0 // pred_check_branch
    %4616 = sbr.rel (0) target = $region41
  $region40: #{bert_ranker_forward.1} parent=0 // pred_region
    _
  $region41: #{bert_ranker_forward.1} parent=0 // pred_fallthru
    _

</llo_original>
